<compile_context>
chip_gen: v6e
topology: v6e:2x2x1
jax: 0.10.0
libtpu: 0.0.40
codegen_flags: <defaults>
</compile_context>

<pallas_src>
import jax
import jax.numpy as jnp
from jax import lax
from jax.experimental import pallas as pl
from jax.experimental.pallas import tpu as pltpu

EPS = 1e-5
NEG_SLOPE = 0.2

# Static sizes used in this script (input length 64).
L_IN = 64
L1 = L_IN - 2            # 62 after conv1 (k=3, valid)
L2 = L1 - 2              # 60 after conv2 (k=3, valid)
H3, W3 = 7, 29           # conv3 output (3x3, stride 2) on the (16, 60) "image"
HP, WP = 3, 14           # after 2x2 maxpool
W_OUT = 14               # final length (conv4 -> (1,14), conv5 keeps 14)

R1 = 8 * L1              # 496 rows after conv1  (channel-major flatten)
R2 = 16 * L2             # 960 rows after conv2
R3 = H3 * W3             # 203 rows after conv3
RP = HP * WP             # 42 rows after maxpool

TB = 128                 # batch tile (lane axis)


def _leaky(v):
    # LeakyReLU(0.2):  max(v, 0.2*v)
    return jnp.maximum(v, NEG_SLOPE * v)


# ------------------------------ Pallas kernel ------------------------------

def inter_axial_kernel(sc_ref,                 # SMEM (3,): shifts for stages 3/4/5
                       x_ref,                  # (L_IN, TB)   batch on lanes
                       m1_ref, sh1_ref,        # (R1, L_IN), (R1, 1)
                       m2_ref, sh2_ref,        # (R2, R1),   (R2, 1)
                       m3_ref,                 # (R3, R2)
                       pool_ref,               # (4, RP, R3) 0/1 selectors
                       m4_ref,                 # (W_OUT, RP)
                       m5_ref,                 # (W_OUT, W_OUT)
                       o_ref):                 # (W_OUT, TB)
    f32 = jnp.float32
    x = x_ref[...]

    # conv1 (1->8, k=3) + bn1 + leaky      (BN scale folded into m1)
    y1 = _leaky(jnp.dot(m1_ref[...], x, preferred_element_type=f32) + sh1_ref[...])

    # conv2 (8->16, k=3) + bn2 + leaky
    y2 = _leaky(jnp.dot(m2_ref[...], y1, preferred_element_type=f32) + sh2_ref[...])

    # conv3 (1->1, 3x3, stride 2) + bn3 + leaky
    y3 = _leaky(jnp.dot(m3_ref[...], y2, preferred_element_type=f32) + sc_ref[0])

    # 2x2 maxpool == elementwise max over 4 exact 0/1-selection matmuls
    mp = jnp.dot(pool_ref[0], y3, preferred_element_type=f32)
    for p in range(1, 4):
        mp = jnp.maximum(mp, jnp.dot(pool_ref[p], y3, preferred_element_type=f32))

    # conv4 (1->1, 3x15, pad (0,7)) + bn4 + leaky   (padding baked into m4)
    y4 = _leaky(jnp.dot(m4_ref[...], mp, preferred_element_type=f32) + sc_ref[1])

    # conv5 (1->1, k=3, pad 1) + bn5 + leaky        (padding baked into m5)
    o_ref[...] = _leaky(jnp.dot(m5_ref[...], y4, preferred_element_type=f32) + sc_ref[2])


# ------------------------------- wrapper ------------------------------------

@jax.jit
def inter_axial_block(x, m1, sh1, m2, sh2, m3, pool, m4, m5, sc):
    B = x.shape[0]
    n_blk = -(-B // TB)
    b_pad = n_blk * TB

    xt = jnp.transpose(x[:, 0, :], (1, 0))                       # (L_IN, B)
    if b_pad != B:
        xt = jnp.pad(xt, ((0, 0), (0, b_pad - B)))               # (L_IN, b_pad)

    grid_spec = pltpu.PrefetchScalarGridSpec(
        num_scalar_prefetch=1,
        grid=(n_blk,),
        in_specs=[
            pl.BlockSpec((L_IN, TB),      lambda b, _s: (0, b)),
            pl.BlockSpec((R1, L_IN),      lambda b, _s: (0, 0)),
            pl.BlockSpec((R1, 1),         lambda b, _s: (0, 0)),
            pl.BlockSpec((R2, R1),        lambda b, _s: (0, 0)),
            pl.BlockSpec((R2, 1),         lambda b, _s: (0, 0)),
            pl.BlockSpec((R3, R2),        lambda b, _s: (0, 0)),
            pl.BlockSpec((4, RP, R3),     lambda b, _s: (0, 0, 0)),
            pl.BlockSpec((W_OUT, RP),     lambda b, _s: (0, 0)),
            pl.BlockSpec((W_OUT, W_OUT),  lambda b, _s: (0, 0)),
        ],
        out_specs=pl.BlockSpec((W_OUT, TB), lambda b, _s: (0, b)),
    )
    out_t = pl.pallas_call(
        inter_axial_kernel,
        out_shape=jax.ShapeDtypeStruct((W_OUT, b_pad), jnp.float32),
        grid_spec=grid_spec,
        compiler_params=pltpu.CompilerParams(dimension_semantics=("parallel",)),
    )(sc, xt, m1, sh1, m2, sh2, m3, pool, m4, m5)

    return jnp.transpose(out_t[:, :B], (1, 0))[:, None, :]       # (B, 1, W_OUT)


# ------------- one-time lowering of convs to dense matrices ------------------

def _conv1d_matrix(w, scale, l_in):
    """w: (C_out, C_in, K) conv1d weight.  Returns the (C_out*L_out, C_in*l_in)
    matrix of the 'valid' cross-correlation, with BN scale folded in.
    Row index = c_out*L_out + p, column index = c_in*l_in + j."""
    c_out, c_in, k = w.shape
    l_out = l_in - k + 1
    d = jnp.arange(l_in)[None, :] - jnp.arange(l_out)[:, None]   # (l_out, l_in)
    valid = (d >= 0) & (d < k)
    m = w[:, :, jnp.clip(d, 0, k - 1)]                           # (c_out, c_in, l_out, l_in)
    m = jnp.where(valid[None, None], m, 0.0)
    m = m * scale[:, None, None, None]
    return (jnp.transpose(m, (0, 2, 1, 3))
            .reshape(c_out * l_out, c_in * l_in).astype(jnp.float32))


def _conv2d_matrix(w, scale, h_in, w_in, stride_h, stride_w, pad_w):
    """w: (KH, KW) single-in/out-channel 2D kernel.  Returns the
    (H_out*W_out, h_in*w_in) matrix of the strided cross-correlation with
    horizontal zero padding pad_w and BN scale folded in."""
    kh, kw = w.shape
    h_out = (h_in - kh) // stride_h + 1
    w_out = (w_in + 2 * pad_w - kw) // stride_w + 1
    di = jnp.arange(h_in)[None, :] - stride_h * jnp.arange(h_out)[:, None]
    dj = (jnp.arange(w_in)[None, :]
          - (stride_w * jnp.arange(w_out)[:, None] - pad_w))
    vi = (di >= 0) & (di < kh)
    vj = (dj >= 0) & (dj < kw)
    m = w[jnp.clip(di, 0, kh - 1)[:, None, :, None],
          jnp.clip(dj, 0, kw - 1)[None, :, None, :]]             # (h_out, w_out, h_in, w_in)
    m = jnp.where(vi[:, None, :, None] & vj[None, :, None, :], m, 0.0)
    return (scale * m).reshape(h_out * w_out, h_in * w_in).astype(jnp.float32)


def _pool_selectors():
    """Four (RP, R3) 0/1 matrices; S_p @ y3 picks one corner of each 2x2 window."""
    idx = jnp.arange(R3)
    r = jnp.arange(HP)[:, None]
    s = jnp.arange(WP)[None, :]
    mats = []
    for dp in range(2):
        for dq in range(2):
            tgt = (2 * r + dp) * W3 + (2 * s + dq)               # (HP, WP)
            mats.append((idx[None, None, :] == tgt[:, :, None])
                        .astype(jnp.float32).reshape(RP, R3))
    return jnp.stack(mats)                                       # (4, RP, R3)


# ---------------- parameter setup (deterministic, synthetic) ----------------

def make_params(key):
    ks = jax.random.split(key, 30)

    def nrm(k, shape, s=0.3):
        return s * jax.random.normal(k, shape, jnp.float32)

    p = {}
    p['w1'] = nrm(ks[0], (8, 1, 3));     p['b1'] = nrm(ks[1], (8,), 0.1)
    p['w2'] = nrm(ks[2], (16, 8, 3));    p['b2'] = nrm(ks[3], (16,), 0.1)
    p['w3'] = nrm(ks[4], (1, 1, 3, 3));  p['b3'] = nrm(ks[5], (1,), 0.1)
    p['w4'] = nrm(ks[6], (1, 1, 3, 15)); p['b4'] = nrm(ks[7], (1,), 0.1)
    p['w5'] = nrm(ks[8], (1, 1, 3));     p['b5'] = nrm(ks[9], (1,), 0.1)
    for n, c, k0 in [('1', 8, 10), ('2', 16, 14), ('3', 1, 18),
                     ('4', 1, 22), ('5', 1, 26)]:
        p['g' + n] = 1.0 + 0.1 * jax.random.normal(ks[k0], (c,), jnp.float32)
        p['be' + n] = 0.1 * jax.random.normal(ks[k0 + 1], (c,), jnp.float32)
        p['rm' + n] = 0.1 * jax.random.normal(ks[k0 + 2], (c,), jnp.float32)
        p['rv' + n] = 0.5 + jax.random.uniform(ks[k0 + 3], (c,), jnp.float32)
    return p


def fold_params(p):
    """Fold conv bias + eval-mode BatchNorm into the conv matrices / shifts."""
    def bn(n):
        s = p['g' + n] / jnp.sqrt(p['rv' + n] + EPS)
        t = p['be' + n] - p['rm' + n] * s
        return s, t

    s1, t1 = bn('1'); s2, t2 = bn('2')
    s3, t3 = bn('3'); s4, t4 = bn('4'); s5, t5 = bn('5')

    m1 = _conv1d_matrix(p['w1'], s1, L_IN)                          # (496, 64)
    sh1 = jnp.repeat(p['b1'] * s1 + t1, L1)[:, None].astype(jnp.float32)
    m2 = _conv1d_matrix(p['w2'], s2, L1)                            # (960, 496)
    sh2 = jnp.repeat(p['b2'] * s2 + t2, L2)[:, None].astype(jnp.float32)
    m3 = _conv2d_matrix(p['w3'][0, 0], s3[0], 16, L2, 2, 2, 0)      # (203, 960)
    m4 = _conv2d_matrix(p['w4'][0, 0], s4[0], HP, WP, 1, 1, 7)      # (14, 42)
    m5 = _conv2d_matrix(p['w5'][0], s5[0], 1, W_OUT, 1, 1, 1)       # (14, 14)
    pool = _pool_selectors()                                        # (4, 42, 203)
    sc = jnp.stack([(p['b3'] * s3 + t3)[0],
                    (p['b4'] * s4 + t4)[0],
                    (p['b5'] * s5 + t5)[0]]).astype(jnp.float32)    # (3,)
    return m1, sh1, m2, sh2, m3, pool, m4, m5, sc


# ---------------- pure-JAX reference (for a correctness check) ----------------

def ref_forward(x, p):
    dn1 = ('NCH', 'OIH', 'NCH')
    dn2 = ('NCHW', 'OIHW', 'NCHW')

    def bn(y, n, nd):
        s = p['g' + n] / jnp.sqrt(p['rv' + n] + EPS)
        t = p['be' + n] - p['rm' + n] * s
        shape = (1, -1) + (1,) * (nd - 2)
        return y * s.reshape(shape) + t.reshape(shape)

    y = lax.conv_general_dilated(x, p['w1'], (1,), [(0, 0)],
                                 dimension_numbers=dn1) + p['b1'].reshape(1, -1, 1)
    y = _leaky(bn(y, '1', 3))
    y = lax.conv_general_dilated(y, p['w2'], (1,), [(0, 0)],
                                 dimension_numbers=dn1) + p['b2'].reshape(1, -1, 1)
    y = _leaky(bn(y, '2', 3))
    y = y.reshape(y.shape[0], 1, y.shape[1], y.shape[2])
    y = lax.conv_general_dilated(y, p['w3'], (2, 2), [(0, 0), (0, 0)],
                                 dimension_numbers=dn2) + p['b3'].reshape(1, -1, 1, 1)
    y = _leaky(bn(y, '3', 4))
    y = lax.reduce_window(y, -jnp.inf, lax.max, (1, 1, 2, 2), (1, 1, 2, 2), 'VALID')
    y = lax.conv_general_dilated(y, p['w4'], (1, 1), [(0, 0), (7, 7)],
                                 dimension_numbers=dn2) + p['b4'].reshape(1, -1, 1, 1)
    y = _leaky(bn(y, '4', 4))
    y = jnp.squeeze(y, axis=1)
    y = lax.conv_general_dilated(y, p['w5'], (1,), [(1, 1)],
                                 dimension_numbers=dn1) + p['b5'].reshape(1, -1, 1)
    y = _leaky(bn(y, '5', 3))
    return y


if __name__ == "__main__":
    key = jax.random.PRNGKey(0)
    pkey, xkey = jax.random.split(key)
    params = make_params(pkey)
    folded = fold_params(params)

    # small batch (single grid step, padded) and a multi-step batch
    for B in (2, 300):
        x = jax.random.normal(jax.random.fold_in(xkey, B), (B, 1, L_IN), jnp.float32)
        out = jax.block_until_ready(inter_axial_block(x, *folded))
        ref = ref_forward(x, params)
        assert out.shape == (B, 1, W_OUT)
        assert bool(jnp.allclose(out, ref, rtol=3e-2, atol=1e-2)), \
            float(jnp.max(jnp.abs(out - ref)))
    print("KERNEL_OK")
</pallas_src>

<mosaic_0001>
module attributes {stable_mosaic.version = 11 : i64} {
  func.func @inter_axial_kernel(%arg0: i32, %arg1: memref<3xf32, #tpu.memory_space<smem>>, %arg2: memref<64x128xf32, #tpu.memory_space<vmem>>, %arg3: memref<496x64xf32, #tpu.memory_space<vmem>>, %arg4: memref<496x1xf32, #tpu.memory_space<vmem>>, %arg5: memref<960x496xf32, #tpu.memory_space<vmem>>, %arg6: memref<960x1xf32, #tpu.memory_space<vmem>>, %arg7: memref<203x960xf32, #tpu.memory_space<vmem>>, %arg8: memref<4x42x203xf32, #tpu.memory_space<vmem>>, %arg9: memref<14x42xf32, #tpu.memory_space<vmem>>, %arg10: memref<14x14xf32, #tpu.memory_space<vmem>>, %arg11: memref<14x128xf32, #tpu.memory_space<vmem>>) attributes {dimension_semantics = [#tpu.dimension_semantics<parallel>], iteration_bounds = array<i64: 1>, scalar_prefetch = 1 : i64, scratch_operands = 0 : i64, tpu.core_type = #tpu.core_type<tc>, window_params = [{transform_indices = @transform_0, window_bounds = array<i64: 64, 128>}, {pipeline_mode = #tpu.pipeline_mode<synchronous>, transform_indices = @transform_1, window_bounds = array<i64: 496, 64>}, {pipeline_mode = #tpu.pipeline_mode<synchronous>, transform_indices = @transform_2, window_bounds = array<i64: 496, 1>}, {pipeline_mode = #tpu.pipeline_mode<synchronous>, transform_indices = @transform_3, window_bounds = array<i64: 960, 496>}, {pipeline_mode = #tpu.pipeline_mode<synchronous>, transform_indices = @transform_4, window_bounds = array<i64: 960, 1>}, {pipeline_mode = #tpu.pipeline_mode<synchronous>, transform_indices = @transform_5, window_bounds = array<i64: 203, 960>}, {pipeline_mode = #tpu.pipeline_mode<synchronous>, transform_indices = @transform_6, window_bounds = array<i64: 4, 42, 203>}, {pipeline_mode = #tpu.pipeline_mode<synchronous>, transform_indices = @transform_7, window_bounds = array<i64: 14, 42>}, {pipeline_mode = #tpu.pipeline_mode<synchronous>, transform_indices = @transform_8, window_bounds = array<i64: 14, 14>}, {transform_indices = @transform_9, window_bounds = array<i64: 14, 128>}]} {
    %c0 = arith.constant 0 : index
    %c0_0 = arith.constant 0 : index
    %0 = vector.load %arg2[%c0, %c0_0] : memref<64x128xf32, #tpu.memory_space<vmem>>, vector<64x128xf32>
    %c0_1 = arith.constant 0 : index
    %c0_2 = arith.constant 0 : index
    %1 = vector.load %arg3[%c0_1, %c0_2] : memref<496x64xf32, #tpu.memory_space<vmem>>, vector<496x64xf32>
    %cst = arith.constant dense<0.000000e+00> : vector<496x128xf32>
    %2 = tpu.matmul %1, %0, %cst {dimension_numbers = #tpu.dot_dimension_numbers<[1], [0], [0], [1], [0, 0, 1, 1], [], []>} : vector<496x64xf32>, vector<64x128xf32>, vector<496x128xf32> -> vector<496x128xf32>
    %c0_3 = arith.constant 0 : index
    %c0_4 = arith.constant 0 : index
    %3 = vector.load %arg4[%c0_3, %c0_4] : memref<496x1xf32, #tpu.memory_space<vmem>>, vector<496x1xf32>
    %4 = vector.broadcast %3 : vector<496x1xf32> to vector<496x128xf32>
    %5 = arith.addf %2, %4 : vector<496x128xf32>
    %cst_5 = arith.constant 2.000000e-01 : f32
    %6 = vector.broadcast %cst_5 : f32 to vector<496x128xf32>
    %7 = arith.mulf %6, %5 : vector<496x128xf32>
    %8 = arith.maximumf %5, %7 : vector<496x128xf32>
    %c0_6 = arith.constant 0 : index
    %c0_7 = arith.constant 0 : index
    %9 = vector.load %arg5[%c0_6, %c0_7] : memref<960x496xf32, #tpu.memory_space<vmem>>, vector<960x496xf32>
    %cst_8 = arith.constant dense<0.000000e+00> : vector<960x128xf32>
    %10 = tpu.matmul %9, %8, %cst_8 {dimension_numbers = #tpu.dot_dimension_numbers<[1], [0], [0], [1], [0, 0, 1, 1], [], []>} : vector<960x496xf32>, vector<496x128xf32>, vector<960x128xf32> -> vector<960x128xf32>
    %c0_9 = arith.constant 0 : index
    %c0_10 = arith.constant 0 : index
    %11 = vector.load %arg6[%c0_9, %c0_10] : memref<960x1xf32, #tpu.memory_space<vmem>>, vector<960x1xf32>
    %12 = vector.broadcast %11 : vector<960x1xf32> to vector<960x128xf32>
    %13 = arith.addf %10, %12 : vector<960x128xf32>
    %cst_11 = arith.constant 2.000000e-01 : f32
    %14 = vector.broadcast %cst_11 : f32 to vector<960x128xf32>
    %15 = arith.mulf %14, %13 : vector<960x128xf32>
    %16 = arith.maximumf %13, %15 : vector<960x128xf32>
    %c0_12 = arith.constant 0 : index
    %c0_13 = arith.constant 0 : index
    %17 = vector.load %arg7[%c0_12, %c0_13] : memref<203x960xf32, #tpu.memory_space<vmem>>, vector<203x960xf32>
    %cst_14 = arith.constant dense<0.000000e+00> : vector<203x128xf32>
    %18 = tpu.matmul %17, %16, %cst_14 {dimension_numbers = #tpu.dot_dimension_numbers<[1], [0], [0], [1], [0, 0, 1, 1], [], []>} : vector<203x960xf32>, vector<960x128xf32>, vector<203x128xf32> -> vector<203x128xf32>
    %c0_15 = arith.constant 0 : index
    %19 = memref.load %arg1[%c0_15] : memref<3xf32, #tpu.memory_space<smem>>
    %20 = vector.broadcast %19 : f32 to vector<203x128xf32>
    %21 = arith.addf %18, %20 : vector<203x128xf32>
    %cst_16 = arith.constant 2.000000e-01 : f32
    %22 = vector.broadcast %cst_16 : f32 to vector<203x128xf32>
    %23 = arith.mulf %22, %21 : vector<203x128xf32>
    %24 = arith.maximumf %21, %23 : vector<203x128xf32>
    %c0_17 = arith.constant 0 : index
    %c0_18 = arith.constant 0 : index
    %c0_19 = arith.constant 0 : index
    %25 = vector.load %arg8[%c0_17, %c0_18, %c0_19] : memref<4x42x203xf32, #tpu.memory_space<vmem>>, vector<1x42x203xf32>
    %26 = vector.shape_cast %25 : vector<1x42x203xf32> to vector<42x203xf32>
    %cst_20 = arith.constant dense<0.000000e+00> : vector<42x128xf32>
    %27 = tpu.matmul %26, %24, %cst_20 {dimension_numbers = #tpu.dot_dimension_numbers<[1], [0], [0], [1], [0, 0, 1, 1], [], []>} : vector<42x203xf32>, vector<203x128xf32>, vector<42x128xf32> -> vector<42x128xf32>
    %c1 = arith.constant 1 : index
    %c0_21 = arith.constant 0 : index
    %c0_22 = arith.constant 0 : index
    %28 = vector.load %arg8[%c1, %c0_21, %c0_22] : memref<4x42x203xf32, #tpu.memory_space<vmem>>, vector<1x42x203xf32>
    %29 = vector.shape_cast %28 : vector<1x42x203xf32> to vector<42x203xf32>
    %cst_23 = arith.constant dense<0.000000e+00> : vector<42x128xf32>
    %30 = tpu.matmul %29, %24, %cst_23 {dimension_numbers = #tpu.dot_dimension_numbers<[1], [0], [0], [1], [0, 0, 1, 1], [], []>} : vector<42x203xf32>, vector<203x128xf32>, vector<42x128xf32> -> vector<42x128xf32>
    %31 = arith.maximumf %27, %30 : vector<42x128xf32>
    %c2 = arith.constant 2 : index
    %c0_24 = arith.constant 0 : index
    %c0_25 = arith.constant 0 : index
    %32 = vector.load %arg8[%c2, %c0_24, %c0_25] : memref<4x42x203xf32, #tpu.memory_space<vmem>>, vector<1x42x203xf32>
    %33 = vector.shape_cast %32 : vector<1x42x203xf32> to vector<42x203xf32>
    %cst_26 = arith.constant dense<0.000000e+00> : vector<42x128xf32>
    %34 = tpu.matmul %33, %24, %cst_26 {dimension_numbers = #tpu.dot_dimension_numbers<[1], [0], [0], [1], [0, 0, 1, 1], [], []>} : vector<42x203xf32>, vector<203x128xf32>, vector<42x128xf32> -> vector<42x128xf32>
    %35 = arith.maximumf %31, %34 : vector<42x128xf32>
    %c3 = arith.constant 3 : index
    %c0_27 = arith.constant 0 : index
    %c0_28 = arith.constant 0 : index
    %36 = vector.load %arg8[%c3, %c0_27, %c0_28] : memref<4x42x203xf32, #tpu.memory_space<vmem>>, vector<1x42x203xf32>
    %37 = vector.shape_cast %36 : vector<1x42x203xf32> to vector<42x203xf32>
    %cst_29 = arith.constant dense<0.000000e+00> : vector<42x128xf32>
    %38 = tpu.matmul %37, %24, %cst_29 {dimension_numbers = #tpu.dot_dimension_numbers<[1], [0], [0], [1], [0, 0, 1, 1], [], []>} : vector<42x203xf32>, vector<203x128xf32>, vector<42x128xf32> -> vector<42x128xf32>
    %39 = arith.maximumf %35, %38 : vector<42x128xf32>
    %c0_30 = arith.constant 0 : index
    %c0_31 = arith.constant 0 : index
    %40 = vector.load %arg9[%c0_30, %c0_31] : memref<14x42xf32, #tpu.memory_space<vmem>>, vector<14x42xf32>
    %cst_32 = arith.constant dense<0.000000e+00> : vector<14x128xf32>
    %41 = tpu.matmul %40, %39, %cst_32 {dimension_numbers = #tpu.dot_dimension_numbers<[1], [0], [0], [1], [0, 0, 1, 1], [], []>} : vector<14x42xf32>, vector<42x128xf32>, vector<14x128xf32> -> vector<14x128xf32>
    %c1_33 = arith.constant 1 : index
    %42 = memref.load %arg1[%c1_33] : memref<3xf32, #tpu.memory_space<smem>>
    %43 = vector.broadcast %42 : f32 to vector<14x128xf32>
    %44 = arith.addf %41, %43 : vector<14x128xf32>
    %cst_34 = arith.constant 2.000000e-01 : f32
    %45 = vector.broadcast %cst_34 : f32 to vector<14x128xf32>
    %46 = arith.mulf %45, %44 : vector<14x128xf32>
    %47 = arith.maximumf %44, %46 : vector<14x128xf32>
    %c0_35 = arith.constant 0 : index
    %c0_36 = arith.constant 0 : index
    %48 = vector.load %arg10[%c0_35, %c0_36] : memref<14x14xf32, #tpu.memory_space<vmem>>, vector<14x14xf32>
    %cst_37 = arith.constant dense<0.000000e+00> : vector<14x128xf32>
    %49 = tpu.matmul %48, %47, %cst_37 {dimension_numbers = #tpu.dot_dimension_numbers<[1], [0], [0], [1], [0, 0, 1, 1], [], []>} : vector<14x14xf32>, vector<14x128xf32>, vector<14x128xf32> -> vector<14x128xf32>
    %c2_38 = arith.constant 2 : index
    %50 = memref.load %arg1[%c2_38] : memref<3xf32, #tpu.memory_space<smem>>
    %51 = vector.broadcast %50 : f32 to vector<14x128xf32>
    %52 = arith.addf %49, %51 : vector<14x128xf32>
    %cst_39 = arith.constant 2.000000e-01 : f32
    %53 = vector.broadcast %cst_39 : f32 to vector<14x128xf32>
    %54 = arith.mulf %53, %52 : vector<14x128xf32>
    %55 = arith.maximumf %52, %54 : vector<14x128xf32>
    %c0_40 = arith.constant 0 : index
    %c0_41 = arith.constant 0 : index
    %56 = vector.load %arg11[%c0_40, %c0_41] : memref<14x128xf32, #tpu.memory_space<vmem>>, vector<14x128xf32>
    tpu.vector_store %arg11[%c0_40, %c0_41], %55 {strides = array<i32>} : memref<14x128xf32, #tpu.memory_space<vmem>>, vector<14x128xf32>,
    return
  }
  func.func @transform_0(%arg0: i32, %arg1: memref<3xf32, #tpu.memory_space<smem>>) -> (i32, i32) {
    %c0_i32 = arith.constant 0 : i32
    %c0_i32_0 = arith.constant 0 : i32
    return %c0_i32, %arg0 : i32, i32
  }
  func.func @transform_1(%arg0: i32, %arg1: memref<3xf32, #tpu.memory_space<smem>>) -> (i32, i32) {
    %c0_i32 = arith.constant 0 : i32
    %c0_i32_0 = arith.constant 0 : i32
    %c0_i32_1 = arith.constant 0 : i32
    return %c0_i32, %c0_i32_0 : i32, i32
  }
  func.func @transform_2(%arg0: i32, %arg1: memref<3xf32, #tpu.memory_space<smem>>) -> (i32, i32) {
    %c0_i32 = arith.constant 0 : i32
    %c0_i32_0 = arith.constant 0 : i32
    %c0_i32_1 = arith.constant 0 : i32
    return %c0_i32, %c0_i32_0 : i32, i32
  }
  func.func @transform_3(%arg0: i32, %arg1: memref<3xf32, #tpu.memory_space<smem>>) -> (i32, i32) {
    %c0_i32 = arith.constant 0 : i32
    %c0_i32_0 = arith.constant 0 : i32
    %c0_i32_1 = arith.constant 0 : i32
    return %c0_i32, %c0_i32_0 : i32, i32
  }
  func.func @transform_4(%arg0: i32, %arg1: memref<3xf32, #tpu.memory_space<smem>>) -> (i32, i32) {
    %c0_i32 = arith.constant 0 : i32
    %c0_i32_0 = arith.constant 0 : i32
    %c0_i32_1 = arith.constant 0 : i32
    return %c0_i32, %c0_i32_0 : i32, i32
  }
  func.func @transform_5(%arg0: i32, %arg1: memref<3xf32, #tpu.memory_space<smem>>) -> (i32, i32) {
    %c0_i32 = arith.constant 0 : i32
    %c0_i32_0 = arith.constant 0 : i32
    %c0_i32_1 = arith.constant 0 : i32
    return %c0_i32, %c0_i32_0 : i32, i32
  }
  func.func @transform_6(%arg0: i32, %arg1: memref<3xf32, #tpu.memory_space<smem>>) -> (i32, i32, i32) {
    %c0_i32 = arith.constant 0 : i32
    %c0_i32_0 = arith.constant 0 : i32
    %c0_i32_1 = arith.constant 0 : i32
    %c0_i32_2 = arith.constant 0 : i32
    return %c0_i32, %c0_i32_0, %c0_i32_1 : i32, i32, i32
  }
  func.func @transform_7(%arg0: i32, %arg1: memref<3xf32, #tpu.memory_space<smem>>) -> (i32, i32) {
    %c0_i32 = arith.constant 0 : i32
    %c0_i32_0 = arith.constant 0 : i32
    %c0_i32_1 = arith.constant 0 : i32
    return %c0_i32, %c0_i32_0 : i32, i32
  }
  func.func @transform_8(%arg0: i32, %arg1: memref<3xf32, #tpu.memory_space<smem>>) -> (i32, i32) {
    %c0_i32 = arith.constant 0 : i32
    %c0_i32_0 = arith.constant 0 : i32
    %c0_i32_1 = arith.constant 0 : i32
    return %c0_i32, %c0_i32_0 : i32, i32
  }
  func.func @transform_9(%arg0: i32, %arg1: memref<3xf32, #tpu.memory_space<smem>>) -> (i32, i32) {
    %c0_i32 = arith.constant 0 : i32
    %c0_i32_0 = arith.constant 0 : i32
    return %c0_i32, %arg0 : i32, i32
  }
}

</mosaic_0001>

<llo_original>
// kernel: inter_axial_block.1
$region0: #{inter_axial_block.1}
  #allocation0 [shape = 'u32[]', space=smem, size = 0x4, offset = 0x4, fixed_abs, tag = 'smem constant byte address 0x4 - core index']
  #allocation1 [shape = 'u32[144,128]{1,0:T(1,128)}', space=vmem, size = 0x12000, scoped, tag = 'internal scratch']
  #allocation2 [shape = 's32[1]{0}', space=sflag, size = 0x4, scoped, tag = 'scoped memory for inter_axial_block.1']
  #allocation3 [shape = 'u8[512]{0}', space=smem, size = 0x200, scoped, tag = 'prefetched SMEM operand 0']
  %s0 = inlined_call_operand.hbm [shape: f32[3], index: 0, kind: input, shape index: {}]
  %s1 = inlined_call_operand.vmem [shape: f32[64,128], index: 1, kind: input, shape index: {}]
  %s2 = inlined_call_operand.vmem [shape: f32[496,64], index: 2, kind: input, shape index: {}]
  %s3 = inlined_call_operand.vmem [shape: f32[496,1], index: 3, kind: input, shape index: {}]
  %s4 = inlined_call_operand.hbm [shape: f32[960,496], index: 4, kind: input, shape index: {}]
  %s5 = inlined_call_operand.vmem [shape: f32[960,1], index: 5, kind: input, shape index: {}]
  %s6 = inlined_call_operand.vmem [shape: f32[203,960], index: 6, kind: input, shape index: {}]
  %s7 = inlined_call_operand.vmem [shape: f32[4,42,203], index: 7, kind: input, shape index: {}]
  %s8 = inlined_call_operand.hbm [shape: f32[14,42], index: 8, kind: input, shape index: {}]
  %s9 = inlined_call_operand.hbm [shape: f32[14,14], index: 9, kind: input, shape index: {}]
  %s10 = inlined_call_operand.vmem [shape: f32[14,128], index: 10, kind: output, shape index: {}]
  %s11 = sld [smem:[#allocation0]]
  $region58: #{inter_axial_block.1} parent=0
    _
  %s13 = ssub.s32 1, %s11
  %s14 = scalar_select 0, %s13, %s11
  %16 = dma.hbm_to_smem %s0, 16, [#allocation3], [#allocation2]
  %17 = dma.done [#allocation2], 16
  %18 = sfence
  $region1: #{inter_axial_block.1} parent=0
    #allocation4 [shape = 'u8[1966080]{0}', space=vmem, size = 0x1e0000, scoped, tag = 'input window, operand 4, single buffered']
    #allocation5 [shape = 's32[1]{0}', space=sflag, size = 0x4, scoped, tag = 'scoped memory for inter_axial_block.1']
    #allocation6 [shape = 'u8[8192]{0}', space=vmem, size = 0x2000, scoped, tag = 'input window, operand 8, single buffered']
    #allocation7 [shape = 's32[1]{0}', space=sflag, size = 0x4, scoped, tag = 'scoped memory for inter_axial_block.1']
    #allocation8 [shape = 'u8[8192]{0}', space=vmem, size = 0x2000, scoped, tag = 'input window, operand 9, single buffered']
    %19 = vsyncpa [#allocation5], 0
    %20 = vsyncpa [#allocation7], 0
    // Predicated region
    $region2: #{inter_axial_block.1} parent=1 // pred_check
      _
    $region3: #{inter_axial_block.1} parent=1 // pred_check_branch
      %22 = sbr.rel (0) target = $region5
    $region4: #{inter_axial_block.1} parent=1 // pred_region
      _
    $region5: #{inter_axial_block.1} parent=1 // pred_fallthru
      _
    // Predicated region
    $region6: #{inter_axial_block.1} parent=1 // pred_check
      _
    $region7: #{inter_axial_block.1} parent=1 // pred_check_branch
      %24 = sbr.rel (0) target = $region9
    $region8: #{inter_axial_block.1} parent=1 // pred_region
      _
    $region9: #{inter_axial_block.1} parent=1 // pred_fallthru
      _
    // Predicated region
    $region10: #{inter_axial_block.1} parent=1 // pred_check
      _
    $region11: #{inter_axial_block.1} parent=1 // pred_check_branch
      %26 = sbr.rel (0) target = $region13
    $region12: #{inter_axial_block.1} parent=1 // pred_region
      _
    $region13: #{inter_axial_block.1} parent=1 // pred_fallthru
      _
    // Predicated region
    $region14: #{inter_axial_block.1} parent=1 // pred_check
      _
    $region15: #{inter_axial_block.1} parent=1 // pred_check_branch
      %28 = sbr.rel (0) target = $region17
    $region16: #{inter_axial_block.1} parent=1 // pred_region
      %s30 = ssub.s32 61440, 61440
      %31 = vsyncadd [#allocation5], %s30
      %s32 = sshll.u32 [#allocation4], 4
      %s33 = int_to_ptr.vmem [resolvable:$true] %s32
      %38 = dma.hbm_to_vmem [thread:$0]  %s4, 61440, %s33, [#allocation5], 512, 512, 32
    $region17: #{inter_axial_block.1} parent=1 // pred_fallthru
      _
    // Predicated region
    $region18: #{inter_axial_block.1} parent=1 // pred_check
      _
    $region19: #{inter_axial_block.1} parent=1 // pred_check_branch
      %40 = sbr.rel (0) target = $region21
    $region20: #{inter_axial_block.1} parent=1 // pred_region
      _
    $region21: #{inter_axial_block.1} parent=1 // pred_fallthru
      _
    // Predicated region
    $region22: #{inter_axial_block.1} parent=1 // pred_check
      _
    $region23: #{inter_axial_block.1} parent=1 // pred_check_branch
      %42 = sbr.rel (0) target = $region25
    $region24: #{inter_axial_block.1} parent=1 // pred_region
      _
    $region25: #{inter_axial_block.1} parent=1 // pred_fallthru
      _
    // Predicated region
    $region26: #{inter_axial_block.1} parent=1 // pred_check
      _
    $region27: #{inter_axial_block.1} parent=1 // pred_check_branch
      %44 = sbr.rel (0) target = $region29
    $region28: #{inter_axial_block.1} parent=1 // pred_region
      _
    $region29: #{inter_axial_block.1} parent=1 // pred_fallthru
      _
    // Predicated region
    $region30: #{inter_axial_block.1} parent=1 // pred_check
      _
    $region31: #{inter_axial_block.1} parent=1 // pred_check_branch
      %46 = sbr.rel (0) target = $region33
    $region32: #{inter_axial_block.1} parent=1 // pred_region
      %s48 = ssub.s32 256, 256
      %49 = vsyncadd [#allocation7], %s48
      %s50 = sshll.u32 [#allocation6], 4
      %s51 = int_to_ptr.vmem [resolvable:$true] %s50
      %56 = dma.hbm_to_vmem [thread:$0]  %s8, 256, %s51, [#allocation7], 128, 128, 8
    $region33: #{inter_axial_block.1} parent=1 // pred_fallthru
      _
    // Predicated region
    $region34: #{inter_axial_block.1} parent=1 // pred_check
      _
    $region35: #{inter_axial_block.1} parent=1 // pred_check_branch
      %58 = sbr.rel (0) target = $region37
    $region36: #{inter_axial_block.1} parent=1 // pred_region
      %s60 = ssub.s32 256, 256
      %61 = vsyncadd [#allocation7], %s60
      %s62 = sshll.u32 [#allocation8], 4
      %s63 = int_to_ptr.vmem [resolvable:$true] %s62
      %68 = dma.hbm_to_vmem [thread:$0]  %s9, 256, %s63, [#allocation7], 128, 128, 8
    $region37: #{inter_axial_block.1} parent=1 // pred_fallthru
      _
    // Predicated region
    $region38: #{inter_axial_block.1} parent=1 // pred_check
      _
    $region39: #{inter_axial_block.1} parent=1 // pred_check_branch
      %70 = sbr.rel (0) target = $region41
    $region40: #{inter_axial_block.1} parent=1 // pred_region
      %71 = dma.done [#allocation5], 61440
    $region41: #{inter_axial_block.1} parent=1 // pred_fallthru
      _
    // Predicated region
    $region42: #{inter_axial_block.1} parent=1 // pred_check
      _
    $region43: #{inter_axial_block.1} parent=1 // pred_check_branch
      %73 = sbr.rel (0) target = $region45
    $region44: #{inter_axial_block.1} parent=1 // pred_region
      %74 = dma.done [#allocation7], 256
    $region45: #{inter_axial_block.1} parent=1 // pred_fallthru
      _
    // Predicated region
    $region46: #{inter_axial_block.1} parent=1 // pred_check
      _
    $region47: #{inter_axial_block.1} parent=1 // pred_check_branch
      %76 = sbr.rel (0) target = $region49
    $region48: #{inter_axial_block.1} parent=1 // pred_region
      %77 = dma.done [#allocation7], 256
    $region49: #{inter_axial_block.1} parent=1 // pred_fallthru
      _
    %v78 = vld [vmem:[%s1] sm:$0xff]
    %v79 = vld [vmem:[%s1 + $0x8] sm:$0xff]
    %v80 = vld [vmem:[%s1 + $0x10] sm:$0xff]
    %v81 = vld [vmem:[%s1 + $0x18] sm:$0xff]
    %v82 = vld [vmem:[%s1 + $0x20] sm:$0xff]
    %v83 = vld [vmem:[%s1 + $0x28] sm:$0xff]
    %v84 = vld [vmem:[%s1 + $0x30] sm:$0xff]
    %v85 = vld [vmem:[%s1 + $0x38] sm:$0xff]
    %v86 = vld [vmem:[%s2] sm:$0xff]
    %v87 = vld [vmem:[%s2 + $0x8] sm:$0xff]
    %v88 = vld [vmem:[%s2 + $0x10] sm:$0xff]
    %v89 = vld [vmem:[%s2 + $0x18] sm:$0xff]
    %v90 = vld [vmem:[%s2 + $0x20] sm:$0xff]
    %v91 = vld [vmem:[%s2 + $0x28] sm:$0xff]
    %v92 = vld [vmem:[%s2 + $0x30] sm:$0xff]
    %v93 = vld [vmem:[%s2 + $0x38] sm:$0xff]
    %v94 = vld [vmem:[%s2 + $0x40] sm:$0xff]
    %v95 = vld [vmem:[%s2 + $0x48] sm:$0xff]
    %v96 = vld [vmem:[%s2 + $0x50] sm:$0xff]
    %v97 = vld [vmem:[%s2 + $0x58] sm:$0xff]
    %v98 = vld [vmem:[%s2 + $0x60] sm:$0xff]
    %v99 = vld [vmem:[%s2 + $0x68] sm:$0xff]
    %v100 = vld [vmem:[%s2 + $0x70] sm:$0xff]
    %v101 = vld [vmem:[%s2 + $0x78] sm:$0xff]
    %v102 = vld [vmem:[%s2 + $0x80] sm:$0xff]
    %v103 = vld [vmem:[%s2 + $0x88] sm:$0xff]
    %v104 = vld [vmem:[%s2 + $0x90] sm:$0xff]
    %v105 = vld [vmem:[%s2 + $0x98] sm:$0xff]
    %v106 = vld [vmem:[%s2 + $0xa0] sm:$0xff]
    %v107 = vld [vmem:[%s2 + $0xa8] sm:$0xff]
    %v108 = vld [vmem:[%s2 + $0xb0] sm:$0xff]
    %v109 = vld [vmem:[%s2 + $0xb8] sm:$0xff]
    %v110 = vld [vmem:[%s2 + $0xc0] sm:$0xff]
    %v111 = vld [vmem:[%s2 + $0xc8] sm:$0xff]
    %v112 = vld [vmem:[%s2 + $0xd0] sm:$0xff]
    %v113 = vld [vmem:[%s2 + $0xd8] sm:$0xff]
    %v114 = vld [vmem:[%s2 + $0xe0] sm:$0xff]
    %v115 = vld [vmem:[%s2 + $0xe8] sm:$0xff]
    %v116 = vld [vmem:[%s2 + $0xf0] sm:$0xff]
    %v117 = vld [vmem:[%s2 + $0xf8] sm:$0xff]
    %v118 = vld [vmem:[%s2 + $0x100] sm:$0xff]
    %v119 = vld [vmem:[%s2 + $0x108] sm:$0xff]
    %v120 = vld [vmem:[%s2 + $0x110] sm:$0xff]
    %v121 = vld [vmem:[%s2 + $0x118] sm:$0xff]
    %v122 = vld [vmem:[%s2 + $0x120] sm:$0xff]
    %v123 = vld [vmem:[%s2 + $0x128] sm:$0xff]
    %v124 = vld [vmem:[%s2 + $0x130] sm:$0xff]
    %v125 = vld [vmem:[%s2 + $0x138] sm:$0xff]
    %v126 = vld [vmem:[%s2 + $0x140] sm:$0xff]
    %v127 = vld [vmem:[%s2 + $0x148] sm:$0xff]
    %v128 = vld [vmem:[%s2 + $0x150] sm:$0xff]
    %v129 = vld [vmem:[%s2 + $0x158] sm:$0xff]
    %v130 = vld [vmem:[%s2 + $0x160] sm:$0xff]
    %v131 = vld [vmem:[%s2 + $0x168] sm:$0xff]
    %v132 = vld [vmem:[%s2 + $0x170] sm:$0xff]
    %v133 = vld [vmem:[%s2 + $0x178] sm:$0xff]
    %v134 = vld [vmem:[%s2 + $0x180] sm:$0xff]
    %v135 = vld [vmem:[%s2 + $0x188] sm:$0xff]
    %v136 = vld [vmem:[%s2 + $0x190] sm:$0xff]
    %v137 = vld [vmem:[%s2 + $0x198] sm:$0xff]
    %v138 = vld [vmem:[%s2 + $0x1a0] sm:$0xff]
    %v139 = vld [vmem:[%s2 + $0x1a8] sm:$0xff]
    %v140 = vld [vmem:[%s2 + $0x1b0] sm:$0xff]
    %v141 = vld [vmem:[%s2 + $0x1b8] sm:$0xff]
    %v142 = vld [vmem:[%s2 + $0x1c0] sm:$0xff]
    %v143 = vld [vmem:[%s2 + $0x1c8] sm:$0xff]
    %v144 = vld [vmem:[%s2 + $0x1d0] sm:$0xff]
    %v145 = vld [vmem:[%s2 + $0x1d8] sm:$0xff]
    %v146 = vld [vmem:[%s2 + $0x1e0] sm:$0xff]
    %v147 = vld [vmem:[%s2 + $0x1e8] sm:$0xff]
    %v148 = vld [vmem:[%s3] sm:$0xff]
    %v149 = vld [vmem:[%s3 + $0x8] sm:$0xff]
    %v150 = vld [vmem:[%s3 + $0x10] sm:$0xff]
    %v151 = vld [vmem:[%s3 + $0x18] sm:$0xff]
    %v152 = vld [vmem:[%s3 + $0x20] sm:$0xff]
    %v153 = vld [vmem:[%s3 + $0x28] sm:$0xff]
    %v154 = vld [vmem:[%s3 + $0x30] sm:$0xff]
    %v155 = vld [vmem:[%s3 + $0x38] sm:$0xff]
    %v156 = vld [vmem:[%s3 + $0x40] sm:$0xff]
    %v157 = vld [vmem:[%s3 + $0x48] sm:$0xff]
    %v158 = vld [vmem:[%s3 + $0x50] sm:$0xff]
    %v159 = vld [vmem:[%s3 + $0x58] sm:$0xff]
    %v160 = vld [vmem:[%s3 + $0x60] sm:$0xff]
    %v161 = vld [vmem:[%s3 + $0x68] sm:$0xff]
    %v162 = vld [vmem:[%s3 + $0x70] sm:$0xff]
    %v163 = vld [vmem:[%s3 + $0x78] sm:$0xff]
    %v164 = vld [vmem:[%s3 + $0x80] sm:$0xff]
    %v165 = vld [vmem:[%s3 + $0x88] sm:$0xff]
    %v166 = vld [vmem:[%s3 + $0x90] sm:$0xff]
    %v167 = vld [vmem:[%s3 + $0x98] sm:$0xff]
    %v168 = vld [vmem:[%s3 + $0xa0] sm:$0xff]
    %v169 = vld [vmem:[%s3 + $0xa8] sm:$0xff]
    %v170 = vld [vmem:[%s3 + $0xb0] sm:$0xff]
    %v171 = vld [vmem:[%s3 + $0xb8] sm:$0xff]
    %v172 = vld [vmem:[%s3 + $0xc0] sm:$0xff]
    %v173 = vld [vmem:[%s3 + $0xc8] sm:$0xff]
    %v174 = vld [vmem:[%s3 + $0xd0] sm:$0xff]
    %v175 = vld [vmem:[%s3 + $0xd8] sm:$0xff]
    %v176 = vld [vmem:[%s3 + $0xe0] sm:$0xff]
    %v177 = vld [vmem:[%s3 + $0xe8] sm:$0xff]
    %v178 = vld [vmem:[%s3 + $0xf0] sm:$0xff]
    %v179 = vld [vmem:[%s3 + $0xf8] sm:$0xff]
    %v180 = vld [vmem:[%s3 + $0x100] sm:$0xff]
    %v181 = vld [vmem:[%s3 + $0x108] sm:$0xff]
    %v182 = vld [vmem:[%s3 + $0x110] sm:$0xff]
    %v183 = vld [vmem:[%s3 + $0x118] sm:$0xff]
    %v184 = vld [vmem:[%s3 + $0x120] sm:$0xff]
    %v185 = vld [vmem:[%s3 + $0x128] sm:$0xff]
    %v186 = vld [vmem:[%s3 + $0x130] sm:$0xff]
    %v187 = vld [vmem:[%s3 + $0x138] sm:$0xff]
    %v188 = vld [vmem:[%s3 + $0x140] sm:$0xff]
    %v189 = vld [vmem:[%s3 + $0x148] sm:$0xff]
    %v190 = vld [vmem:[%s3 + $0x150] sm:$0xff]
    %v191 = vld [vmem:[%s3 + $0x158] sm:$0xff]
    %v192 = vld [vmem:[%s3 + $0x160] sm:$0xff]
    %v193 = vld [vmem:[%s3 + $0x168] sm:$0xff]
    %v194 = vld [vmem:[%s3 + $0x170] sm:$0xff]
    %v195 = vld [vmem:[%s3 + $0x178] sm:$0xff]
    %v196 = vld [vmem:[%s3 + $0x180] sm:$0xff]
    %v197 = vld [vmem:[%s3 + $0x188] sm:$0xff]
    %v198 = vld [vmem:[%s3 + $0x190] sm:$0xff]
    %v199 = vld [vmem:[%s3 + $0x198] sm:$0xff]
    %v200 = vld [vmem:[%s3 + $0x1a0] sm:$0xff]
    %v201 = vld [vmem:[%s3 + $0x1a8] sm:$0xff]
    %v202 = vld [vmem:[%s3 + $0x1b0] sm:$0xff]
    %v203 = vld [vmem:[%s3 + $0x1b8] sm:$0xff]
    %v204 = vld [vmem:[%s3 + $0x1c0] sm:$0xff]
    %v205 = vld [vmem:[%s3 + $0x1c8] sm:$0xff]
    %v206 = vld [vmem:[%s3 + $0x1d0] sm:$0xff]
    %v207 = vld [vmem:[%s3 + $0x1d8] sm:$0xff]
    %v208 = vld [vmem:[%s3 + $0x1e0] sm:$0xff]
    %v209 = vld [vmem:[%s3 + $0x1e8] sm:$0xff]
    %211 = vset.pattern.permute.xlu0 0
    %212 = vperm.xlu0 %211, %v148
    %v213 = vpop.permute.xlu0 %212
    %216 = vset.pattern.permute.xlu0 0
    %217 = vperm.xlu0 %216, %v149
    %v218 = vpop.permute.xlu0 %217
    %221 = vset.pattern.permute.xlu0 0
    %222 = vperm.xlu0 %221, %v150
    %v223 = vpop.permute.xlu0 %222
    %226 = vset.pattern.permute.xlu0 0
    %227 = vperm.xlu0 %226, %v151
    %v228 = vpop.permute.xlu0 %227
    %231 = vset.pattern.permute.xlu0 0
    %232 = vperm.xlu0 %231, %v152
    %v233 = vpop.permute.xlu0 %232
    %236 = vset.pattern.permute.xlu0 0
    %237 = vperm.xlu0 %236, %v153
    %v238 = vpop.permute.xlu0 %237
    %241 = vset.pattern.permute.xlu0 0
    %242 = vperm.xlu0 %241, %v154
    %v243 = vpop.permute.xlu0 %242
    %246 = vset.pattern.permute.xlu0 0
    %247 = vperm.xlu0 %246, %v155
    %v248 = vpop.permute.xlu0 %247
    %251 = vset.pattern.permute.xlu0 0
    %252 = vperm.xlu0 %251, %v156
    %v253 = vpop.permute.xlu0 %252
    %256 = vset.pattern.permute.xlu0 0
    %257 = vperm.xlu0 %256, %v157
    %v258 = vpop.permute.xlu0 %257
    %261 = vset.pattern.permute.xlu0 0
    %262 = vperm.xlu0 %261, %v158
    %v263 = vpop.permute.xlu0 %262
    %266 = vset.pattern.permute.xlu0 0
    %267 = vperm.xlu0 %266, %v159
    %v268 = vpop.permute.xlu0 %267
    %271 = vset.pattern.permute.xlu0 0
    %272 = vperm.xlu0 %271, %v160
    %v273 = vpop.permute.xlu0 %272
    %276 = vset.pattern.permute.xlu0 0
    %277 = vperm.xlu0 %276, %v161
    %v278 = vpop.permute.xlu0 %277
    %281 = vset.pattern.permute.xlu0 0
    %282 = vperm.xlu0 %281, %v162
    %v283 = vpop.permute.xlu0 %282
    %286 = vset.pattern.permute.xlu0 0
    %287 = vperm.xlu0 %286, %v163
    %v288 = vpop.permute.xlu0 %287
    %291 = vset.pattern.permute.xlu0 0
    %292 = vperm.xlu0 %291, %v164
    %v293 = vpop.permute.xlu0 %292
    %296 = vset.pattern.permute.xlu0 0
    %297 = vperm.xlu0 %296, %v165
    %v298 = vpop.permute.xlu0 %297
    %301 = vset.pattern.permute.xlu0 0
    %302 = vperm.xlu0 %301, %v166
    %v303 = vpop.permute.xlu0 %302
    %306 = vset.pattern.permute.xlu0 0
    %307 = vperm.xlu0 %306, %v167
    %v308 = vpop.permute.xlu0 %307
    %311 = vset.pattern.permute.xlu0 0
    %312 = vperm.xlu0 %311, %v168
    %v313 = vpop.permute.xlu0 %312
    %316 = vset.pattern.permute.xlu0 0
    %317 = vperm.xlu0 %316, %v169
    %v318 = vpop.permute.xlu0 %317
    %321 = vset.pattern.permute.xlu0 0
    %322 = vperm.xlu0 %321, %v170
    %v323 = vpop.permute.xlu0 %322
    %326 = vset.pattern.permute.xlu0 0
    %327 = vperm.xlu0 %326, %v171
    %v328 = vpop.permute.xlu0 %327
    %331 = vset.pattern.permute.xlu0 0
    %332 = vperm.xlu0 %331, %v172
    %v333 = vpop.permute.xlu0 %332
    %336 = vset.pattern.permute.xlu0 0
    %337 = vperm.xlu0 %336, %v173
    %v338 = vpop.permute.xlu0 %337
    %341 = vset.pattern.permute.xlu0 0
    %342 = vperm.xlu0 %341, %v174
    %v343 = vpop.permute.xlu0 %342
    %346 = vset.pattern.permute.xlu0 0
    %347 = vperm.xlu0 %346, %v175
    %v348 = vpop.permute.xlu0 %347
    %351 = vset.pattern.permute.xlu0 0
    %352 = vperm.xlu0 %351, %v176
    %v353 = vpop.permute.xlu0 %352
    %356 = vset.pattern.permute.xlu0 0
    %357 = vperm.xlu0 %356, %v177
    %v358 = vpop.permute.xlu0 %357
    %361 = vset.pattern.permute.xlu0 0
    %362 = vperm.xlu0 %361, %v178
    %v363 = vpop.permute.xlu0 %362
    %366 = vset.pattern.permute.xlu0 0
    %367 = vperm.xlu0 %366, %v179
    %v368 = vpop.permute.xlu0 %367
    %371 = vset.pattern.permute.xlu0 0
    %372 = vperm.xlu0 %371, %v180
    %v373 = vpop.permute.xlu0 %372
    %376 = vset.pattern.permute.xlu0 0
    %377 = vperm.xlu0 %376, %v181
    %v378 = vpop.permute.xlu0 %377
    %381 = vset.pattern.permute.xlu0 0
    %382 = vperm.xlu0 %381, %v182
    %v383 = vpop.permute.xlu0 %382
    %386 = vset.pattern.permute.xlu0 0
    %387 = vperm.xlu0 %386, %v183
    %v388 = vpop.permute.xlu0 %387
    %391 = vset.pattern.permute.xlu0 0
    %392 = vperm.xlu0 %391, %v184
    %v393 = vpop.permute.xlu0 %392
    %396 = vset.pattern.permute.xlu0 0
    %397 = vperm.xlu0 %396, %v185
    %v398 = vpop.permute.xlu0 %397
    %401 = vset.pattern.permute.xlu0 0
    %402 = vperm.xlu0 %401, %v186
    %v403 = vpop.permute.xlu0 %402
    %406 = vset.pattern.permute.xlu0 0
    %407 = vperm.xlu0 %406, %v187
    %v408 = vpop.permute.xlu0 %407
    %411 = vset.pattern.permute.xlu0 0
    %412 = vperm.xlu0 %411, %v188
    %v413 = vpop.permute.xlu0 %412
    %416 = vset.pattern.permute.xlu0 0
    %417 = vperm.xlu0 %416, %v189
    %v418 = vpop.permute.xlu0 %417
    %421 = vset.pattern.permute.xlu0 0
    %422 = vperm.xlu0 %421, %v190
    %v423 = vpop.permute.xlu0 %422
    %426 = vset.pattern.permute.xlu0 0
    %427 = vperm.xlu0 %426, %v191
    %v428 = vpop.permute.xlu0 %427
    %431 = vset.pattern.permute.xlu0 0
    %432 = vperm.xlu0 %431, %v192
    %v433 = vpop.permute.xlu0 %432
    %436 = vset.pattern.permute.xlu0 0
    %437 = vperm.xlu0 %436, %v193
    %v438 = vpop.permute.xlu0 %437
    %441 = vset.pattern.permute.xlu0 0
    %442 = vperm.xlu0 %441, %v194
    %v443 = vpop.permute.xlu0 %442
    %446 = vset.pattern.permute.xlu0 0
    %447 = vperm.xlu0 %446, %v195
    %v448 = vpop.permute.xlu0 %447
    %451 = vset.pattern.permute.xlu0 0
    %452 = vperm.xlu0 %451, %v196
    %v453 = vpop.permute.xlu0 %452
    %456 = vset.pattern.permute.xlu0 0
    %457 = vperm.xlu0 %456, %v197
    %v458 = vpop.permute.xlu0 %457
    %461 = vset.pattern.permute.xlu0 0
    %462 = vperm.xlu0 %461, %v198
    %v463 = vpop.permute.xlu0 %462
    %466 = vset.pattern.permute.xlu0 0
    %467 = vperm.xlu0 %466, %v199
    %v468 = vpop.permute.xlu0 %467
    %471 = vset.pattern.permute.xlu0 0
    %472 = vperm.xlu0 %471, %v200
    %v473 = vpop.permute.xlu0 %472
    %476 = vset.pattern.permute.xlu0 0
    %477 = vperm.xlu0 %476, %v201
    %v478 = vpop.permute.xlu0 %477
    %481 = vset.pattern.permute.xlu0 0
    %482 = vperm.xlu0 %481, %v202
    %v483 = vpop.permute.xlu0 %482
    %486 = vset.pattern.permute.xlu0 0
    %487 = vperm.xlu0 %486, %v203
    %v488 = vpop.permute.xlu0 %487
    %491 = vset.pattern.permute.xlu0 0
    %492 = vperm.xlu0 %491, %v204
    %v493 = vpop.permute.xlu0 %492
    %496 = vset.pattern.permute.xlu0 0
    %497 = vperm.xlu0 %496, %v205
    %v498 = vpop.permute.xlu0 %497
    %501 = vset.pattern.permute.xlu0 0
    %502 = vperm.xlu0 %501, %v206
    %v503 = vpop.permute.xlu0 %502
    %506 = vset.pattern.permute.xlu0 0
    %507 = vperm.xlu0 %506, %v207
    %v508 = vpop.permute.xlu0 %507
    %511 = vset.pattern.permute.xlu0 0
    %512 = vperm.xlu0 %511, %v208
    %v513 = vpop.permute.xlu0 %512
    %516 = vset.pattern.permute.xlu0 0
    %517 = vperm.xlu0 %516, %v209
    %v518 = vpop.permute.xlu0 %517
    %vm520 = vcmask 523264
    %v522 = vsel %vm520, %v86, 0
    %v525 = vsel %vm520, %v87, 0
    %v528 = vsel %vm520, %v88, 0
    %v531 = vsel %vm520, %v89, 0
    %v534 = vsel %vm520, %v90, 0
    %v537 = vsel %vm520, %v91, 0
    %v540 = vsel %vm520, %v92, 0
    %v543 = vsel %vm520, %v93, 0
    %v546 = vsel %vm520, %v94, 0
    %v549 = vsel %vm520, %v95, 0
    %v552 = vsel %vm520, %v96, 0
    %v555 = vsel %vm520, %v97, 0
    %v558 = vsel %vm520, %v98, 0
    %v561 = vsel %vm520, %v99, 0
    %v564 = vsel %vm520, %v100, 0
    %v567 = vsel %vm520, %v101, 0
    %v570 = vsel %vm520, %v102, 0
    %v573 = vsel %vm520, %v103, 0
    %v576 = vsel %vm520, %v104, 0
    %v579 = vsel %vm520, %v105, 0
    %v582 = vsel %vm520, %v106, 0
    %v585 = vsel %vm520, %v107, 0
    %v588 = vsel %vm520, %v108, 0
    %v591 = vsel %vm520, %v109, 0
    %v594 = vsel %vm520, %v110, 0
    %v597 = vsel %vm520, %v111, 0
    %v600 = vsel %vm520, %v112, 0
    %v603 = vsel %vm520, %v113, 0
    %v606 = vsel %vm520, %v114, 0
    %v609 = vsel %vm520, %v115, 0
    %v612 = vsel %vm520, %v116, 0
    %v615 = vsel %vm520, %v117, 0
    %v618 = vsel %vm520, %v118, 0
    %v621 = vsel %vm520, %v119, 0
    %v624 = vsel %vm520, %v120, 0
    %v627 = vsel %vm520, %v121, 0
    %v630 = vsel %vm520, %v122, 0
    %v633 = vsel %vm520, %v123, 0
    %v636 = vsel %vm520, %v124, 0
    %v639 = vsel %vm520, %v125, 0
    %v642 = vsel %vm520, %v126, 0
    %v645 = vsel %vm520, %v127, 0
    %v648 = vsel %vm520, %v128, 0
    %v651 = vsel %vm520, %v129, 0
    %v654 = vsel %vm520, %v130, 0
    %v657 = vsel %vm520, %v131, 0
    %v660 = vsel %vm520, %v132, 0
    %v663 = vsel %vm520, %v133, 0
    %v666 = vsel %vm520, %v134, 0
    %v669 = vsel %vm520, %v135, 0
    %v672 = vsel %vm520, %v136, 0
    %v675 = vsel %vm520, %v137, 0
    %v678 = vsel %vm520, %v138, 0
    %v681 = vsel %vm520, %v139, 0
    %v684 = vsel %vm520, %v140, 0
    %v687 = vsel %vm520, %v141, 0
    %v690 = vsel %vm520, %v142, 0
    %v693 = vsel %vm520, %v143, 0
    %v696 = vsel %vm520, %v144, 0
    %v699 = vsel %vm520, %v145, 0
    %v702 = vsel %vm520, %v146, 0
    %v705 = vsel %vm520, %v147, 0
    %707 = vmatprep.subr.mxu0 0.0
    %708 = vmatpush1.msra.mxu0 0.0
    %709 = vmatprep.subr.mxu0 0.0
    %710 = vmatpush1.msra.mxu0 0.0
    %711 = vmatprep.subr.mxu0 0.0
    %712 = vmatpush1.msra.mxu0 0.0
    %713 = vmatprep.subr.mxu0 0.0
    %714 = vmatpush1.msra.mxu0 0.0
    %715 = vmatprep.subr.mxu0 0.0
    %716 = vmatpush1.msra.mxu0 0.0
    %717 = vmatprep.subr.mxu0 0.0
    %718 = vmatpush1.msra.mxu0 0.0
    %719 = vmatprep.subr.mxu0 0.0
    %720 = vmatpush1.msra.mxu0 0.0
    %721 = vmatprep.subr.mxu0 0.0
    %722 = vmatpush1.msra.mxu0 0.0
    %723 = vmatprep.subr.mxu0 0.0
    %724 = vmatpush1.msra.mxu0 %v85
    %725 = vmatprep.subr.mxu0 0.0
    %726 = vmatpush1.msra.mxu0 %v84
    %727 = vmatprep.subr.mxu0 0.0
    %728 = vmatpush1.msra.mxu0 %v83
    %729 = vmatprep.subr.mxu0 0.0
    %730 = vmatpush1.msra.mxu0 %v82
    %731 = vmatprep.subr.mxu0 0.0
    %732 = vmatpush1.msra.mxu0 %v81
    %733 = vmatprep.subr.mxu0 0.0
    %734 = vmatpush1.msra.mxu0 %v80
    %735 = vmatprep.subr.mxu0 0.0
    %736 = vmatpush1.msra.mxu0 %v79
    %737 = vmatprep.subr.mxu0 0.0
    %738 = vmatpush1.msra.mxu0 %v78
    %739 = vmatprep.subr.mxu0 0.0
    %740 = vmatpush2.msra.mxu0 0.0
    %741 = vmatprep.subr.mxu0 0.0
    %742 = vmatpush2.msra.mxu0 0.0
    %743 = vmatprep.subr.mxu0 0.0
    %744 = vmatpush2.msra.mxu0 0.0
    %745 = vmatprep.subr.mxu0 0.0
    %746 = vmatpush2.msra.mxu0 0.0
    %747 = vmatprep.subr.mxu0 0.0
    %748 = vmatpush2.msra.mxu0 0.0
    %749 = vmatprep.subr.mxu0 0.0
    %750 = vmatpush2.msra.mxu0 0.0
    %751 = vmatprep.subr.mxu0 0.0
    %752 = vmatpush2.msra.mxu0 0.0
    %753 = vmatprep.subr.mxu0 0.0
    %754 = vmatpush2.msra.mxu0 0.0
    %755 = vmatprep.subr.mxu0 0.0
    %756 = vmatpush2.msra.mxu0 0.0
    %757 = vmatprep.subr.mxu0 0.0
    %758 = vmatpush2.msra.mxu0 0.0
    %759 = vmatprep.subr.mxu0 0.0
    %760 = vmatpush2.msra.mxu0 0.0
    %761 = vmatprep.subr.mxu0 0.0
    %762 = vmatpush2.msra.mxu0 0.0
    %763 = vmatprep.subr.mxu0 0.0
    %764 = vmatpush2.msra.mxu0 0.0
    %765 = vmatprep.subr.mxu0 0.0
    %766 = vmatpush2.msra.mxu0 0.0
    %767 = vmatprep.subr.mxu0 0.0
    %768 = vmatpush2.msra.mxu0 0.0
    %769 = vmatprep.subr.mxu0 0.0
    %770 = vmatpush2.msra.mxu0 0.0
    %771 = vmatprep.mubr.f32.mxu0 0.0
    %772 = vmatmul.mubr.f32.gmra.mxu0 %v522
    %v773 = vpop.f32.mrf.mxu0
    %v774 = vadd.f32 %v213, %v773
    %v775 = vpop.f32.mrf.mxu0
    %776 = vmatprep.mubr.f32.mxu0 0.0
    %777 = vmatmul.mubr.f32.gmra.mxu0 %v525
    %v778 = vpop.f32.mrf.mxu0
    %v779 = vadd.f32 %v218, %v778
    %v780 = vpop.f32.mrf.mxu0
    %781 = vmatprep.mubr.f32.mxu0 0.0
    %782 = vmatmul.mubr.f32.gmra.mxu0 %v528
    %v783 = vpop.f32.mrf.mxu0
    %v784 = vadd.f32 %v223, %v783
    %v785 = vpop.f32.mrf.mxu0
    %786 = vmatprep.mubr.f32.mxu0 0.0
    %787 = vmatmul.mubr.f32.gmra.mxu0 %v531
    %v788 = vpop.f32.mrf.mxu0
    %v789 = vadd.f32 %v228, %v788
    %v790 = vpop.f32.mrf.mxu0
    %791 = vmatprep.mubr.f32.mxu0 0.0
    %792 = vmatmul.mubr.f32.gmra.mxu0 %v534
    %v793 = vpop.f32.mrf.mxu0
    %v794 = vadd.f32 %v233, %v793
    %v795 = vpop.f32.mrf.mxu0
    %796 = vmatprep.mubr.f32.mxu0 0.0
    %797 = vmatmul.mubr.f32.gmra.mxu0 %v537
    %v798 = vpop.f32.mrf.mxu0
    %v799 = vadd.f32 %v238, %v798
    %v800 = vpop.f32.mrf.mxu0
    %801 = vmatprep.mubr.f32.mxu0 0.0
    %802 = vmatmul.mubr.f32.gmra.mxu0 %v540
    %v803 = vpop.f32.mrf.mxu0
    %v804 = vadd.f32 %v243, %v803
    %v805 = vpop.f32.mrf.mxu0
    %806 = vmatprep.mubr.f32.mxu0 0.0
    %807 = vmatmul.mubr.f32.gmra.mxu0 %v543
    %v808 = vpop.f32.mrf.mxu0
    %v809 = vadd.f32 %v248, %v808
    %v810 = vpop.f32.mrf.mxu0
    %811 = vmatprep.mubr.f32.mxu0 0.0
    %812 = vmatmul.mubr.f32.gmra.mxu0 %v546
    %v813 = vpop.f32.mrf.mxu0
    %v814 = vadd.f32 %v253, %v813
    %v815 = vpop.f32.mrf.mxu0
    %816 = vmatprep.mubr.f32.mxu0 0.0
    %817 = vmatmul.mubr.f32.gmra.mxu0 %v549
    %v818 = vpop.f32.mrf.mxu0
    %v819 = vadd.f32 %v258, %v818
    %v820 = vpop.f32.mrf.mxu0
    %821 = vmatprep.mubr.f32.mxu0 0.0
    %822 = vmatmul.mubr.f32.gmra.mxu0 %v552
    %v823 = vpop.f32.mrf.mxu0
    %v824 = vadd.f32 %v263, %v823
    %v825 = vpop.f32.mrf.mxu0
    %826 = vmatprep.mubr.f32.mxu0 0.0
    %827 = vmatmul.mubr.f32.gmra.mxu0 %v555
    %v828 = vpop.f32.mrf.mxu0
    %v829 = vadd.f32 %v268, %v828
    %v830 = vpop.f32.mrf.mxu0
    %831 = vmatprep.mubr.f32.mxu0 0.0
    %832 = vmatmul.mubr.f32.gmra.mxu0 %v558
    %v833 = vpop.f32.mrf.mxu0
    %v834 = vadd.f32 %v273, %v833
    %v835 = vpop.f32.mrf.mxu0
    %836 = vmatprep.mubr.f32.mxu0 0.0
    %837 = vmatmul.mubr.f32.gmra.mxu0 %v561
    %v838 = vpop.f32.mrf.mxu0
    %v839 = vadd.f32 %v278, %v838
    %v840 = vpop.f32.mrf.mxu0
    %841 = vmatprep.mubr.f32.mxu0 0.0
    %842 = vmatmul.mubr.f32.gmra.mxu0 %v564
    %v843 = vpop.f32.mrf.mxu0
    %v844 = vadd.f32 %v283, %v843
    %v845 = vpop.f32.mrf.mxu0
    %846 = vmatprep.mubr.f32.mxu0 0.0
    %847 = vmatmul.mubr.f32.gmra.mxu0 %v567
    %v848 = vpop.f32.mrf.mxu0
    %v849 = vadd.f32 %v288, %v848
    %v850 = vpop.f32.mrf.mxu0
    %851 = vmatprep.mubr.f32.mxu0 0.0
    %852 = vmatmul.mubr.f32.gmra.mxu0 %v570
    %v853 = vpop.f32.mrf.mxu0
    %v854 = vadd.f32 %v293, %v853
    %v855 = vpop.f32.mrf.mxu0
    %856 = vmatprep.mubr.f32.mxu0 0.0
    %857 = vmatmul.mubr.f32.gmra.mxu0 %v573
    %v858 = vpop.f32.mrf.mxu0
    %v859 = vadd.f32 %v298, %v858
    %v860 = vpop.f32.mrf.mxu0
    %861 = vmatprep.mubr.f32.mxu0 0.0
    %862 = vmatmul.mubr.f32.gmra.mxu0 %v576
    %v863 = vpop.f32.mrf.mxu0
    %v864 = vadd.f32 %v303, %v863
    %v865 = vpop.f32.mrf.mxu0
    %866 = vmatprep.mubr.f32.mxu0 0.0
    %867 = vmatmul.mubr.f32.gmra.mxu0 %v579
    %v868 = vpop.f32.mrf.mxu0
    %v869 = vadd.f32 %v308, %v868
    %v870 = vpop.f32.mrf.mxu0
    %871 = vmatprep.mubr.f32.mxu0 0.0
    %872 = vmatmul.mubr.f32.gmra.mxu0 %v582
    %v873 = vpop.f32.mrf.mxu0
    %v874 = vadd.f32 %v313, %v873
    %v875 = vpop.f32.mrf.mxu0
    %876 = vmatprep.mubr.f32.mxu0 0.0
    %877 = vmatmul.mubr.f32.gmra.mxu0 %v585
    %v878 = vpop.f32.mrf.mxu0
    %v879 = vadd.f32 %v318, %v878
    %v880 = vpop.f32.mrf.mxu0
    %881 = vmatprep.mubr.f32.mxu0 0.0
    %882 = vmatmul.mubr.f32.gmra.mxu0 %v588
    %v883 = vpop.f32.mrf.mxu0
    %v884 = vadd.f32 %v323, %v883
    %v885 = vpop.f32.mrf.mxu0
    %886 = vmatprep.mubr.f32.mxu0 0.0
    %887 = vmatmul.mubr.f32.gmra.mxu0 %v591
    %v888 = vpop.f32.mrf.mxu0
    %v889 = vadd.f32 %v328, %v888
    %v890 = vpop.f32.mrf.mxu0
    %891 = vmatprep.mubr.f32.mxu0 0.0
    %892 = vmatmul.mubr.f32.gmra.mxu0 %v594
    %v893 = vpop.f32.mrf.mxu0
    %v894 = vadd.f32 %v333, %v893
    %v895 = vpop.f32.mrf.mxu0
    %896 = vmatprep.mubr.f32.mxu0 0.0
    %897 = vmatmul.mubr.f32.gmra.mxu0 %v597
    %v898 = vpop.f32.mrf.mxu0
    %v899 = vadd.f32 %v338, %v898
    %v900 = vpop.f32.mrf.mxu0
    %901 = vmatprep.mubr.f32.mxu0 0.0
    %902 = vmatmul.mubr.f32.gmra.mxu0 %v600
    %v903 = vpop.f32.mrf.mxu0
    %v904 = vadd.f32 %v343, %v903
    %v905 = vpop.f32.mrf.mxu0
    %906 = vmatprep.mubr.f32.mxu0 0.0
    %907 = vmatmul.mubr.f32.gmra.mxu0 %v603
    %v908 = vpop.f32.mrf.mxu0
    %v909 = vadd.f32 %v348, %v908
    %v910 = vpop.f32.mrf.mxu0
    %911 = vmatprep.mubr.f32.mxu0 0.0
    %912 = vmatmul.mubr.f32.gmra.mxu0 %v606
    %v913 = vpop.f32.mrf.mxu0
    %v914 = vadd.f32 %v353, %v913
    %v915 = vpop.f32.mrf.mxu0
    %916 = vmatprep.mubr.f32.mxu0 0.0
    %917 = vmatmul.mubr.f32.gmra.mxu0 %v609
    %v918 = vpop.f32.mrf.mxu0
    %v919 = vadd.f32 %v358, %v918
    %v920 = vpop.f32.mrf.mxu0
    %921 = vmatprep.mubr.f32.mxu0 0.0
    %922 = vmatmul.mubr.f32.gmra.mxu0 %v612
    %v923 = vpop.f32.mrf.mxu0
    %v924 = vadd.f32 %v363, %v923
    %v925 = vpop.f32.mrf.mxu0
    %926 = vmatprep.mubr.f32.mxu0 0.0
    %927 = vmatmul.mubr.f32.gmra.mxu0 %v615
    %v928 = vpop.f32.mrf.mxu0
    %v929 = vadd.f32 %v368, %v928
    %v930 = vpop.f32.mrf.mxu0
    %931 = vmatprep.mubr.f32.mxu0 0.0
    %932 = vmatmul.mubr.f32.gmra.mxu0 %v618
    %v933 = vpop.f32.mrf.mxu0
    %v934 = vadd.f32 %v373, %v933
    %v935 = vpop.f32.mrf.mxu0
    %936 = vmatprep.mubr.f32.mxu0 0.0
    %937 = vmatmul.mubr.f32.gmra.mxu0 %v621
    %v938 = vpop.f32.mrf.mxu0
    %v939 = vadd.f32 %v378, %v938
    %v940 = vpop.f32.mrf.mxu0
    %941 = vmatprep.mubr.f32.mxu0 0.0
    %942 = vmatmul.mubr.f32.gmra.mxu0 %v624
    %v943 = vpop.f32.mrf.mxu0
    %v944 = vadd.f32 %v383, %v943
    %v945 = vpop.f32.mrf.mxu0
    %946 = vmatprep.mubr.f32.mxu0 0.0
    %947 = vmatmul.mubr.f32.gmra.mxu0 %v627
    %v948 = vpop.f32.mrf.mxu0
    %v949 = vadd.f32 %v388, %v948
    %v950 = vpop.f32.mrf.mxu0
    %951 = vmatprep.mubr.f32.mxu0 0.0
    %952 = vmatmul.mubr.f32.gmra.mxu0 %v630
    %v953 = vpop.f32.mrf.mxu0
    %v954 = vadd.f32 %v393, %v953
    %v955 = vpop.f32.mrf.mxu0
    %956 = vmatprep.mubr.f32.mxu0 0.0
    %957 = vmatmul.mubr.f32.gmra.mxu0 %v633
    %v958 = vpop.f32.mrf.mxu0
    %v959 = vadd.f32 %v398, %v958
    %v960 = vpop.f32.mrf.mxu0
    %961 = vmatprep.mubr.f32.mxu0 0.0
    %962 = vmatmul.mubr.f32.gmra.mxu0 %v636
    %v963 = vpop.f32.mrf.mxu0
    %v964 = vadd.f32 %v403, %v963
    %v965 = vpop.f32.mrf.mxu0
    %966 = vmatprep.mubr.f32.mxu0 0.0
    %967 = vmatmul.mubr.f32.gmra.mxu0 %v639
    %v968 = vpop.f32.mrf.mxu0
    %v969 = vadd.f32 %v408, %v968
    %v970 = vpop.f32.mrf.mxu0
    %971 = vmatprep.mubr.f32.mxu0 0.0
    %972 = vmatmul.mubr.f32.gmra.mxu0 %v642
    %v973 = vpop.f32.mrf.mxu0
    %v974 = vadd.f32 %v413, %v973
    %v975 = vpop.f32.mrf.mxu0
    %976 = vmatprep.mubr.f32.mxu0 0.0
    %977 = vmatmul.mubr.f32.gmra.mxu0 %v645
    %v978 = vpop.f32.mrf.mxu0
    %v979 = vadd.f32 %v418, %v978
    %v980 = vpop.f32.mrf.mxu0
    %981 = vmatprep.mubr.f32.mxu0 0.0
    %982 = vmatmul.mubr.f32.gmra.mxu0 %v648
    %v983 = vpop.f32.mrf.mxu0
    %v984 = vadd.f32 %v423, %v983
    %v985 = vpop.f32.mrf.mxu0
    %986 = vmatprep.mubr.f32.mxu0 0.0
    %987 = vmatmul.mubr.f32.gmra.mxu0 %v651
    %v988 = vpop.f32.mrf.mxu0
    %v989 = vadd.f32 %v428, %v988
    %v990 = vpop.f32.mrf.mxu0
    %991 = vmatprep.mubr.f32.mxu0 0.0
    %992 = vmatmul.mubr.f32.gmra.mxu0 %v654
    %v993 = vpop.f32.mrf.mxu0
    %v994 = vadd.f32 %v433, %v993
    %v995 = vpop.f32.mrf.mxu0
    %996 = vmatprep.mubr.f32.mxu0 0.0
    %997 = vmatmul.mubr.f32.gmra.mxu0 %v657
    %v998 = vpop.f32.mrf.mxu0
    %v999 = vadd.f32 %v438, %v998
    %v1000 = vpop.f32.mrf.mxu0
    %1001 = vmatprep.mubr.f32.mxu0 0.0
    %1002 = vmatmul.mubr.f32.gmra.mxu0 %v660
    %v1003 = vpop.f32.mrf.mxu0
    %v1004 = vadd.f32 %v443, %v1003
    %v1005 = vpop.f32.mrf.mxu0
    %1006 = vmatprep.mubr.f32.mxu0 0.0
    %1007 = vmatmul.mubr.f32.gmra.mxu0 %v663
    %v1008 = vpop.f32.mrf.mxu0
    %v1009 = vadd.f32 %v448, %v1008
    %v1010 = vpop.f32.mrf.mxu0
    %1011 = vmatprep.mubr.f32.mxu0 0.0
    %1012 = vmatmul.mubr.f32.gmra.mxu0 %v666
    %v1013 = vpop.f32.mrf.mxu0
    %v1014 = vadd.f32 %v453, %v1013
    %v1015 = vpop.f32.mrf.mxu0
    %1016 = vmatprep.mubr.f32.mxu0 0.0
    %1017 = vmatmul.mubr.f32.gmra.mxu0 %v669
    %v1018 = vpop.f32.mrf.mxu0
    %v1019 = vadd.f32 %v458, %v1018
    %v1020 = vpop.f32.mrf.mxu0
    %1021 = vmatprep.mubr.f32.mxu0 0.0
    %1022 = vmatmul.mubr.f32.gmra.mxu0 %v672
    %v1023 = vpop.f32.mrf.mxu0
    %v1024 = vadd.f32 %v463, %v1023
    %v1025 = vpop.f32.mrf.mxu0
    %1026 = vmatprep.mubr.f32.mxu0 0.0
    %1027 = vmatmul.mubr.f32.gmra.mxu0 %v675
    %v1028 = vpop.f32.mrf.mxu0
    %v1029 = vadd.f32 %v468, %v1028
    %v1030 = vpop.f32.mrf.mxu0
    %1031 = vmatprep.mubr.f32.mxu0 0.0
    %1032 = vmatmul.mubr.f32.gmra.mxu0 %v678
    %v1033 = vpop.f32.mrf.mxu0
    %v1034 = vadd.f32 %v473, %v1033
    %v1035 = vpop.f32.mrf.mxu0
    %1036 = vmatprep.mubr.f32.mxu0 0.0
    %1037 = vmatmul.mubr.f32.gmra.mxu0 %v681
    %v1038 = vpop.f32.mrf.mxu0
    %v1039 = vadd.f32 %v478, %v1038
    %v1040 = vpop.f32.mrf.mxu0
    %1041 = vmatprep.mubr.f32.mxu0 0.0
    %1042 = vmatmul.mubr.f32.gmra.mxu0 %v684
    %v1043 = vpop.f32.mrf.mxu0
    %v1044 = vadd.f32 %v483, %v1043
    %v1045 = vpop.f32.mrf.mxu0
    %1046 = vmatprep.mubr.f32.mxu0 0.0
    %1047 = vmatmul.mubr.f32.gmra.mxu0 %v687
    %v1048 = vpop.f32.mrf.mxu0
    %v1049 = vadd.f32 %v488, %v1048
    %v1050 = vpop.f32.mrf.mxu0
    %1051 = vmatprep.mubr.f32.mxu0 0.0
    %1052 = vmatmul.mubr.f32.gmra.mxu0 %v690
    %v1053 = vpop.f32.mrf.mxu0
    %v1054 = vadd.f32 %v493, %v1053
    %v1055 = vpop.f32.mrf.mxu0
    %1056 = vmatprep.mubr.f32.mxu0 0.0
    %1057 = vmatmul.mubr.f32.gmra.mxu0 %v693
    %v1058 = vpop.f32.mrf.mxu0
    %v1059 = vadd.f32 %v498, %v1058
    %v1060 = vpop.f32.mrf.mxu0
    %1061 = vmatprep.mubr.f32.mxu0 0.0
    %1062 = vmatmul.mubr.f32.gmra.mxu0 %v696
    %v1063 = vpop.f32.mrf.mxu0
    %v1064 = vadd.f32 %v503, %v1063
    %v1065 = vpop.f32.mrf.mxu0
    %1066 = vmatprep.mubr.f32.mxu0 0.0
    %1067 = vmatmul.mubr.f32.gmra.mxu0 %v699
    %v1068 = vpop.f32.mrf.mxu0
    %v1069 = vadd.f32 %v508, %v1068
    %v1070 = vpop.f32.mrf.mxu0
    %1071 = vmatprep.mubr.f32.mxu0 0.0
    %1072 = vmatmul.mubr.f32.gmra.mxu0 %v702
    %v1073 = vpop.f32.mrf.mxu0
    %v1074 = vadd.f32 %v513, %v1073
    %v1075 = vpop.f32.mrf.mxu0
    %1076 = vmatprep.mubr.f32.mxu0 0.0
    %1077 = vmatmul.mubr.f32.gmra.mxu0 %v705
    %v1078 = vpop.f32.mrf.mxu0
    %v1079 = vadd.f32 %v518, %v1078
    %v1080 = vpop.f32.mrf.mxu0
    %1081 = vdwg.mxu0
    %v1082 = vmul.f32 %v774, 0.2
    %v1083 = vmul.f32 %v779, 0.2
    %v1084 = vmul.f32 %v784, 0.2
    %v1085 = vmul.f32 %v789, 0.2
    %v1086 = vmul.f32 %v794, 0.2
    %v1087 = vmul.f32 %v799, 0.2
    %v1088 = vmul.f32 %v804, 0.2
    %v1089 = vmul.f32 %v809, 0.2
    %v1090 = vmul.f32 %v814, 0.2
    %v1091 = vmul.f32 %v819, 0.2
    %v1092 = vmul.f32 %v824, 0.2
    %v1093 = vmul.f32 %v829, 0.2
    %v1094 = vmul.f32 %v834, 0.2
    %v1095 = vmul.f32 %v839, 0.2
    %v1096 = vmul.f32 %v844, 0.2
    %v1097 = vmul.f32 %v849, 0.2
    %v1098 = vmul.f32 %v854, 0.2
    %v1099 = vmul.f32 %v859, 0.2
    %v1100 = vmul.f32 %v864, 0.2
    %v1101 = vmul.f32 %v869, 0.2
    %v1102 = vmul.f32 %v874, 0.2
    %v1103 = vmul.f32 %v879, 0.2
    %v1104 = vmul.f32 %v884, 0.2
    %v1105 = vmul.f32 %v889, 0.2
    %v1106 = vmul.f32 %v894, 0.2
    %v1107 = vmul.f32 %v899, 0.2
    %v1108 = vmul.f32 %v904, 0.2
    %v1109 = vmul.f32 %v909, 0.2
    %v1110 = vmul.f32 %v914, 0.2
    %v1111 = vmul.f32 %v919, 0.2
    %v1112 = vmul.f32 %v924, 0.2
    %v1113 = vmul.f32 %v929, 0.2
    %v1114 = vmul.f32 %v934, 0.2
    %v1115 = vmul.f32 %v939, 0.2
    %v1116 = vmul.f32 %v944, 0.2
    %v1117 = vmul.f32 %v949, 0.2
    %v1118 = vmul.f32 %v954, 0.2
    %v1119 = vmul.f32 %v959, 0.2
    %v1120 = vmul.f32 %v964, 0.2
    %v1121 = vmul.f32 %v969, 0.2
    %v1122 = vmul.f32 %v974, 0.2
    %v1123 = vmul.f32 %v979, 0.2
    %v1124 = vmul.f32 %v984, 0.2
    %v1125 = vmul.f32 %v989, 0.2
    %v1126 = vmul.f32 %v994, 0.2
    %v1127 = vmul.f32 %v999, 0.2
    %v1128 = vmul.f32 %v1004, 0.2
    %v1129 = vmul.f32 %v1009, 0.2
    %v1130 = vmul.f32 %v1014, 0.2
    %v1131 = vmul.f32 %v1019, 0.2
    %v1132 = vmul.f32 %v1024, 0.2
    %v1133 = vmul.f32 %v1029, 0.2
    %v1134 = vmul.f32 %v1034, 0.2
    %v1135 = vmul.f32 %v1039, 0.2
    %v1136 = vmul.f32 %v1044, 0.2
    %v1137 = vmul.f32 %v1049, 0.2
    %v1138 = vmul.f32 %v1054, 0.2
    %v1139 = vmul.f32 %v1059, 0.2
    %v1140 = vmul.f32 %v1064, 0.2
    %v1141 = vmul.f32 %v1069, 0.2
    %v1142 = vmul.f32 %v1074, 0.2
    %v1143 = vmul.f32 %v1079, 0.2
    %v1144 = vmax.f32 %v774, %v1082
    %v1145 = vmax.f32 %v779, %v1083
    %v1146 = vmax.f32 %v784, %v1084
    %v1147 = vmax.f32 %v789, %v1085
    %v1148 = vmax.f32 %v794, %v1086
    %v1149 = vmax.f32 %v799, %v1087
    %v1150 = vmax.f32 %v804, %v1088
    %v1151 = vmax.f32 %v809, %v1089
    %v1152 = vmax.f32 %v814, %v1090
    %v1153 = vmax.f32 %v819, %v1091
    %v1154 = vmax.f32 %v824, %v1092
    %v1155 = vmax.f32 %v829, %v1093
    %v1156 = vmax.f32 %v834, %v1094
    %v1157 = vmax.f32 %v839, %v1095
    %v1158 = vmax.f32 %v844, %v1096
    %v1159 = vmax.f32 %v849, %v1097
    %v1160 = vmax.f32 %v854, %v1098
    %v1161 = vmax.f32 %v859, %v1099
    %v1162 = vmax.f32 %v864, %v1100
    %v1163 = vmax.f32 %v869, %v1101
    %v1164 = vmax.f32 %v874, %v1102
    %v1165 = vmax.f32 %v879, %v1103
    %v1166 = vmax.f32 %v884, %v1104
    %v1167 = vmax.f32 %v889, %v1105
    %v1168 = vmax.f32 %v894, %v1106
    %v1169 = vmax.f32 %v899, %v1107
    %v1170 = vmax.f32 %v904, %v1108
    %v1171 = vmax.f32 %v909, %v1109
    %v1172 = vmax.f32 %v914, %v1110
    %v1173 = vmax.f32 %v919, %v1111
    %v1174 = vmax.f32 %v924, %v1112
    %v1175 = vmax.f32 %v929, %v1113
    %v1176 = vmax.f32 %v934, %v1114
    %v1177 = vmax.f32 %v939, %v1115
    %v1178 = vmax.f32 %v944, %v1116
    %v1179 = vmax.f32 %v949, %v1117
    %v1180 = vmax.f32 %v954, %v1118
    %v1181 = vmax.f32 %v959, %v1119
    %v1182 = vmax.f32 %v964, %v1120
    %v1183 = vmax.f32 %v969, %v1121
    %v1184 = vmax.f32 %v974, %v1122
    %v1185 = vmax.f32 %v979, %v1123
    %v1186 = vmax.f32 %v984, %v1124
    %v1187 = vmax.f32 %v989, %v1125
    %v1188 = vmax.f32 %v994, %v1126
    %v1189 = vmax.f32 %v999, %v1127
    %v1190 = vmax.f32 %v1004, %v1128
    %v1191 = vmax.f32 %v1009, %v1129
    %v1192 = vmax.f32 %v1014, %v1130
    %v1193 = vmax.f32 %v1019, %v1131
    %v1194 = vmax.f32 %v1024, %v1132
    %v1195 = vmax.f32 %v1029, %v1133
    %v1196 = vmax.f32 %v1034, %v1134
    %v1197 = vmax.f32 %v1039, %v1135
    %v1198 = vmax.f32 %v1044, %v1136
    %v1199 = vmax.f32 %v1049, %v1137
    %v1200 = vmax.f32 %v1054, %v1138
    %v1201 = vmax.f32 %v1059, %v1139
    %v1202 = vmax.f32 %v1064, %v1140
    %v1203 = vmax.f32 %v1069, %v1141
    %v1204 = vmax.f32 %v1074, %v1142
    %v1205 = vmax.f32 %v1079, %v1143
    %v1206 = vld [vmem:[#allocation4] sm:$0xff]
    %v1207 = vld [vmem:[#allocation4 + $0x8] sm:$0xff]
    %v1208 = vld [vmem:[#allocation4 + $0x10] sm:$0xff]
    %v1209 = vld [vmem:[#allocation4 + $0x18] sm:$0xff]
    %v1210 = vld [vmem:[#allocation4 + $0x20] sm:$0xff]
    %v1211 = vld [vmem:[#allocation4 + $0x28] sm:$0xff]
    %v1212 = vld [vmem:[#allocation4 + $0x30] sm:$0xff]
    %v1213 = vld [vmem:[#allocation4 + $0x38] sm:$0xff]
    %v1214 = vld [vmem:[#allocation4 + $0x40] sm:$0xff]
    %v1215 = vld [vmem:[#allocation4 + $0x48] sm:$0xff]
    %v1216 = vld [vmem:[#allocation4 + $0x50] sm:$0xff]
    %v1217 = vld [vmem:[#allocation4 + $0x58] sm:$0xff]
    %v1218 = vld [vmem:[#allocation4 + $0x60] sm:$0xff]
    %v1219 = vld [vmem:[#allocation4 + $0x68] sm:$0xff]
    %v1220 = vld [vmem:[#allocation4 + $0x70] sm:$0xff]
    %v1221 = vld [vmem:[#allocation4 + $0x78] sm:$0xff]
    %v1222 = vld [vmem:[#allocation4 + $0x80] sm:$0xff]
    %v1223 = vld [vmem:[#allocation4 + $0x88] sm:$0xff]
    %v1224 = vld [vmem:[#allocation4 + $0x90] sm:$0xff]
    %v1225 = vld [vmem:[#allocation4 + $0x98] sm:$0xff]
    %v1226 = vld [vmem:[#allocation4 + $0xa0] sm:$0xff]
    %v1227 = vld [vmem:[#allocation4 + $0xa8] sm:$0xff]
    %v1228 = vld [vmem:[#allocation4 + $0xb0] sm:$0xff]
    %v1229 = vld [vmem:[#allocation4 + $0xb8] sm:$0xff]
    %v1230 = vld [vmem:[#allocation4 + $0xc0] sm:$0xff]
    %v1231 = vld [vmem:[#allocation4 + $0xc8] sm:$0xff]
    %v1232 = vld [vmem:[#allocation4 + $0xd0] sm:$0xff]
    %v1233 = vld [vmem:[#allocation4 + $0xd8] sm:$0xff]
    %v1234 = vld [vmem:[#allocation4 + $0xe0] sm:$0xff]
    %v1235 = vld [vmem:[#allocation4 + $0xe8] sm:$0xff]
    %v1236 = vld [vmem:[#allocation4 + $0xf0] sm:$0xff]
    %v1237 = vld [vmem:[#allocation4 + $0xf8] sm:$0xff]
    %v1238 = vld [vmem:[#allocation4 + $0x100] sm:$0xff]
    %v1239 = vld [vmem:[#allocation4 + $0x108] sm:$0xff]
    %v1240 = vld [vmem:[#allocation4 + $0x110] sm:$0xff]
    %v1241 = vld [vmem:[#allocation4 + $0x118] sm:$0xff]
    %v1242 = vld [vmem:[#allocation4 + $0x120] sm:$0xff]
    %v1243 = vld [vmem:[#allocation4 + $0x128] sm:$0xff]
    %v1244 = vld [vmem:[#allocation4 + $0x130] sm:$0xff]
    %v1245 = vld [vmem:[#allocation4 + $0x138] sm:$0xff]
    %v1246 = vld [vmem:[#allocation4 + $0x140] sm:$0xff]
    %v1247 = vld [vmem:[#allocation4 + $0x148] sm:$0xff]
    %v1248 = vld [vmem:[#allocation4 + $0x150] sm:$0xff]
    %v1249 = vld [vmem:[#allocation4 + $0x158] sm:$0xff]
    %v1250 = vld [vmem:[#allocation4 + $0x160] sm:$0xff]
    %v1251 = vld [vmem:[#allocation4 + $0x168] sm:$0xff]
    %v1252 = vld [vmem:[#allocation4 + $0x170] sm:$0xff]
    %v1253 = vld [vmem:[#allocation4 + $0x178] sm:$0xff]
    %v1254 = vld [vmem:[#allocation4 + $0x180] sm:$0xff]
    %v1255 = vld [vmem:[#allocation4 + $0x188] sm:$0xff]
    %v1256 = vld [vmem:[#allocation4 + $0x190] sm:$0xff]
    %v1257 = vld [vmem:[#allocation4 + $0x198] sm:$0xff]
    %v1258 = vld [vmem:[#allocation4 + $0x1a0] sm:$0xff]
    %v1259 = vld [vmem:[#allocation4 + $0x1a8] sm:$0xff]
    %v1260 = vld [vmem:[#allocation4 + $0x1b0] sm:$0xff]
    %v1261 = vld [vmem:[#allocation4 + $0x1b8] sm:$0xff]
    %v1262 = vld [vmem:[#allocation4 + $0x1c0] sm:$0xff]
    %v1263 = vld [vmem:[#allocation4 + $0x1c8] sm:$0xff]
    %v1264 = vld [vmem:[#allocation4 + $0x1d0] sm:$0xff]
    %v1265 = vld [vmem:[#allocation4 + $0x1d8] sm:$0xff]
    %v1266 = vld [vmem:[#allocation4 + $0x1e0] sm:$0xff]
    %v1267 = vld [vmem:[#allocation4 + $0x1e8] sm:$0xff]
    %v1268 = vld [vmem:[#allocation4 + $0x1f0] sm:$0xff]
    %v1269 = vld [vmem:[#allocation4 + $0x1f8] sm:$0xff]
    %v1270 = vld [vmem:[#allocation4 + $0x200] sm:$0xff]
    %v1271 = vld [vmem:[#allocation4 + $0x208] sm:$0xff]
    %v1272 = vld [vmem:[#allocation4 + $0x210] sm:$0xff]
    %v1273 = vld [vmem:[#allocation4 + $0x218] sm:$0xff]
    %v1274 = vld [vmem:[#allocation4 + $0x220] sm:$0xff]
    %v1275 = vld [vmem:[#allocation4 + $0x228] sm:$0xff]
    %v1276 = vld [vmem:[#allocation4 + $0x230] sm:$0xff]
    %v1277 = vld [vmem:[#allocation4 + $0x238] sm:$0xff]
    %v1278 = vld [vmem:[#allocation4 + $0x240] sm:$0xff]
    %v1279 = vld [vmem:[#allocation4 + $0x248] sm:$0xff]
    %v1280 = vld [vmem:[#allocation4 + $0x250] sm:$0xff]
    %v1281 = vld [vmem:[#allocation4 + $0x258] sm:$0xff]
    %v1282 = vld [vmem:[#allocation4 + $0x260] sm:$0xff]
    %v1283 = vld [vmem:[#allocation4 + $0x268] sm:$0xff]
    %v1284 = vld [vmem:[#allocation4 + $0x270] sm:$0xff]
    %v1285 = vld [vmem:[#allocation4 + $0x278] sm:$0xff]
    %v1286 = vld [vmem:[#allocation4 + $0x280] sm:$0xff]
    %v1287 = vld [vmem:[#allocation4 + $0x288] sm:$0xff]
    %v1288 = vld [vmem:[#allocation4 + $0x290] sm:$0xff]
    %v1289 = vld [vmem:[#allocation4 + $0x298] sm:$0xff]
    %v1290 = vld [vmem:[#allocation4 + $0x2a0] sm:$0xff]
    %v1291 = vld [vmem:[#allocation4 + $0x2a8] sm:$0xff]
    %v1292 = vld [vmem:[#allocation4 + $0x2b0] sm:$0xff]
    %v1293 = vld [vmem:[#allocation4 + $0x2b8] sm:$0xff]
    %v1294 = vld [vmem:[#allocation4 + $0x2c0] sm:$0xff]
    %v1295 = vld [vmem:[#allocation4 + $0x2c8] sm:$0xff]
    %v1296 = vld [vmem:[#allocation4 + $0x2d0] sm:$0xff]
    %v1297 = vld [vmem:[#allocation4 + $0x2d8] sm:$0xff]
    %v1298 = vld [vmem:[#allocation4 + $0x2e0] sm:$0xff]
    %v1299 = vld [vmem:[#allocation4 + $0x2e8] sm:$0xff]
    %v1300 = vld [vmem:[#allocation4 + $0x2f0] sm:$0xff]
    %v1301 = vld [vmem:[#allocation4 + $0x2f8] sm:$0xff]
    %v1302 = vld [vmem:[#allocation4 + $0x300] sm:$0xff]
    %v1303 = vld [vmem:[#allocation4 + $0x308] sm:$0xff]
    %v1304 = vld [vmem:[#allocation4 + $0x310] sm:$0xff]
    %v1305 = vld [vmem:[#allocation4 + $0x318] sm:$0xff]
    %v1306 = vld [vmem:[#allocation4 + $0x320] sm:$0xff]
    %v1307 = vld [vmem:[#allocation4 + $0x328] sm:$0xff]
    %v1308 = vld [vmem:[#allocation4 + $0x330] sm:$0xff]
    %v1309 = vld [vmem:[#allocation4 + $0x338] sm:$0xff]
    %v1310 = vld [vmem:[#allocation4 + $0x340] sm:$0xff]
    %v1311 = vld [vmem:[#allocation4 + $0x348] sm:$0xff]
    %v1312 = vld [vmem:[#allocation4 + $0x350] sm:$0xff]
    %v1313 = vld [vmem:[#allocation4 + $0x358] sm:$0xff]
    %v1314 = vld [vmem:[#allocation4 + $0x360] sm:$0xff]
    %v1315 = vld [vmem:[#allocation4 + $0x368] sm:$0xff]
    %v1316 = vld [vmem:[#allocation4 + $0x370] sm:$0xff]
    %v1317 = vld [vmem:[#allocation4 + $0x378] sm:$0xff]
    %v1318 = vld [vmem:[#allocation4 + $0x380] sm:$0xff]
    %v1319 = vld [vmem:[#allocation4 + $0x388] sm:$0xff]
    %v1320 = vld [vmem:[#allocation4 + $0x390] sm:$0xff]
    %v1321 = vld [vmem:[#allocation4 + $0x398] sm:$0xff]
    %v1322 = vld [vmem:[#allocation4 + $0x3a0] sm:$0xff]
    %v1323 = vld [vmem:[#allocation4 + $0x3a8] sm:$0xff]
    %v1324 = vld [vmem:[#allocation4 + $0x3b0] sm:$0xff]
    %v1325 = vld [vmem:[#allocation4 + $0x3b8] sm:$0xff]
    %v1326 = vld [vmem:[#allocation4 + $0x3c0] sm:$0xff]
    %v1327 = vld [vmem:[#allocation4 + $0x3c8] sm:$0xff]
    %v1328 = vld [vmem:[#allocation4 + $0x3d0] sm:$0xff]
    %v1329 = vld [vmem:[#allocation4 + $0x3d8] sm:$0xff]
    %v1330 = vld [vmem:[#allocation4 + $0x3e0] sm:$0xff]
    %v1331 = vld [vmem:[#allocation4 + $0x3e8] sm:$0xff]
    %v1332 = vld [vmem:[#allocation4 + $0x3f0] sm:$0xff]
    %v1333 = vld [vmem:[#allocation4 + $0x3f8] sm:$0xff]
    %v1334 = vld [vmem:[#allocation4 + $0x400] sm:$0xff]
    %v1335 = vld [vmem:[#allocation4 + $0x408] sm:$0xff]
    %v1336 = vld [vmem:[#allocation4 + $0x410] sm:$0xff]
    %v1337 = vld [vmem:[#allocation4 + $0x418] sm:$0xff]
    %v1338 = vld [vmem:[#allocation4 + $0x420] sm:$0xff]
    %v1339 = vld [vmem:[#allocation4 + $0x428] sm:$0xff]
    %v1340 = vld [vmem:[#allocation4 + $0x430] sm:$0xff]
    %v1341 = vld [vmem:[#allocation4 + $0x438] sm:$0xff]
    %v1342 = vld [vmem:[#allocation4 + $0x440] sm:$0xff]
    %v1343 = vld [vmem:[#allocation4 + $0x448] sm:$0xff]
    %v1344 = vld [vmem:[#allocation4 + $0x450] sm:$0xff]
    %v1345 = vld [vmem:[#allocation4 + $0x458] sm:$0xff]
    %v1346 = vld [vmem:[#allocation4 + $0x460] sm:$0xff]
    %v1347 = vld [vmem:[#allocation4 + $0x468] sm:$0xff]
    %v1348 = vld [vmem:[#allocation4 + $0x470] sm:$0xff]
    %v1349 = vld [vmem:[#allocation4 + $0x478] sm:$0xff]
    %v1350 = vld [vmem:[#allocation4 + $0x480] sm:$0xff]
    %v1351 = vld [vmem:[#allocation4 + $0x488] sm:$0xff]
    %v1352 = vld [vmem:[#allocation4 + $0x490] sm:$0xff]
    %v1353 = vld [vmem:[#allocation4 + $0x498] sm:$0xff]
    %v1354 = vld [vmem:[#allocation4 + $0x4a0] sm:$0xff]
    %v1355 = vld [vmem:[#allocation4 + $0x4a8] sm:$0xff]
    %v1356 = vld [vmem:[#allocation4 + $0x4b0] sm:$0xff]
    %v1357 = vld [vmem:[#allocation4 + $0x4b8] sm:$0xff]
    %v1358 = vld [vmem:[#allocation4 + $0x4c0] sm:$0xff]
    %v1359 = vld [vmem:[#allocation4 + $0x4c8] sm:$0xff]
    %v1360 = vld [vmem:[#allocation4 + $0x4d0] sm:$0xff]
    %v1361 = vld [vmem:[#allocation4 + $0x4d8] sm:$0xff]
    %v1362 = vld [vmem:[#allocation4 + $0x4e0] sm:$0xff]
    %v1363 = vld [vmem:[#allocation4 + $0x4e8] sm:$0xff]
    %v1364 = vld [vmem:[#allocation4 + $0x4f0] sm:$0xff]
    %v1365 = vld [vmem:[#allocation4 + $0x4f8] sm:$0xff]
    %v1366 = vld [vmem:[#allocation4 + $0x500] sm:$0xff]
    %v1367 = vld [vmem:[#allocation4 + $0x508] sm:$0xff]
    %v1368 = vld [vmem:[#allocation4 + $0x510] sm:$0xff]
    %v1369 = vld [vmem:[#allocation4 + $0x518] sm:$0xff]
    %v1370 = vld [vmem:[#allocation4 + $0x520] sm:$0xff]
    %v1371 = vld [vmem:[#allocation4 + $0x528] sm:$0xff]
    %v1372 = vld [vmem:[#allocation4 + $0x530] sm:$0xff]
    %v1373 = vld [vmem:[#allocation4 + $0x538] sm:$0xff]
    %v1374 = vld [vmem:[#allocation4 + $0x540] sm:$0xff]
    %v1375 = vld [vmem:[#allocation4 + $0x548] sm:$0xff]
    %v1376 = vld [vmem:[#allocation4 + $0x550] sm:$0xff]
    %v1377 = vld [vmem:[#allocation4 + $0x558] sm:$0xff]
    %v1378 = vld [vmem:[#allocation4 + $0x560] sm:$0xff]
    %v1379 = vld [vmem:[#allocation4 + $0x568] sm:$0xff]
    %v1380 = vld [vmem:[#allocation4 + $0x570] sm:$0xff]
    %v1381 = vld [vmem:[#allocation4 + $0x578] sm:$0xff]
    %v1382 = vld [vmem:[#allocation4 + $0x580] sm:$0xff]
    %v1383 = vld [vmem:[#allocation4 + $0x588] sm:$0xff]
    %v1384 = vld [vmem:[#allocation4 + $0x590] sm:$0xff]
    %v1385 = vld [vmem:[#allocation4 + $0x598] sm:$0xff]
    %v1386 = vld [vmem:[#allocation4 + $0x5a0] sm:$0xff]
    %v1387 = vld [vmem:[#allocation4 + $0x5a8] sm:$0xff]
    %v1388 = vld [vmem:[#allocation4 + $0x5b0] sm:$0xff]
    %v1389 = vld [vmem:[#allocation4 + $0x5b8] sm:$0xff]
    %v1390 = vld [vmem:[#allocation4 + $0x5c0] sm:$0xff]
    %v1391 = vld [vmem:[#allocation4 + $0x5c8] sm:$0xff]
    %v1392 = vld [vmem:[#allocation4 + $0x5d0] sm:$0xff]
    %v1393 = vld [vmem:[#allocation4 + $0x5d8] sm:$0xff]
    %v1394 = vld [vmem:[#allocation4 + $0x5e0] sm:$0xff]
    %v1395 = vld [vmem:[#allocation4 + $0x5e8] sm:$0xff]
    %v1396 = vld [vmem:[#allocation4 + $0x5f0] sm:$0xff]
    %v1397 = vld [vmem:[#allocation4 + $0x5f8] sm:$0xff]
    %v1398 = vld [vmem:[#allocation4 + $0x600] sm:$0xff]
    %v1399 = vld [vmem:[#allocation4 + $0x608] sm:$0xff]
    %v1400 = vld [vmem:[#allocation4 + $0x610] sm:$0xff]
    %v1401 = vld [vmem:[#allocation4 + $0x618] sm:$0xff]
    %v1402 = vld [vmem:[#allocation4 + $0x620] sm:$0xff]
    %v1403 = vld [vmem:[#allocation4 + $0x628] sm:$0xff]
    %v1404 = vld [vmem:[#allocation4 + $0x630] sm:$0xff]
    %v1405 = vld [vmem:[#allocation4 + $0x638] sm:$0xff]
    %v1406 = vld [vmem:[#allocation4 + $0x640] sm:$0xff]
    %v1407 = vld [vmem:[#allocation4 + $0x648] sm:$0xff]
    %v1408 = vld [vmem:[#allocation4 + $0x650] sm:$0xff]
    %v1409 = vld [vmem:[#allocation4 + $0x658] sm:$0xff]
    %v1410 = vld [vmem:[#allocation4 + $0x660] sm:$0xff]
    %v1411 = vld [vmem:[#allocation4 + $0x668] sm:$0xff]
    %v1412 = vld [vmem:[#allocation4 + $0x670] sm:$0xff]
    %v1413 = vld [vmem:[#allocation4 + $0x678] sm:$0xff]
    %v1414 = vld [vmem:[#allocation4 + $0x680] sm:$0xff]
    %v1415 = vld [vmem:[#allocation4 + $0x688] sm:$0xff]
    %v1416 = vld [vmem:[#allocation4 + $0x690] sm:$0xff]
    %v1417 = vld [vmem:[#allocation4 + $0x698] sm:$0xff]
    %v1418 = vld [vmem:[#allocation4 + $0x6a0] sm:$0xff]
    %v1419 = vld [vmem:[#allocation4 + $0x6a8] sm:$0xff]
    %v1420 = vld [vmem:[#allocation4 + $0x6b0] sm:$0xff]
    %v1421 = vld [vmem:[#allocation4 + $0x6b8] sm:$0xff]
    %v1422 = vld [vmem:[#allocation4 + $0x6c0] sm:$0xff]
    %v1423 = vld [vmem:[#allocation4 + $0x6c8] sm:$0xff]
    %v1424 = vld [vmem:[#allocation4 + $0x6d0] sm:$0xff]
    %v1425 = vld [vmem:[#allocation4 + $0x6d8] sm:$0xff]
    %v1426 = vld [vmem:[#allocation4 + $0x6e0] sm:$0xff]
    %v1427 = vld [vmem:[#allocation4 + $0x6e8] sm:$0xff]
    %v1428 = vld [vmem:[#allocation4 + $0x6f0] sm:$0xff]
    %v1429 = vld [vmem:[#allocation4 + $0x6f8] sm:$0xff]
    %v1430 = vld [vmem:[#allocation4 + $0x700] sm:$0xff]
    %v1431 = vld [vmem:[#allocation4 + $0x708] sm:$0xff]
    %v1432 = vld [vmem:[#allocation4 + $0x710] sm:$0xff]
    %v1433 = vld [vmem:[#allocation4 + $0x718] sm:$0xff]
    %v1434 = vld [vmem:[#allocation4 + $0x720] sm:$0xff]
    %v1435 = vld [vmem:[#allocation4 + $0x728] sm:$0xff]
    %v1436 = vld [vmem:[#allocation4 + $0x730] sm:$0xff]
    %v1437 = vld [vmem:[#allocation4 + $0x738] sm:$0xff]
    %v1438 = vld [vmem:[#allocation4 + $0x740] sm:$0xff]
    %v1439 = vld [vmem:[#allocation4 + $0x748] sm:$0xff]
    %v1440 = vld [vmem:[#allocation4 + $0x750] sm:$0xff]
    %v1441 = vld [vmem:[#allocation4 + $0x758] sm:$0xff]
    %v1442 = vld [vmem:[#allocation4 + $0x760] sm:$0xff]
    %v1443 = vld [vmem:[#allocation4 + $0x768] sm:$0xff]
    %v1444 = vld [vmem:[#allocation4 + $0x770] sm:$0xff]
    %v1445 = vld [vmem:[#allocation4 + $0x778] sm:$0xff]
    %v1446 = vld [vmem:[#allocation4 + $0x780] sm:$0xff]
    %v1447 = vld [vmem:[#allocation4 + $0x788] sm:$0xff]
    %v1448 = vld [vmem:[#allocation4 + $0x790] sm:$0xff]
    %v1449 = vld [vmem:[#allocation4 + $0x798] sm:$0xff]
    %v1450 = vld [vmem:[#allocation4 + $0x7a0] sm:$0xff]
    %v1451 = vld [vmem:[#allocation4 + $0x7a8] sm:$0xff]
    %v1452 = vld [vmem:[#allocation4 + $0x7b0] sm:$0xff]
    %v1453 = vld [vmem:[#allocation4 + $0x7b8] sm:$0xff]
    %v1454 = vld [vmem:[#allocation4 + $0x7c0] sm:$0xff]
    %v1455 = vld [vmem:[#allocation4 + $0x7c8] sm:$0xff]
    %v1456 = vld [vmem:[#allocation4 + $0x7d0] sm:$0xff]
    %v1457 = vld [vmem:[#allocation4 + $0x7d8] sm:$0xff]
    %v1458 = vld [vmem:[#allocation4 + $0x7e0] sm:$0xff]
    %v1459 = vld [vmem:[#allocation4 + $0x7e8] sm:$0xff]
    %v1460 = vld [vmem:[#allocation4 + $0x7f0] sm:$0xff]
    %v1461 = vld [vmem:[#allocation4 + $0x7f8] sm:$0xff]
    %v1462 = vld [vmem:[#allocation4 + $0x800] sm:$0xff]
    %v1463 = vld [vmem:[#allocation4 + $0x808] sm:$0xff]
    %v1464 = vld [vmem:[#allocation4 + $0x810] sm:$0xff]
    %v1465 = vld [vmem:[#allocation4 + $0x818] sm:$0xff]
    %v1466 = vld [vmem:[#allocation4 + $0x820] sm:$0xff]
    %v1467 = vld [vmem:[#allocation4 + $0x828] sm:$0xff]
    %v1468 = vld [vmem:[#allocation4 + $0x830] sm:$0xff]
    %v1469 = vld [vmem:[#allocation4 + $0x838] sm:$0xff]
    %v1470 = vld [vmem:[#allocation4 + $0x840] sm:$0xff]
    %v1471 = vld [vmem:[#allocation4 + $0x848] sm:$0xff]
    %v1472 = vld [vmem:[#allocation4 + $0x850] sm:$0xff]
    %v1473 = vld [vmem:[#allocation4 + $0x858] sm:$0xff]
    %v1474 = vld [vmem:[#allocation4 + $0x860] sm:$0xff]
    %v1475 = vld [vmem:[#allocation4 + $0x868] sm:$0xff]
    %v1476 = vld [vmem:[#allocation4 + $0x870] sm:$0xff]
    %v1477 = vld [vmem:[#allocation4 + $0x878] sm:$0xff]
    %v1478 = vld [vmem:[#allocation4 + $0x880] sm:$0xff]
    %v1479 = vld [vmem:[#allocation4 + $0x888] sm:$0xff]
    %v1480 = vld [vmem:[#allocation4 + $0x890] sm:$0xff]
    %v1481 = vld [vmem:[#allocation4 + $0x898] sm:$0xff]
    %v1482 = vld [vmem:[#allocation4 + $0x8a0] sm:$0xff]
    %v1483 = vld [vmem:[#allocation4 + $0x8a8] sm:$0xff]
    %v1484 = vld [vmem:[#allocation4 + $0x8b0] sm:$0xff]
    %v1485 = vld [vmem:[#allocation4 + $0x8b8] sm:$0xff]
    %v1486 = vld [vmem:[#allocation4 + $0x8c0] sm:$0xff]
    %v1487 = vld [vmem:[#allocation4 + $0x8c8] sm:$0xff]
    %v1488 = vld [vmem:[#allocation4 + $0x8d0] sm:$0xff]
    %v1489 = vld [vmem:[#allocation4 + $0x8d8] sm:$0xff]
    %v1490 = vld [vmem:[#allocation4 + $0x8e0] sm:$0xff]
    %v1491 = vld [vmem:[#allocation4 + $0x8e8] sm:$0xff]
    %v1492 = vld [vmem:[#allocation4 + $0x8f0] sm:$0xff]
    %v1493 = vld [vmem:[#allocation4 + $0x8f8] sm:$0xff]
    %v1494 = vld [vmem:[#allocation4 + $0x900] sm:$0xff]
    %v1495 = vld [vmem:[#allocation4 + $0x908] sm:$0xff]
    %v1496 = vld [vmem:[#allocation4 + $0x910] sm:$0xff]
    %v1497 = vld [vmem:[#allocation4 + $0x918] sm:$0xff]
    %v1498 = vld [vmem:[#allocation4 + $0x920] sm:$0xff]
    %v1499 = vld [vmem:[#allocation4 + $0x928] sm:$0xff]
    %v1500 = vld [vmem:[#allocation4 + $0x930] sm:$0xff]
    %v1501 = vld [vmem:[#allocation4 + $0x938] sm:$0xff]
    %v1502 = vld [vmem:[#allocation4 + $0x940] sm:$0xff]
    %v1503 = vld [vmem:[#allocation4 + $0x948] sm:$0xff]
    %v1504 = vld [vmem:[#allocation4 + $0x950] sm:$0xff]
    %v1505 = vld [vmem:[#allocation4 + $0x958] sm:$0xff]
    %v1506 = vld [vmem:[#allocation4 + $0x960] sm:$0xff]
    %v1507 = vld [vmem:[#allocation4 + $0x968] sm:$0xff]
    %v1508 = vld [vmem:[#allocation4 + $0x970] sm:$0xff]
    %v1509 = vld [vmem:[#allocation4 + $0x978] sm:$0xff]
    %v1510 = vld [vmem:[#allocation4 + $0x980] sm:$0xff]
    %v1511 = vld [vmem:[#allocation4 + $0x988] sm:$0xff]
    %v1512 = vld [vmem:[#allocation4 + $0x990] sm:$0xff]
    %v1513 = vld [vmem:[#allocation4 + $0x998] sm:$0xff]
    %v1514 = vld [vmem:[#allocation4 + $0x9a0] sm:$0xff]
    %v1515 = vld [vmem:[#allocation4 + $0x9a8] sm:$0xff]
    %v1516 = vld [vmem:[#allocation4 + $0x9b0] sm:$0xff]
    %v1517 = vld [vmem:[#allocation4 + $0x9b8] sm:$0xff]
    %v1518 = vld [vmem:[#allocation4 + $0x9c0] sm:$0xff]
    %v1519 = vld [vmem:[#allocation4 + $0x9c8] sm:$0xff]
    %v1520 = vld [vmem:[#allocation4 + $0x9d0] sm:$0xff]
    %v1521 = vld [vmem:[#allocation4 + $0x9d8] sm:$0xff]
    %v1522 = vld [vmem:[#allocation4 + $0x9e0] sm:$0xff]
    %v1523 = vld [vmem:[#allocation4 + $0x9e8] sm:$0xff]
    %v1524 = vld [vmem:[#allocation4 + $0x9f0] sm:$0xff]
    %v1525 = vld [vmem:[#allocation4 + $0x9f8] sm:$0xff]
    %v1526 = vld [vmem:[#allocation4 + $0xa00] sm:$0xff]
    %v1527 = vld [vmem:[#allocation4 + $0xa08] sm:$0xff]
    %v1528 = vld [vmem:[#allocation4 + $0xa10] sm:$0xff]
    %v1529 = vld [vmem:[#allocation4 + $0xa18] sm:$0xff]
    %v1530 = vld [vmem:[#allocation4 + $0xa20] sm:$0xff]
    %v1531 = vld [vmem:[#allocation4 + $0xa28] sm:$0xff]
    %v1532 = vld [vmem:[#allocation4 + $0xa30] sm:$0xff]
    %v1533 = vld [vmem:[#allocation4 + $0xa38] sm:$0xff]
    %v1534 = vld [vmem:[#allocation4 + $0xa40] sm:$0xff]
    %v1535 = vld [vmem:[#allocation4 + $0xa48] sm:$0xff]
    %v1536 = vld [vmem:[#allocation4 + $0xa50] sm:$0xff]
    %v1537 = vld [vmem:[#allocation4 + $0xa58] sm:$0xff]
    %v1538 = vld [vmem:[#allocation4 + $0xa60] sm:$0xff]
    %v1539 = vld [vmem:[#allocation4 + $0xa68] sm:$0xff]
    %v1540 = vld [vmem:[#allocation4 + $0xa70] sm:$0xff]
    %v1541 = vld [vmem:[#allocation4 + $0xa78] sm:$0xff]
    %v1542 = vld [vmem:[#allocation4 + $0xa80] sm:$0xff]
    %v1543 = vld [vmem:[#allocation4 + $0xa88] sm:$0xff]
    %v1544 = vld [vmem:[#allocation4 + $0xa90] sm:$0xff]
    %v1545 = vld [vmem:[#allocation4 + $0xa98] sm:$0xff]
    %v1546 = vld [vmem:[#allocation4 + $0xaa0] sm:$0xff]
    %v1547 = vld [vmem:[#allocation4 + $0xaa8] sm:$0xff]
    %v1548 = vld [vmem:[#allocation4 + $0xab0] sm:$0xff]
    %v1549 = vld [vmem:[#allocation4 + $0xab8] sm:$0xff]
    %v1550 = vld [vmem:[#allocation4 + $0xac0] sm:$0xff]
    %v1551 = vld [vmem:[#allocation4 + $0xac8] sm:$0xff]
    %v1552 = vld [vmem:[#allocation4 + $0xad0] sm:$0xff]
    %v1553 = vld [vmem:[#allocation4 + $0xad8] sm:$0xff]
    %v1554 = vld [vmem:[#allocation4 + $0xae0] sm:$0xff]
    %v1555 = vld [vmem:[#allocation4 + $0xae8] sm:$0xff]
    %v1556 = vld [vmem:[#allocation4 + $0xaf0] sm:$0xff]
    %v1557 = vld [vmem:[#allocation4 + $0xaf8] sm:$0xff]
    %v1558 = vld [vmem:[#allocation4 + $0xb00] sm:$0xff]
    %v1559 = vld [vmem:[#allocation4 + $0xb08] sm:$0xff]
    %v1560 = vld [vmem:[#allocation4 + $0xb10] sm:$0xff]
    %v1561 = vld [vmem:[#allocation4 + $0xb18] sm:$0xff]
    %v1562 = vld [vmem:[#allocation4 + $0xb20] sm:$0xff]
    %v1563 = vld [vmem:[#allocation4 + $0xb28] sm:$0xff]
    %v1564 = vld [vmem:[#allocation4 + $0xb30] sm:$0xff]
    %v1565 = vld [vmem:[#allocation4 + $0xb38] sm:$0xff]
    %v1566 = vld [vmem:[#allocation4 + $0xb40] sm:$0xff]
    %v1567 = vld [vmem:[#allocation4 + $0xb48] sm:$0xff]
    %v1568 = vld [vmem:[#allocation4 + $0xb50] sm:$0xff]
    %v1569 = vld [vmem:[#allocation4 + $0xb58] sm:$0xff]
    %v1570 = vld [vmem:[#allocation4 + $0xb60] sm:$0xff]
    %v1571 = vld [vmem:[#allocation4 + $0xb68] sm:$0xff]
    %v1572 = vld [vmem:[#allocation4 + $0xb70] sm:$0xff]
    %v1573 = vld [vmem:[#allocation4 + $0xb78] sm:$0xff]
    %v1574 = vld [vmem:[#allocation4 + $0xb80] sm:$0xff]
    %v1575 = vld [vmem:[#allocation4 + $0xb88] sm:$0xff]
    %v1576 = vld [vmem:[#allocation4 + $0xb90] sm:$0xff]
    %v1577 = vld [vmem:[#allocation4 + $0xb98] sm:$0xff]
    %v1578 = vld [vmem:[#allocation4 + $0xba0] sm:$0xff]
    %v1579 = vld [vmem:[#allocation4 + $0xba8] sm:$0xff]
    %v1580 = vld [vmem:[#allocation4 + $0xbb0] sm:$0xff]
    %v1581 = vld [vmem:[#allocation4 + $0xbb8] sm:$0xff]
    %v1582 = vld [vmem:[#allocation4 + $0xbc0] sm:$0xff]
    %v1583 = vld [vmem:[#allocation4 + $0xbc8] sm:$0xff]
    %v1584 = vld [vmem:[#allocation4 + $0xbd0] sm:$0xff]
    %v1585 = vld [vmem:[#allocation4 + $0xbd8] sm:$0xff]
    %v1586 = vld [vmem:[#allocation4 + $0xbe0] sm:$0xff]
    %v1587 = vld [vmem:[#allocation4 + $0xbe8] sm:$0xff]
    %v1588 = vld [vmem:[#allocation4 + $0xbf0] sm:$0xff]
    %v1589 = vld [vmem:[#allocation4 + $0xbf8] sm:$0xff]
    %v1590 = vld [vmem:[#allocation4 + $0xc00] sm:$0xff]
    %v1591 = vld [vmem:[#allocation4 + $0xc08] sm:$0xff]
    %v1592 = vld [vmem:[#allocation4 + $0xc10] sm:$0xff]
    %v1593 = vld [vmem:[#allocation4 + $0xc18] sm:$0xff]
    %v1594 = vld [vmem:[#allocation4 + $0xc20] sm:$0xff]
    %v1595 = vld [vmem:[#allocation4 + $0xc28] sm:$0xff]
    %v1596 = vld [vmem:[#allocation4 + $0xc30] sm:$0xff]
    %v1597 = vld [vmem:[#allocation4 + $0xc38] sm:$0xff]
    %v1598 = vld [vmem:[#allocation4 + $0xc40] sm:$0xff]
    %v1599 = vld [vmem:[#allocation4 + $0xc48] sm:$0xff]
    %v1600 = vld [vmem:[#allocation4 + $0xc50] sm:$0xff]
    %v1601 = vld [vmem:[#allocation4 + $0xc58] sm:$0xff]
    %v1602 = vld [vmem:[#allocation4 + $0xc60] sm:$0xff]
    %v1603 = vld [vmem:[#allocation4 + $0xc68] sm:$0xff]
    %v1604 = vld [vmem:[#allocation4 + $0xc70] sm:$0xff]
    %v1605 = vld [vmem:[#allocation4 + $0xc78] sm:$0xff]
    %v1606 = vld [vmem:[#allocation4 + $0xc80] sm:$0xff]
    %v1607 = vld [vmem:[#allocation4 + $0xc88] sm:$0xff]
    %v1608 = vld [vmem:[#allocation4 + $0xc90] sm:$0xff]
    %v1609 = vld [vmem:[#allocation4 + $0xc98] sm:$0xff]
    %v1610 = vld [vmem:[#allocation4 + $0xca0] sm:$0xff]
    %v1611 = vld [vmem:[#allocation4 + $0xca8] sm:$0xff]
    %v1612 = vld [vmem:[#allocation4 + $0xcb0] sm:$0xff]
    %v1613 = vld [vmem:[#allocation4 + $0xcb8] sm:$0xff]
    %v1614 = vld [vmem:[#allocation4 + $0xcc0] sm:$0xff]
    %v1615 = vld [vmem:[#allocation4 + $0xcc8] sm:$0xff]
    %v1616 = vld [vmem:[#allocation4 + $0xcd0] sm:$0xff]
    %v1617 = vld [vmem:[#allocation4 + $0xcd8] sm:$0xff]
    %v1618 = vld [vmem:[#allocation4 + $0xce0] sm:$0xff]
    %v1619 = vld [vmem:[#allocation4 + $0xce8] sm:$0xff]
    %v1620 = vld [vmem:[#allocation4 + $0xcf0] sm:$0xff]
    %v1621 = vld [vmem:[#allocation4 + $0xcf8] sm:$0xff]
    %v1622 = vld [vmem:[#allocation4 + $0xd00] sm:$0xff]
    %v1623 = vld [vmem:[#allocation4 + $0xd08] sm:$0xff]
    %v1624 = vld [vmem:[#allocation4 + $0xd10] sm:$0xff]
    %v1625 = vld [vmem:[#allocation4 + $0xd18] sm:$0xff]
    %v1626 = vld [vmem:[#allocation4 + $0xd20] sm:$0xff]
    %v1627 = vld [vmem:[#allocation4 + $0xd28] sm:$0xff]
    %v1628 = vld [vmem:[#allocation4 + $0xd30] sm:$0xff]
    %v1629 = vld [vmem:[#allocation4 + $0xd38] sm:$0xff]
    %v1630 = vld [vmem:[#allocation4 + $0xd40] sm:$0xff]
    %v1631 = vld [vmem:[#allocation4 + $0xd48] sm:$0xff]
    %v1632 = vld [vmem:[#allocation4 + $0xd50] sm:$0xff]
    %v1633 = vld [vmem:[#allocation4 + $0xd58] sm:$0xff]
    %v1634 = vld [vmem:[#allocation4 + $0xd60] sm:$0xff]
    %v1635 = vld [vmem:[#allocation4 + $0xd68] sm:$0xff]
    %v1636 = vld [vmem:[#allocation4 + $0xd70] sm:$0xff]
    %v1637 = vld [vmem:[#allocation4 + $0xd78] sm:$0xff]
    %v1638 = vld [vmem:[#allocation4 + $0xd80] sm:$0xff]
    %v1639 = vld [vmem:[#allocation4 + $0xd88] sm:$0xff]
    %v1640 = vld [vmem:[#allocation4 + $0xd90] sm:$0xff]
    %v1641 = vld [vmem:[#allocation4 + $0xd98] sm:$0xff]
    %v1642 = vld [vmem:[#allocation4 + $0xda0] sm:$0xff]
    %v1643 = vld [vmem:[#allocation4 + $0xda8] sm:$0xff]
    %v1644 = vld [vmem:[#allocation4 + $0xdb0] sm:$0xff]
    %v1645 = vld [vmem:[#allocation4 + $0xdb8] sm:$0xff]
    %v1646 = vld [vmem:[#allocation4 + $0xdc0] sm:$0xff]
    %v1647 = vld [vmem:[#allocation4 + $0xdc8] sm:$0xff]
    %v1648 = vld [vmem:[#allocation4 + $0xdd0] sm:$0xff]
    %v1649 = vld [vmem:[#allocation4 + $0xdd8] sm:$0xff]
    %v1650 = vld [vmem:[#allocation4 + $0xde0] sm:$0xff]
    %v1651 = vld [vmem:[#allocation4 + $0xde8] sm:$0xff]
    %v1652 = vld [vmem:[#allocation4 + $0xdf0] sm:$0xff]
    %v1653 = vld [vmem:[#allocation4 + $0xdf8] sm:$0xff]
    %v1654 = vld [vmem:[#allocation4 + $0xe00] sm:$0xff]
    %v1655 = vld [vmem:[#allocation4 + $0xe08] sm:$0xff]
    %v1656 = vld [vmem:[#allocation4 + $0xe10] sm:$0xff]
    %v1657 = vld [vmem:[#allocation4 + $0xe18] sm:$0xff]
    %v1658 = vld [vmem:[#allocation4 + $0xe20] sm:$0xff]
    %v1659 = vld [vmem:[#allocation4 + $0xe28] sm:$0xff]
    %v1660 = vld [vmem:[#allocation4 + $0xe30] sm:$0xff]
    %v1661 = vld [vmem:[#allocation4 + $0xe38] sm:$0xff]
    %v1662 = vld [vmem:[#allocation4 + $0xe40] sm:$0xff]
    %v1663 = vld [vmem:[#allocation4 + $0xe48] sm:$0xff]
    %v1664 = vld [vmem:[#allocation4 + $0xe50] sm:$0xff]
    %v1665 = vld [vmem:[#allocation4 + $0xe58] sm:$0xff]
    %v1666 = vld [vmem:[#allocation4 + $0xe60] sm:$0xff]
    %v1667 = vld [vmem:[#allocation4 + $0xe68] sm:$0xff]
    %v1668 = vld [vmem:[#allocation4 + $0xe70] sm:$0xff]
    %v1669 = vld [vmem:[#allocation4 + $0xe78] sm:$0xff]
    %v1670 = vld [vmem:[#allocation4 + $0xe80] sm:$0xff]
    %v1671 = vld [vmem:[#allocation4 + $0xe88] sm:$0xff]
    %v1672 = vld [vmem:[#allocation4 + $0xe90] sm:$0xff]
    %v1673 = vld [vmem:[#allocation4 + $0xe98] sm:$0xff]
    %v1674 = vld [vmem:[#allocation4 + $0xea0] sm:$0xff]
    %v1675 = vld [vmem:[#allocation4 + $0xea8] sm:$0xff]
    %v1676 = vld [vmem:[#allocation4 + $0xeb0] sm:$0xff]
    %v1677 = vld [vmem:[#allocation4 + $0xeb8] sm:$0xff]
    %v1678 = vld [vmem:[#allocation4 + $0xec0] sm:$0xff]
    %v1679 = vld [vmem:[#allocation4 + $0xec8] sm:$0xff]
    %v1680 = vld [vmem:[#allocation4 + $0xed0] sm:$0xff]
    %v1681 = vld [vmem:[#allocation4 + $0xed8] sm:$0xff]
    %v1682 = vld [vmem:[#allocation4 + $0xee0] sm:$0xff]
    %v1683 = vld [vmem:[#allocation4 + $0xee8] sm:$0xff]
    %v1684 = vld [vmem:[#allocation4 + $0xef0] sm:$0xff]
    %v1685 = vld [vmem:[#allocation4 + $0xef8] sm:$0xff]
    %v1686 = vld [vmem:[%s5] sm:$0xff]
    %v1687 = vld [vmem:[%s5 + $0x8] sm:$0xff]
    %v1688 = vld [vmem:[%s5 + $0x10] sm:$0xff]
    %v1689 = vld [vmem:[%s5 + $0x18] sm:$0xff]
    %v1690 = vld [vmem:[%s5 + $0x20] sm:$0xff]
    %v1691 = vld [vmem:[%s5 + $0x28] sm:$0xff]
    %v1692 = vld [vmem:[%s5 + $0x30] sm:$0xff]
    %v1693 = vld [vmem:[%s5 + $0x38] sm:$0xff]
    %v1694 = vld [vmem:[%s5 + $0x40] sm:$0xff]
    %v1695 = vld [vmem:[%s5 + $0x48] sm:$0xff]
    %v1696 = vld [vmem:[%s5 + $0x50] sm:$0xff]
    %v1697 = vld [vmem:[%s5 + $0x58] sm:$0xff]
    %v1698 = vld [vmem:[%s5 + $0x60] sm:$0xff]
    %v1699 = vld [vmem:[%s5 + $0x68] sm:$0xff]
    %v1700 = vld [vmem:[%s5 + $0x70] sm:$0xff]
    %v1701 = vld [vmem:[%s5 + $0x78] sm:$0xff]
    %v1702 = vld [vmem:[%s5 + $0x80] sm:$0xff]
    %v1703 = vld [vmem:[%s5 + $0x88] sm:$0xff]
    %v1704 = vld [vmem:[%s5 + $0x90] sm:$0xff]
    %v1705 = vld [vmem:[%s5 + $0x98] sm:$0xff]
    %v1706 = vld [vmem:[%s5 + $0xa0] sm:$0xff]
    %v1707 = vld [vmem:[%s5 + $0xa8] sm:$0xff]
    %v1708 = vld [vmem:[%s5 + $0xb0] sm:$0xff]
    %v1709 = vld [vmem:[%s5 + $0xb8] sm:$0xff]
    %v1710 = vld [vmem:[%s5 + $0xc0] sm:$0xff]
    %v1711 = vld [vmem:[%s5 + $0xc8] sm:$0xff]
    %v1712 = vld [vmem:[%s5 + $0xd0] sm:$0xff]
    %v1713 = vld [vmem:[%s5 + $0xd8] sm:$0xff]
    %v1714 = vld [vmem:[%s5 + $0xe0] sm:$0xff]
    %v1715 = vld [vmem:[%s5 + $0xe8] sm:$0xff]
    %v1716 = vld [vmem:[%s5 + $0xf0] sm:$0xff]
    %v1717 = vld [vmem:[%s5 + $0xf8] sm:$0xff]
    %v1718 = vld [vmem:[%s5 + $0x100] sm:$0xff]
    %v1719 = vld [vmem:[%s5 + $0x108] sm:$0xff]
    %v1720 = vld [vmem:[%s5 + $0x110] sm:$0xff]
    %v1721 = vld [vmem:[%s5 + $0x118] sm:$0xff]
    %v1722 = vld [vmem:[%s5 + $0x120] sm:$0xff]
    %v1723 = vld [vmem:[%s5 + $0x128] sm:$0xff]
    %v1724 = vld [vmem:[%s5 + $0x130] sm:$0xff]
    %v1725 = vld [vmem:[%s5 + $0x138] sm:$0xff]
    %v1726 = vld [vmem:[%s5 + $0x140] sm:$0xff]
    %v1727 = vld [vmem:[%s5 + $0x148] sm:$0xff]
    %v1728 = vld [vmem:[%s5 + $0x150] sm:$0xff]
    %v1729 = vld [vmem:[%s5 + $0x158] sm:$0xff]
    %v1730 = vld [vmem:[%s5 + $0x160] sm:$0xff]
    %v1731 = vld [vmem:[%s5 + $0x168] sm:$0xff]
    %v1732 = vld [vmem:[%s5 + $0x170] sm:$0xff]
    %v1733 = vld [vmem:[%s5 + $0x178] sm:$0xff]
    %v1734 = vld [vmem:[%s5 + $0x180] sm:$0xff]
    %v1735 = vld [vmem:[%s5 + $0x188] sm:$0xff]
    %v1736 = vld [vmem:[%s5 + $0x190] sm:$0xff]
    %v1737 = vld [vmem:[%s5 + $0x198] sm:$0xff]
    %v1738 = vld [vmem:[%s5 + $0x1a0] sm:$0xff]
    %v1739 = vld [vmem:[%s5 + $0x1a8] sm:$0xff]
    %v1740 = vld [vmem:[%s5 + $0x1b0] sm:$0xff]
    %v1741 = vld [vmem:[%s5 + $0x1b8] sm:$0xff]
    %v1742 = vld [vmem:[%s5 + $0x1c0] sm:$0xff]
    %v1743 = vld [vmem:[%s5 + $0x1c8] sm:$0xff]
    %v1744 = vld [vmem:[%s5 + $0x1d0] sm:$0xff]
    %v1745 = vld [vmem:[%s5 + $0x1d8] sm:$0xff]
    %v1746 = vld [vmem:[%s5 + $0x1e0] sm:$0xff]
    %v1747 = vld [vmem:[%s5 + $0x1e8] sm:$0xff]
    %v1748 = vld [vmem:[%s5 + $0x1f0] sm:$0xff]
    %v1749 = vld [vmem:[%s5 + $0x1f8] sm:$0xff]
    %v1750 = vld [vmem:[%s5 + $0x200] sm:$0xff]
    %v1751 = vld [vmem:[%s5 + $0x208] sm:$0xff]
    %v1752 = vld [vmem:[%s5 + $0x210] sm:$0xff]
    %v1753 = vld [vmem:[%s5 + $0x218] sm:$0xff]
    %v1754 = vld [vmem:[%s5 + $0x220] sm:$0xff]
    %v1755 = vld [vmem:[%s5 + $0x228] sm:$0xff]
    %v1756 = vld [vmem:[%s5 + $0x230] sm:$0xff]
    %v1757 = vld [vmem:[%s5 + $0x238] sm:$0xff]
    %v1758 = vld [vmem:[%s5 + $0x240] sm:$0xff]
    %v1759 = vld [vmem:[%s5 + $0x248] sm:$0xff]
    %v1760 = vld [vmem:[%s5 + $0x250] sm:$0xff]
    %v1761 = vld [vmem:[%s5 + $0x258] sm:$0xff]
    %v1762 = vld [vmem:[%s5 + $0x260] sm:$0xff]
    %v1763 = vld [vmem:[%s5 + $0x268] sm:$0xff]
    %v1764 = vld [vmem:[%s5 + $0x270] sm:$0xff]
    %v1765 = vld [vmem:[%s5 + $0x278] sm:$0xff]
    %v1766 = vld [vmem:[%s5 + $0x280] sm:$0xff]
    %v1767 = vld [vmem:[%s5 + $0x288] sm:$0xff]
    %v1768 = vld [vmem:[%s5 + $0x290] sm:$0xff]
    %v1769 = vld [vmem:[%s5 + $0x298] sm:$0xff]
    %v1770 = vld [vmem:[%s5 + $0x2a0] sm:$0xff]
    %v1771 = vld [vmem:[%s5 + $0x2a8] sm:$0xff]
    %v1772 = vld [vmem:[%s5 + $0x2b0] sm:$0xff]
    %v1773 = vld [vmem:[%s5 + $0x2b8] sm:$0xff]
    %v1774 = vld [vmem:[%s5 + $0x2c0] sm:$0xff]
    %v1775 = vld [vmem:[%s5 + $0x2c8] sm:$0xff]
    %v1776 = vld [vmem:[%s5 + $0x2d0] sm:$0xff]
    %v1777 = vld [vmem:[%s5 + $0x2d8] sm:$0xff]
    %v1778 = vld [vmem:[%s5 + $0x2e0] sm:$0xff]
    %v1779 = vld [vmem:[%s5 + $0x2e8] sm:$0xff]
    %v1780 = vld [vmem:[%s5 + $0x2f0] sm:$0xff]
    %v1781 = vld [vmem:[%s5 + $0x2f8] sm:$0xff]
    %v1782 = vld [vmem:[%s5 + $0x300] sm:$0xff]
    %v1783 = vld [vmem:[%s5 + $0x308] sm:$0xff]
    %v1784 = vld [vmem:[%s5 + $0x310] sm:$0xff]
    %v1785 = vld [vmem:[%s5 + $0x318] sm:$0xff]
    %v1786 = vld [vmem:[%s5 + $0x320] sm:$0xff]
    %v1787 = vld [vmem:[%s5 + $0x328] sm:$0xff]
    %v1788 = vld [vmem:[%s5 + $0x330] sm:$0xff]
    %v1789 = vld [vmem:[%s5 + $0x338] sm:$0xff]
    %v1790 = vld [vmem:[%s5 + $0x340] sm:$0xff]
    %v1791 = vld [vmem:[%s5 + $0x348] sm:$0xff]
    %v1792 = vld [vmem:[%s5 + $0x350] sm:$0xff]
    %v1793 = vld [vmem:[%s5 + $0x358] sm:$0xff]
    %v1794 = vld [vmem:[%s5 + $0x360] sm:$0xff]
    %v1795 = vld [vmem:[%s5 + $0x368] sm:$0xff]
    %v1796 = vld [vmem:[%s5 + $0x370] sm:$0xff]
    %v1797 = vld [vmem:[%s5 + $0x378] sm:$0xff]
    %v1798 = vld [vmem:[%s5 + $0x380] sm:$0xff]
    %v1799 = vld [vmem:[%s5 + $0x388] sm:$0xff]
    %v1800 = vld [vmem:[%s5 + $0x390] sm:$0xff]
    %v1801 = vld [vmem:[%s5 + $0x398] sm:$0xff]
    %v1802 = vld [vmem:[%s5 + $0x3a0] sm:$0xff]
    %v1803 = vld [vmem:[%s5 + $0x3a8] sm:$0xff]
    %v1804 = vld [vmem:[%s5 + $0x3b0] sm:$0xff]
    %v1805 = vld [vmem:[%s5 + $0x3b8] sm:$0xff]
    %1807 = vset.pattern.permute.xlu0 0
    %1808 = vperm.xlu0 %1807, %v1686
    %v1809 = vpop.permute.xlu0 %1808
    %1812 = vset.pattern.permute.xlu0 0
    %1813 = vperm.xlu0 %1812, %v1687
    %v1814 = vpop.permute.xlu0 %1813
    %1817 = vset.pattern.permute.xlu0 0
    %1818 = vperm.xlu0 %1817, %v1688
    %v1819 = vpop.permute.xlu0 %1818
    %1822 = vset.pattern.permute.xlu0 0
    %1823 = vperm.xlu0 %1822, %v1689
    %v1824 = vpop.permute.xlu0 %1823
    %1827 = vset.pattern.permute.xlu0 0
    %1828 = vperm.xlu0 %1827, %v1690
    %v1829 = vpop.permute.xlu0 %1828
    %1832 = vset.pattern.permute.xlu0 0
    %1833 = vperm.xlu0 %1832, %v1691
    %v1834 = vpop.permute.xlu0 %1833
    %1837 = vset.pattern.permute.xlu0 0
    %1838 = vperm.xlu0 %1837, %v1692
    %v1839 = vpop.permute.xlu0 %1838
    %1842 = vset.pattern.permute.xlu0 0
    %1843 = vperm.xlu0 %1842, %v1693
    %v1844 = vpop.permute.xlu0 %1843
    %1847 = vset.pattern.permute.xlu0 0
    %1848 = vperm.xlu0 %1847, %v1694
    %v1849 = vpop.permute.xlu0 %1848
    %1852 = vset.pattern.permute.xlu0 0
    %1853 = vperm.xlu0 %1852, %v1695
    %v1854 = vpop.permute.xlu0 %1853
    %1857 = vset.pattern.permute.xlu0 0
    %1858 = vperm.xlu0 %1857, %v1696
    %v1859 = vpop.permute.xlu0 %1858
    %1862 = vset.pattern.permute.xlu0 0
    %1863 = vperm.xlu0 %1862, %v1697
    %v1864 = vpop.permute.xlu0 %1863
    %1867 = vset.pattern.permute.xlu0 0
    %1868 = vperm.xlu0 %1867, %v1698
    %v1869 = vpop.permute.xlu0 %1868
    %1872 = vset.pattern.permute.xlu0 0
    %1873 = vperm.xlu0 %1872, %v1699
    %v1874 = vpop.permute.xlu0 %1873
    %1877 = vset.pattern.permute.xlu0 0
    %1878 = vperm.xlu0 %1877, %v1700
    %v1879 = vpop.permute.xlu0 %1878
    %1882 = vset.pattern.permute.xlu0 0
    %1883 = vperm.xlu0 %1882, %v1701
    %v1884 = vpop.permute.xlu0 %1883
    %1887 = vset.pattern.permute.xlu0 0
    %1888 = vperm.xlu0 %1887, %v1702
    %v1889 = vpop.permute.xlu0 %1888
    %1892 = vset.pattern.permute.xlu0 0
    %1893 = vperm.xlu0 %1892, %v1703
    %v1894 = vpop.permute.xlu0 %1893
    %1897 = vset.pattern.permute.xlu0 0
    %1898 = vperm.xlu0 %1897, %v1704
    %v1899 = vpop.permute.xlu0 %1898
    %1902 = vset.pattern.permute.xlu0 0
    %1903 = vperm.xlu0 %1902, %v1705
    %v1904 = vpop.permute.xlu0 %1903
    %1907 = vset.pattern.permute.xlu0 0
    %1908 = vperm.xlu0 %1907, %v1706
    %v1909 = vpop.permute.xlu0 %1908
    %1912 = vset.pattern.permute.xlu0 0
    %1913 = vperm.xlu0 %1912, %v1707
    %v1914 = vpop.permute.xlu0 %1913
    %1917 = vset.pattern.permute.xlu0 0
    %1918 = vperm.xlu0 %1917, %v1708
    %v1919 = vpop.permute.xlu0 %1918
    %1922 = vset.pattern.permute.xlu0 0
    %1923 = vperm.xlu0 %1922, %v1709
    %v1924 = vpop.permute.xlu0 %1923
    %1927 = vset.pattern.permute.xlu0 0
    %1928 = vperm.xlu0 %1927, %v1710
    %v1929 = vpop.permute.xlu0 %1928
    %1932 = vset.pattern.permute.xlu0 0
    %1933 = vperm.xlu0 %1932, %v1711
    %v1934 = vpop.permute.xlu0 %1933
    %1937 = vset.pattern.permute.xlu0 0
    %1938 = vperm.xlu0 %1937, %v1712
    %v1939 = vpop.permute.xlu0 %1938
    %1942 = vset.pattern.permute.xlu0 0
    %1943 = vperm.xlu0 %1942, %v1713
    %v1944 = vpop.permute.xlu0 %1943
    %1947 = vset.pattern.permute.xlu0 0
    %1948 = vperm.xlu0 %1947, %v1714
    %v1949 = vpop.permute.xlu0 %1948
    %1952 = vset.pattern.permute.xlu0 0
    %1953 = vperm.xlu0 %1952, %v1715
    %v1954 = vpop.permute.xlu0 %1953
    %1957 = vset.pattern.permute.xlu0 0
    %1958 = vperm.xlu0 %1957, %v1716
    %v1959 = vpop.permute.xlu0 %1958
    %1962 = vset.pattern.permute.xlu0 0
    %1963 = vperm.xlu0 %1962, %v1717
    %v1964 = vpop.permute.xlu0 %1963
    %1967 = vset.pattern.permute.xlu0 0
    %1968 = vperm.xlu0 %1967, %v1718
    %v1969 = vpop.permute.xlu0 %1968
    %1972 = vset.pattern.permute.xlu0 0
    %1973 = vperm.xlu0 %1972, %v1719
    %v1974 = vpop.permute.xlu0 %1973
    %1977 = vset.pattern.permute.xlu0 0
    %1978 = vperm.xlu0 %1977, %v1720
    %v1979 = vpop.permute.xlu0 %1978
    %1982 = vset.pattern.permute.xlu0 0
    %1983 = vperm.xlu0 %1982, %v1721
    %v1984 = vpop.permute.xlu0 %1983
    %1987 = vset.pattern.permute.xlu0 0
    %1988 = vperm.xlu0 %1987, %v1722
    %v1989 = vpop.permute.xlu0 %1988
    %1992 = vset.pattern.permute.xlu0 0
    %1993 = vperm.xlu0 %1992, %v1723
    %v1994 = vpop.permute.xlu0 %1993
    %1997 = vset.pattern.permute.xlu0 0
    %1998 = vperm.xlu0 %1997, %v1724
    %v1999 = vpop.permute.xlu0 %1998
    %2002 = vset.pattern.permute.xlu0 0
    %2003 = vperm.xlu0 %2002, %v1725
    %v2004 = vpop.permute.xlu0 %2003
    %2007 = vset.pattern.permute.xlu0 0
    %2008 = vperm.xlu0 %2007, %v1726
    %v2009 = vpop.permute.xlu0 %2008
    %2012 = vset.pattern.permute.xlu0 0
    %2013 = vperm.xlu0 %2012, %v1727
    %v2014 = vpop.permute.xlu0 %2013
    %2017 = vset.pattern.permute.xlu0 0
    %2018 = vperm.xlu0 %2017, %v1728
    %v2019 = vpop.permute.xlu0 %2018
    %2022 = vset.pattern.permute.xlu0 0
    %2023 = vperm.xlu0 %2022, %v1729
    %v2024 = vpop.permute.xlu0 %2023
    %2027 = vset.pattern.permute.xlu0 0
    %2028 = vperm.xlu0 %2027, %v1730
    %v2029 = vpop.permute.xlu0 %2028
    %2032 = vset.pattern.permute.xlu0 0
    %2033 = vperm.xlu0 %2032, %v1731
    %v2034 = vpop.permute.xlu0 %2033
    %2037 = vset.pattern.permute.xlu0 0
    %2038 = vperm.xlu0 %2037, %v1732
    %v2039 = vpop.permute.xlu0 %2038
    %2042 = vset.pattern.permute.xlu0 0
    %2043 = vperm.xlu0 %2042, %v1733
    %v2044 = vpop.permute.xlu0 %2043
    %2047 = vset.pattern.permute.xlu0 0
    %2048 = vperm.xlu0 %2047, %v1734
    %v2049 = vpop.permute.xlu0 %2048
    %2052 = vset.pattern.permute.xlu0 0
    %2053 = vperm.xlu0 %2052, %v1735
    %v2054 = vpop.permute.xlu0 %2053
    %2057 = vset.pattern.permute.xlu0 0
    %2058 = vperm.xlu0 %2057, %v1736
    %v2059 = vpop.permute.xlu0 %2058
    %2062 = vset.pattern.permute.xlu0 0
    %2063 = vperm.xlu0 %2062, %v1737
    %v2064 = vpop.permute.xlu0 %2063
    %2067 = vset.pattern.permute.xlu0 0
    %2068 = vperm.xlu0 %2067, %v1738
    %v2069 = vpop.permute.xlu0 %2068
    %2072 = vset.pattern.permute.xlu0 0
    %2073 = vperm.xlu0 %2072, %v1739
    %v2074 = vpop.permute.xlu0 %2073
    %2077 = vset.pattern.permute.xlu0 0
    %2078 = vperm.xlu0 %2077, %v1740
    %v2079 = vpop.permute.xlu0 %2078
    %2082 = vset.pattern.permute.xlu0 0
    %2083 = vperm.xlu0 %2082, %v1741
    %v2084 = vpop.permute.xlu0 %2083
    %2087 = vset.pattern.permute.xlu0 0
    %2088 = vperm.xlu0 %2087, %v1742
    %v2089 = vpop.permute.xlu0 %2088
    %2092 = vset.pattern.permute.xlu0 0
    %2093 = vperm.xlu0 %2092, %v1743
    %v2094 = vpop.permute.xlu0 %2093
    %2097 = vset.pattern.permute.xlu0 0
    %2098 = vperm.xlu0 %2097, %v1744
    %v2099 = vpop.permute.xlu0 %2098
    %2102 = vset.pattern.permute.xlu0 0
    %2103 = vperm.xlu0 %2102, %v1745
    %v2104 = vpop.permute.xlu0 %2103
    %2107 = vset.pattern.permute.xlu0 0
    %2108 = vperm.xlu0 %2107, %v1746
    %v2109 = vpop.permute.xlu0 %2108
    %2112 = vset.pattern.permute.xlu0 0
    %2113 = vperm.xlu0 %2112, %v1747
    %v2114 = vpop.permute.xlu0 %2113
    %2117 = vset.pattern.permute.xlu0 0
    %2118 = vperm.xlu0 %2117, %v1748
    %v2119 = vpop.permute.xlu0 %2118
    %2122 = vset.pattern.permute.xlu0 0
    %2123 = vperm.xlu0 %2122, %v1749
    %v2124 = vpop.permute.xlu0 %2123
    %2127 = vset.pattern.permute.xlu0 0
    %2128 = vperm.xlu0 %2127, %v1750
    %v2129 = vpop.permute.xlu0 %2128
    %2132 = vset.pattern.permute.xlu0 0
    %2133 = vperm.xlu0 %2132, %v1751
    %v2134 = vpop.permute.xlu0 %2133
    %2137 = vset.pattern.permute.xlu0 0
    %2138 = vperm.xlu0 %2137, %v1752
    %v2139 = vpop.permute.xlu0 %2138
    %2142 = vset.pattern.permute.xlu0 0
    %2143 = vperm.xlu0 %2142, %v1753
    %v2144 = vpop.permute.xlu0 %2143
    %2147 = vset.pattern.permute.xlu0 0
    %2148 = vperm.xlu0 %2147, %v1754
    %v2149 = vpop.permute.xlu0 %2148
    %2152 = vset.pattern.permute.xlu0 0
    %2153 = vperm.xlu0 %2152, %v1755
    %v2154 = vpop.permute.xlu0 %2153
    %2157 = vset.pattern.permute.xlu0 0
    %2158 = vperm.xlu0 %2157, %v1756
    %v2159 = vpop.permute.xlu0 %2158
    %2162 = vset.pattern.permute.xlu0 0
    %2163 = vperm.xlu0 %2162, %v1757
    %v2164 = vpop.permute.xlu0 %2163
    %2167 = vset.pattern.permute.xlu0 0
    %2168 = vperm.xlu0 %2167, %v1758
    %v2169 = vpop.permute.xlu0 %2168
    %2172 = vset.pattern.permute.xlu0 0
    %2173 = vperm.xlu0 %2172, %v1759
    %v2174 = vpop.permute.xlu0 %2173
    %2177 = vset.pattern.permute.xlu0 0
    %2178 = vperm.xlu0 %2177, %v1760
    %v2179 = vpop.permute.xlu0 %2178
    %2182 = vset.pattern.permute.xlu0 0
    %2183 = vperm.xlu0 %2182, %v1761
    %v2184 = vpop.permute.xlu0 %2183
    %2187 = vset.pattern.permute.xlu0 0
    %2188 = vperm.xlu0 %2187, %v1762
    %v2189 = vpop.permute.xlu0 %2188
    %2192 = vset.pattern.permute.xlu0 0
    %2193 = vperm.xlu0 %2192, %v1763
    %v2194 = vpop.permute.xlu0 %2193
    %2197 = vset.pattern.permute.xlu0 0
    %2198 = vperm.xlu0 %2197, %v1764
    %v2199 = vpop.permute.xlu0 %2198
    %2202 = vset.pattern.permute.xlu0 0
    %2203 = vperm.xlu0 %2202, %v1765
    %v2204 = vpop.permute.xlu0 %2203
    %2207 = vset.pattern.permute.xlu0 0
    %2208 = vperm.xlu0 %2207, %v1766
    %v2209 = vpop.permute.xlu0 %2208
    %2212 = vset.pattern.permute.xlu0 0
    %2213 = vperm.xlu0 %2212, %v1767
    %v2214 = vpop.permute.xlu0 %2213
    %2217 = vset.pattern.permute.xlu0 0
    %2218 = vperm.xlu0 %2217, %v1768
    %v2219 = vpop.permute.xlu0 %2218
    %2222 = vset.pattern.permute.xlu0 0
    %2223 = vperm.xlu0 %2222, %v1769
    %v2224 = vpop.permute.xlu0 %2223
    %2227 = vset.pattern.permute.xlu0 0
    %2228 = vperm.xlu0 %2227, %v1770
    %v2229 = vpop.permute.xlu0 %2228
    %2232 = vset.pattern.permute.xlu0 0
    %2233 = vperm.xlu0 %2232, %v1771
    %v2234 = vpop.permute.xlu0 %2233
    %2237 = vset.pattern.permute.xlu0 0
    %2238 = vperm.xlu0 %2237, %v1772
    %v2239 = vpop.permute.xlu0 %2238
    %2242 = vset.pattern.permute.xlu0 0
    %2243 = vperm.xlu0 %2242, %v1773
    %v2244 = vpop.permute.xlu0 %2243
    %2247 = vset.pattern.permute.xlu0 0
    %2248 = vperm.xlu0 %2247, %v1774
    %v2249 = vpop.permute.xlu0 %2248
    %2252 = vset.pattern.permute.xlu0 0
    %2253 = vperm.xlu0 %2252, %v1775
    %v2254 = vpop.permute.xlu0 %2253
    %2257 = vset.pattern.permute.xlu0 0
    %2258 = vperm.xlu0 %2257, %v1776
    %v2259 = vpop.permute.xlu0 %2258
    %2262 = vset.pattern.permute.xlu0 0
    %2263 = vperm.xlu0 %2262, %v1777
    %v2264 = vpop.permute.xlu0 %2263
    %2267 = vset.pattern.permute.xlu0 0
    %2268 = vperm.xlu0 %2267, %v1778
    %v2269 = vpop.permute.xlu0 %2268
    %2272 = vset.pattern.permute.xlu0 0
    %2273 = vperm.xlu0 %2272, %v1779
    %v2274 = vpop.permute.xlu0 %2273
    %2277 = vset.pattern.permute.xlu0 0
    %2278 = vperm.xlu0 %2277, %v1780
    %v2279 = vpop.permute.xlu0 %2278
    %2282 = vset.pattern.permute.xlu0 0
    %2283 = vperm.xlu0 %2282, %v1781
    %v2284 = vpop.permute.xlu0 %2283
    %2287 = vset.pattern.permute.xlu0 0
    %2288 = vperm.xlu0 %2287, %v1782
    %v2289 = vpop.permute.xlu0 %2288
    %2292 = vset.pattern.permute.xlu0 0
    %2293 = vperm.xlu0 %2292, %v1783
    %v2294 = vpop.permute.xlu0 %2293
    %2297 = vset.pattern.permute.xlu0 0
    %2298 = vperm.xlu0 %2297, %v1784
    %v2299 = vpop.permute.xlu0 %2298
    %2302 = vset.pattern.permute.xlu0 0
    %2303 = vperm.xlu0 %2302, %v1785
    %v2304 = vpop.permute.xlu0 %2303
    %2307 = vset.pattern.permute.xlu0 0
    %2308 = vperm.xlu0 %2307, %v1786
    %v2309 = vpop.permute.xlu0 %2308
    %2312 = vset.pattern.permute.xlu0 0
    %2313 = vperm.xlu0 %2312, %v1787
    %v2314 = vpop.permute.xlu0 %2313
    %2317 = vset.pattern.permute.xlu0 0
    %2318 = vperm.xlu0 %2317, %v1788
    %v2319 = vpop.permute.xlu0 %2318
    %2322 = vset.pattern.permute.xlu0 0
    %2323 = vperm.xlu0 %2322, %v1789
    %v2324 = vpop.permute.xlu0 %2323
    %2327 = vset.pattern.permute.xlu0 0
    %2328 = vperm.xlu0 %2327, %v1790
    %v2329 = vpop.permute.xlu0 %2328
    %2332 = vset.pattern.permute.xlu0 0
    %2333 = vperm.xlu0 %2332, %v1791
    %v2334 = vpop.permute.xlu0 %2333
    %2337 = vset.pattern.permute.xlu0 0
    %2338 = vperm.xlu0 %2337, %v1792
    %v2339 = vpop.permute.xlu0 %2338
    %2342 = vset.pattern.permute.xlu0 0
    %2343 = vperm.xlu0 %2342, %v1793
    %v2344 = vpop.permute.xlu0 %2343
    %2347 = vset.pattern.permute.xlu0 0
    %2348 = vperm.xlu0 %2347, %v1794
    %v2349 = vpop.permute.xlu0 %2348
    %2352 = vset.pattern.permute.xlu0 0
    %2353 = vperm.xlu0 %2352, %v1795
    %v2354 = vpop.permute.xlu0 %2353
    %2357 = vset.pattern.permute.xlu0 0
    %2358 = vperm.xlu0 %2357, %v1796
    %v2359 = vpop.permute.xlu0 %2358
    %2362 = vset.pattern.permute.xlu0 0
    %2363 = vperm.xlu0 %2362, %v1797
    %v2364 = vpop.permute.xlu0 %2363
    %2367 = vset.pattern.permute.xlu0 0
    %2368 = vperm.xlu0 %2367, %v1798
    %v2369 = vpop.permute.xlu0 %2368
    %2372 = vset.pattern.permute.xlu0 0
    %2373 = vperm.xlu0 %2372, %v1799
    %v2374 = vpop.permute.xlu0 %2373
    %2377 = vset.pattern.permute.xlu0 0
    %2378 = vperm.xlu0 %2377, %v1800
    %v2379 = vpop.permute.xlu0 %2378
    %2382 = vset.pattern.permute.xlu0 0
    %2383 = vperm.xlu0 %2382, %v1801
    %v2384 = vpop.permute.xlu0 %2383
    %2387 = vset.pattern.permute.xlu0 0
    %2388 = vperm.xlu0 %2387, %v1802
    %v2389 = vpop.permute.xlu0 %2388
    %2392 = vset.pattern.permute.xlu0 0
    %2393 = vperm.xlu0 %2392, %v1803
    %v2394 = vpop.permute.xlu0 %2393
    %2397 = vset.pattern.permute.xlu0 0
    %2398 = vperm.xlu0 %2397, %v1804
    %v2399 = vpop.permute.xlu0 %2398
    %2402 = vset.pattern.permute.xlu0 0
    %2403 = vperm.xlu0 %2402, %v1805
    %v2404 = vpop.permute.xlu0 %2403
    %vm2406 = vcmask 916480
    %v2408 = vsel %vm2406, %v1209, 0
    %v2411 = vsel %vm2406, %v1213, 0
    %v2414 = vsel %vm2406, %v1217, 0
    %v2417 = vsel %vm2406, %v1221, 0
    %v2420 = vsel %vm2406, %v1225, 0
    %v2423 = vsel %vm2406, %v1229, 0
    %v2426 = vsel %vm2406, %v1233, 0
    %v2429 = vsel %vm2406, %v1237, 0
    %v2432 = vsel %vm2406, %v1241, 0
    %v2435 = vsel %vm2406, %v1245, 0
    %v2438 = vsel %vm2406, %v1249, 0
    %v2441 = vsel %vm2406, %v1253, 0
    %v2444 = vsel %vm2406, %v1257, 0
    %v2447 = vsel %vm2406, %v1261, 0
    %v2450 = vsel %vm2406, %v1265, 0
    %v2453 = vsel %vm2406, %v1269, 0
    %v2456 = vsel %vm2406, %v1273, 0
    %v2459 = vsel %vm2406, %v1277, 0
    %v2462 = vsel %vm2406, %v1281, 0
    %v2465 = vsel %vm2406, %v1285, 0
    %v2468 = vsel %vm2406, %v1289, 0
    %v2471 = vsel %vm2406, %v1293, 0
    %v2474 = vsel %vm2406, %v1297, 0
    %v2477 = vsel %vm2406, %v1301, 0
    %v2480 = vsel %vm2406, %v1305, 0
    %v2483 = vsel %vm2406, %v1309, 0
    %v2486 = vsel %vm2406, %v1313, 0
    %v2489 = vsel %vm2406, %v1317, 0
    %v2492 = vsel %vm2406, %v1321, 0
    %v2495 = vsel %vm2406, %v1325, 0
    %v2498 = vsel %vm2406, %v1329, 0
    %v2501 = vsel %vm2406, %v1333, 0
    %v2504 = vsel %vm2406, %v1337, 0
    %v2507 = vsel %vm2406, %v1341, 0
    %v2510 = vsel %vm2406, %v1345, 0
    %v2513 = vsel %vm2406, %v1349, 0
    %v2516 = vsel %vm2406, %v1353, 0
    %v2519 = vsel %vm2406, %v1357, 0
    %v2522 = vsel %vm2406, %v1361, 0
    %v2525 = vsel %vm2406, %v1365, 0
    %v2528 = vsel %vm2406, %v1369, 0
    %v2531 = vsel %vm2406, %v1373, 0
    %v2534 = vsel %vm2406, %v1377, 0
    %v2537 = vsel %vm2406, %v1381, 0
    %v2540 = vsel %vm2406, %v1385, 0
    %v2543 = vsel %vm2406, %v1389, 0
    %v2546 = vsel %vm2406, %v1393, 0
    %v2549 = vsel %vm2406, %v1397, 0
    %v2552 = vsel %vm2406, %v1401, 0
    %v2555 = vsel %vm2406, %v1405, 0
    %v2558 = vsel %vm2406, %v1409, 0
    %v2561 = vsel %vm2406, %v1413, 0
    %v2564 = vsel %vm2406, %v1417, 0
    %v2567 = vsel %vm2406, %v1421, 0
    %v2570 = vsel %vm2406, %v1425, 0
    %v2573 = vsel %vm2406, %v1429, 0
    %v2576 = vsel %vm2406, %v1433, 0
    %v2579 = vsel %vm2406, %v1437, 0
    %v2582 = vsel %vm2406, %v1441, 0
    %v2585 = vsel %vm2406, %v1445, 0
    %v2588 = vsel %vm2406, %v1449, 0
    %v2591 = vsel %vm2406, %v1453, 0
    %v2594 = vsel %vm2406, %v1457, 0
    %v2597 = vsel %vm2406, %v1461, 0
    %v2600 = vsel %vm2406, %v1465, 0
    %v2603 = vsel %vm2406, %v1469, 0
    %v2606 = vsel %vm2406, %v1473, 0
    %v2609 = vsel %vm2406, %v1477, 0
    %v2612 = vsel %vm2406, %v1481, 0
    %v2615 = vsel %vm2406, %v1485, 0
    %v2618 = vsel %vm2406, %v1489, 0
    %v2621 = vsel %vm2406, %v1493, 0
    %v2624 = vsel %vm2406, %v1497, 0
    %v2627 = vsel %vm2406, %v1501, 0
    %v2630 = vsel %vm2406, %v1505, 0
    %v2633 = vsel %vm2406, %v1509, 0
    %v2636 = vsel %vm2406, %v1513, 0
    %v2639 = vsel %vm2406, %v1517, 0
    %v2642 = vsel %vm2406, %v1521, 0
    %v2645 = vsel %vm2406, %v1525, 0
    %v2648 = vsel %vm2406, %v1529, 0
    %v2651 = vsel %vm2406, %v1533, 0
    %v2654 = vsel %vm2406, %v1537, 0
    %v2657 = vsel %vm2406, %v1541, 0
    %v2660 = vsel %vm2406, %v1545, 0
    %v2663 = vsel %vm2406, %v1549, 0
    %v2666 = vsel %vm2406, %v1553, 0
    %v2669 = vsel %vm2406, %v1557, 0
    %v2672 = vsel %vm2406, %v1561, 0
    %v2675 = vsel %vm2406, %v1565, 0
    %v2678 = vsel %vm2406, %v1569, 0
    %v2681 = vsel %vm2406, %v1573, 0
    %v2684 = vsel %vm2406, %v1577, 0
    %v2687 = vsel %vm2406, %v1581, 0
    %v2690 = vsel %vm2406, %v1585, 0
    %v2693 = vsel %vm2406, %v1589, 0
    %v2696 = vsel %vm2406, %v1593, 0
    %v2699 = vsel %vm2406, %v1597, 0
    %v2702 = vsel %vm2406, %v1601, 0
    %v2705 = vsel %vm2406, %v1605, 0
    %v2708 = vsel %vm2406, %v1609, 0
    %v2711 = vsel %vm2406, %v1613, 0
    %v2714 = vsel %vm2406, %v1617, 0
    %v2717 = vsel %vm2406, %v1621, 0
    %v2720 = vsel %vm2406, %v1625, 0
    %v2723 = vsel %vm2406, %v1629, 0
    %v2726 = vsel %vm2406, %v1633, 0
    %v2729 = vsel %vm2406, %v1637, 0
    %v2732 = vsel %vm2406, %v1641, 0
    %v2735 = vsel %vm2406, %v1645, 0
    %v2738 = vsel %vm2406, %v1649, 0
    %v2741 = vsel %vm2406, %v1653, 0
    %v2744 = vsel %vm2406, %v1657, 0
    %v2747 = vsel %vm2406, %v1661, 0
    %v2750 = vsel %vm2406, %v1665, 0
    %v2753 = vsel %vm2406, %v1669, 0
    %v2756 = vsel %vm2406, %v1673, 0
    %v2759 = vsel %vm2406, %v1677, 0
    %v2762 = vsel %vm2406, %v1681, 0
    %v2765 = vsel %vm2406, %v1685, 0
    %2767 = vmatprep.subr.mxu0 0.0
    %2768 = vmatpush1.msra.mxu0 %v1159
    %2769 = vmatprep.subr.mxu0 0.0
    %2770 = vmatpush1.msra.mxu0 %v1158
    %2771 = vmatprep.subr.mxu0 0.0
    %2772 = vmatpush1.msra.mxu0 %v1157
    %2773 = vmatprep.subr.mxu0 0.0
    %2774 = vmatpush1.msra.mxu0 %v1156
    %2775 = vmatprep.subr.mxu0 0.0
    %2776 = vmatpush1.msra.mxu0 %v1155
    %2777 = vmatprep.subr.mxu0 0.0
    %2778 = vmatpush1.msra.mxu0 %v1154
    %2779 = vmatprep.subr.mxu0 0.0
    %2780 = vmatpush1.msra.mxu0 %v1153
    %2781 = vmatprep.subr.mxu0 0.0
    %2782 = vmatpush1.msra.mxu0 %v1152
    %2783 = vmatprep.subr.mxu0 0.0
    %2784 = vmatpush1.msra.mxu0 %v1151
    %2785 = vmatprep.subr.mxu0 0.0
    %2786 = vmatpush1.msra.mxu0 %v1150
    %2787 = vmatprep.subr.mxu0 0.0
    %2788 = vmatpush1.msra.mxu0 %v1149
    %2789 = vmatprep.subr.mxu0 0.0
    %2790 = vmatpush1.msra.mxu0 %v1148
    %2791 = vmatprep.subr.mxu0 0.0
    %2792 = vmatpush1.msra.mxu0 %v1147
    %2793 = vmatprep.subr.mxu0 0.0
    %2794 = vmatpush1.msra.mxu0 %v1146
    %2795 = vmatprep.subr.mxu0 0.0
    %2796 = vmatpush1.msra.mxu0 %v1145
    %2797 = vmatprep.subr.mxu0 0.0
    %2798 = vmatpush1.msra.mxu0 %v1144
    %2799 = vmatprep.subr.mxu0 0.0
    %2800 = vmatpush2.msra.mxu0 %v1175
    %2801 = vmatprep.subr.mxu0 0.0
    %2802 = vmatpush2.msra.mxu0 %v1174
    %2803 = vmatprep.subr.mxu0 0.0
    %2804 = vmatpush2.msra.mxu0 %v1173
    %2805 = vmatprep.subr.mxu0 0.0
    %2806 = vmatpush2.msra.mxu0 %v1172
    %2807 = vmatprep.subr.mxu0 0.0
    %2808 = vmatpush2.msra.mxu0 %v1171
    %2809 = vmatprep.subr.mxu0 0.0
    %2810 = vmatpush2.msra.mxu0 %v1170
    %2811 = vmatprep.subr.mxu0 0.0
    %2812 = vmatpush2.msra.mxu0 %v1169
    %2813 = vmatprep.subr.mxu0 0.0
    %2814 = vmatpush2.msra.mxu0 %v1168
    %2815 = vmatprep.subr.mxu0 0.0
    %2816 = vmatpush2.msra.mxu0 %v1167
    %2817 = vmatprep.subr.mxu0 0.0
    %2818 = vmatpush2.msra.mxu0 %v1166
    %2819 = vmatprep.subr.mxu0 0.0
    %2820 = vmatpush2.msra.mxu0 %v1165
    %2821 = vmatprep.subr.mxu0 0.0
    %2822 = vmatpush2.msra.mxu0 %v1164
    %2823 = vmatprep.subr.mxu0 0.0
    %2824 = vmatpush2.msra.mxu0 %v1163
    %2825 = vmatprep.subr.mxu0 0.0
    %2826 = vmatpush2.msra.mxu0 %v1162
    %2827 = vmatprep.subr.mxu0 0.0
    %2828 = vmatpush2.msra.mxu0 %v1161
    %2829 = vmatprep.subr.mxu0 0.0
    %2830 = vmatpush2.msra.mxu0 %v1160
    %2831 = vmatprep.mubr.f32.mxu0 %v1207
    %2832 = vmatmul.mubr.f32.gmra.mxu0 %v1206
    %v2833 = vpop.f32.mrf.mxu0
    %v2834 = vadd.f32 %v1809, %v2833
    %v2835 = vpop.f32.mrf.mxu0
    %2836 = vmatprep.mubr.f32.mxu0 %v1211
    %2837 = vmatmul.mubr.f32.gmra.mxu0 %v1210
    %v2838 = vpop.f32.mrf.mxu0
    %v2839 = vadd.f32 %v1814, %v2838
    %v2840 = vpop.f32.mrf.mxu0
    %2841 = vmatprep.mubr.f32.mxu0 %v1215
    %2842 = vmatmul.mubr.f32.gmra.mxu0 %v1214
    %v2843 = vpop.f32.mrf.mxu0
    %v2844 = vadd.f32 %v1819, %v2843
    %v2845 = vpop.f32.mrf.mxu0
    %2846 = vmatprep.mubr.f32.mxu0 %v1219
    %2847 = vmatmul.mubr.f32.gmra.mxu0 %v1218
    %v2848 = vpop.f32.mrf.mxu0
    %v2849 = vadd.f32 %v1824, %v2848
    %v2850 = vpop.f32.mrf.mxu0
    %2851 = vmatprep.mubr.f32.mxu0 %v1223
    %2852 = vmatmul.mubr.f32.gmra.mxu0 %v1222
    %v2853 = vpop.f32.mrf.mxu0
    %v2854 = vadd.f32 %v1829, %v2853
    %v2855 = vpop.f32.mrf.mxu0
    %2856 = vmatprep.mubr.f32.mxu0 %v1227
    %2857 = vmatmul.mubr.f32.gmra.mxu0 %v1226
    %v2858 = vpop.f32.mrf.mxu0
    %v2859 = vadd.f32 %v1834, %v2858
    %v2860 = vpop.f32.mrf.mxu0
    %2861 = vmatprep.mubr.f32.mxu0 %v1231
    %2862 = vmatmul.mubr.f32.gmra.mxu0 %v1230
    %v2863 = vpop.f32.mrf.mxu0
    %v2864 = vadd.f32 %v1839, %v2863
    %v2865 = vpop.f32.mrf.mxu0
    %2866 = vmatprep.mubr.f32.mxu0 %v1235
    %2867 = vmatmul.mubr.f32.gmra.mxu0 %v1234
    %v2868 = vpop.f32.mrf.mxu0
    %v2869 = vadd.f32 %v1844, %v2868
    %v2870 = vpop.f32.mrf.mxu0
    %2871 = vmatprep.mubr.f32.mxu0 %v1239
    %2872 = vmatmul.mubr.f32.gmra.mxu0 %v1238
    %v2873 = vpop.f32.mrf.mxu0
    %v2874 = vadd.f32 %v1849, %v2873
    %v2875 = vpop.f32.mrf.mxu0
    %2876 = vmatprep.mubr.f32.mxu0 %v1243
    %2877 = vmatmul.mubr.f32.gmra.mxu0 %v1242
    %v2878 = vpop.f32.mrf.mxu0
    %v2879 = vadd.f32 %v1854, %v2878
    %v2880 = vpop.f32.mrf.mxu0
    %2881 = vmatprep.mubr.f32.mxu0 %v1247
    %2882 = vmatmul.mubr.f32.gmra.mxu0 %v1246
    %v2883 = vpop.f32.mrf.mxu0
    %v2884 = vadd.f32 %v1859, %v2883
    %v2885 = vpop.f32.mrf.mxu0
    %2886 = vmatprep.mubr.f32.mxu0 %v1251
    %2887 = vmatmul.mubr.f32.gmra.mxu0 %v1250
    %v2888 = vpop.f32.mrf.mxu0
    %v2889 = vadd.f32 %v1864, %v2888
    %v2890 = vpop.f32.mrf.mxu0
    %2891 = vmatprep.mubr.f32.mxu0 %v1255
    %2892 = vmatmul.mubr.f32.gmra.mxu0 %v1254
    %v2893 = vpop.f32.mrf.mxu0
    %v2894 = vadd.f32 %v1869, %v2893
    %v2895 = vpop.f32.mrf.mxu0
    %2896 = vmatprep.mubr.f32.mxu0 %v1259
    %2897 = vmatmul.mubr.f32.gmra.mxu0 %v1258
    %v2898 = vpop.f32.mrf.mxu0
    %v2899 = vadd.f32 %v1874, %v2898
    %v2900 = vpop.f32.mrf.mxu0
    %2901 = vmatprep.mubr.f32.mxu0 %v1263
    %2902 = vmatmul.mubr.f32.gmra.mxu0 %v1262
    %v2903 = vpop.f32.mrf.mxu0
    %v2904 = vadd.f32 %v1879, %v2903
    %v2905 = vpop.f32.mrf.mxu0
    %2906 = vmatprep.mubr.f32.mxu0 %v1267
    %2907 = vmatmul.mubr.f32.gmra.mxu0 %v1266
    %v2908 = vpop.f32.mrf.mxu0
    %v2909 = vadd.f32 %v1884, %v2908
    %v2910 = vpop.f32.mrf.mxu0
    %2911 = vmatprep.mubr.f32.mxu0 %v1271
    %2912 = vmatmul.mubr.f32.gmra.mxu0 %v1270
    %v2913 = vpop.f32.mrf.mxu0
    %v2914 = vadd.f32 %v1889, %v2913
    %v2915 = vpop.f32.mrf.mxu0
    %2916 = vmatprep.mubr.f32.mxu0 %v1275
    %2917 = vmatmul.mubr.f32.gmra.mxu0 %v1274
    %v2918 = vpop.f32.mrf.mxu0
    %v2919 = vadd.f32 %v1894, %v2918
    %v2920 = vpop.f32.mrf.mxu0
    %2921 = vmatprep.mubr.f32.mxu0 %v1279
    %2922 = vmatmul.mubr.f32.gmra.mxu0 %v1278
    %v2923 = vpop.f32.mrf.mxu0
    %v2924 = vadd.f32 %v1899, %v2923
    %v2925 = vpop.f32.mrf.mxu0
    %2926 = vmatprep.mubr.f32.mxu0 %v1283
    %2927 = vmatmul.mubr.f32.gmra.mxu0 %v1282
    %v2928 = vpop.f32.mrf.mxu0
    %v2929 = vadd.f32 %v1904, %v2928
    %v2930 = vpop.f32.mrf.mxu0
    %2931 = vmatprep.mubr.f32.mxu0 %v1287
    %2932 = vmatmul.mubr.f32.gmra.mxu0 %v1286
    %v2933 = vpop.f32.mrf.mxu0
    %v2934 = vadd.f32 %v1909, %v2933
    %v2935 = vpop.f32.mrf.mxu0
    %2936 = vmatprep.mubr.f32.mxu0 %v1291
    %2937 = vmatmul.mubr.f32.gmra.mxu0 %v1290
    %v2938 = vpop.f32.mrf.mxu0
    %v2939 = vadd.f32 %v1914, %v2938
    %v2940 = vpop.f32.mrf.mxu0
    %2941 = vmatprep.mubr.f32.mxu0 %v1295
    %2942 = vmatmul.mubr.f32.gmra.mxu0 %v1294
    %v2943 = vpop.f32.mrf.mxu0
    %v2944 = vadd.f32 %v1919, %v2943
    %v2945 = vpop.f32.mrf.mxu0
    %2946 = vmatprep.mubr.f32.mxu0 %v1299
    %2947 = vmatmul.mubr.f32.gmra.mxu0 %v1298
    %v2948 = vpop.f32.mrf.mxu0
    %v2949 = vadd.f32 %v1924, %v2948
    %v2950 = vpop.f32.mrf.mxu0
    %2951 = vmatprep.mubr.f32.mxu0 %v1303
    %2952 = vmatmul.mubr.f32.gmra.mxu0 %v1302
    %v2953 = vpop.f32.mrf.mxu0
    %v2954 = vadd.f32 %v1929, %v2953
    %v2955 = vpop.f32.mrf.mxu0
    %2956 = vmatprep.mubr.f32.mxu0 %v1307
    %2957 = vmatmul.mubr.f32.gmra.mxu0 %v1306
    %v2958 = vpop.f32.mrf.mxu0
    %v2959 = vadd.f32 %v1934, %v2958
    %v2960 = vpop.f32.mrf.mxu0
    %2961 = vmatprep.mubr.f32.mxu0 %v1311
    %2962 = vmatmul.mubr.f32.gmra.mxu0 %v1310
    %v2963 = vpop.f32.mrf.mxu0
    %v2964 = vadd.f32 %v1939, %v2963
    %v2965 = vpop.f32.mrf.mxu0
    %2966 = vmatprep.mubr.f32.mxu0 %v1315
    %2967 = vmatmul.mubr.f32.gmra.mxu0 %v1314
    %v2968 = vpop.f32.mrf.mxu0
    %v2969 = vadd.f32 %v1944, %v2968
    %v2970 = vpop.f32.mrf.mxu0
    %2971 = vmatprep.mubr.f32.mxu0 %v1319
    %2972 = vmatmul.mubr.f32.gmra.mxu0 %v1318
    %v2973 = vpop.f32.mrf.mxu0
    %v2974 = vadd.f32 %v1949, %v2973
    %v2975 = vpop.f32.mrf.mxu0
    %2976 = vmatprep.mubr.f32.mxu0 %v1323
    %2977 = vmatmul.mubr.f32.gmra.mxu0 %v1322
    %v2978 = vpop.f32.mrf.mxu0
    %v2979 = vadd.f32 %v1954, %v2978
    %v2980 = vpop.f32.mrf.mxu0
    %2981 = vmatprep.mubr.f32.mxu0 %v1327
    %2982 = vmatmul.mubr.f32.gmra.mxu0 %v1326
    %v2983 = vpop.f32.mrf.mxu0
    %v2984 = vadd.f32 %v1959, %v2983
    %v2985 = vpop.f32.mrf.mxu0
    %2986 = vmatprep.mubr.f32.mxu0 %v1331
    %2987 = vmatmul.mubr.f32.gmra.mxu0 %v1330
    %v2988 = vpop.f32.mrf.mxu0
    %v2989 = vadd.f32 %v1964, %v2988
    %v2990 = vpop.f32.mrf.mxu0
    %2991 = vmatprep.mubr.f32.mxu0 %v1335
    %2992 = vmatmul.mubr.f32.gmra.mxu0 %v1334
    %v2993 = vpop.f32.mrf.mxu0
    %v2994 = vadd.f32 %v1969, %v2993
    %v2995 = vpop.f32.mrf.mxu0
    %2996 = vmatprep.mubr.f32.mxu0 %v1339
    %2997 = vmatmul.mubr.f32.gmra.mxu0 %v1338
    %v2998 = vpop.f32.mrf.mxu0
    %v2999 = vadd.f32 %v1974, %v2998
    %v3000 = vpop.f32.mrf.mxu0
    %3001 = vmatprep.mubr.f32.mxu0 %v1343
    %3002 = vmatmul.mubr.f32.gmra.mxu0 %v1342
    %v3003 = vpop.f32.mrf.mxu0
    %v3004 = vadd.f32 %v1979, %v3003
    %v3005 = vpop.f32.mrf.mxu0
    %3006 = vmatprep.mubr.f32.mxu0 %v1347
    %3007 = vmatmul.mubr.f32.gmra.mxu0 %v1346
    %v3008 = vpop.f32.mrf.mxu0
    %v3009 = vadd.f32 %v1984, %v3008
    %v3010 = vpop.f32.mrf.mxu0
    %3011 = vmatprep.mubr.f32.mxu0 %v1351
    %3012 = vmatmul.mubr.f32.gmra.mxu0 %v1350
    %v3013 = vpop.f32.mrf.mxu0
    %v3014 = vadd.f32 %v1989, %v3013
    %v3015 = vpop.f32.mrf.mxu0
    %3016 = vmatprep.mubr.f32.mxu0 %v1355
    %3017 = vmatmul.mubr.f32.gmra.mxu0 %v1354
    %v3018 = vpop.f32.mrf.mxu0
    %v3019 = vadd.f32 %v1994, %v3018
    %v3020 = vpop.f32.mrf.mxu0
    %3021 = vmatprep.mubr.f32.mxu0 %v1359
    %3022 = vmatmul.mubr.f32.gmra.mxu0 %v1358
    %v3023 = vpop.f32.mrf.mxu0
    %v3024 = vadd.f32 %v1999, %v3023
    %v3025 = vpop.f32.mrf.mxu0
    %3026 = vmatprep.mubr.f32.mxu0 %v1363
    %3027 = vmatmul.mubr.f32.gmra.mxu0 %v1362
    %v3028 = vpop.f32.mrf.mxu0
    %v3029 = vadd.f32 %v2004, %v3028
    %v3030 = vpop.f32.mrf.mxu0
    %3031 = vmatprep.mubr.f32.mxu0 %v1367
    %3032 = vmatmul.mubr.f32.gmra.mxu0 %v1366
    %v3033 = vpop.f32.mrf.mxu0
    %v3034 = vadd.f32 %v2009, %v3033
    %v3035 = vpop.f32.mrf.mxu0
    %3036 = vmatprep.mubr.f32.mxu0 %v1371
    %3037 = vmatmul.mubr.f32.gmra.mxu0 %v1370
    %v3038 = vpop.f32.mrf.mxu0
    %v3039 = vadd.f32 %v2014, %v3038
    %v3040 = vpop.f32.mrf.mxu0
    %3041 = vmatprep.mubr.f32.mxu0 %v1375
    %3042 = vmatmul.mubr.f32.gmra.mxu0 %v1374
    %v3043 = vpop.f32.mrf.mxu0
    %v3044 = vadd.f32 %v2019, %v3043
    %v3045 = vpop.f32.mrf.mxu0
    %3046 = vmatprep.mubr.f32.mxu0 %v1379
    %3047 = vmatmul.mubr.f32.gmra.mxu0 %v1378
    %v3048 = vpop.f32.mrf.mxu0
    %v3049 = vadd.f32 %v2024, %v3048
    %v3050 = vpop.f32.mrf.mxu0
    %3051 = vmatprep.mubr.f32.mxu0 %v1383
    %3052 = vmatmul.mubr.f32.gmra.mxu0 %v1382
    %v3053 = vpop.f32.mrf.mxu0
    %v3054 = vadd.f32 %v2029, %v3053
    %v3055 = vpop.f32.mrf.mxu0
    %3056 = vmatprep.mubr.f32.mxu0 %v1387
    %3057 = vmatmul.mubr.f32.gmra.mxu0 %v1386
    %v3058 = vpop.f32.mrf.mxu0
    %v3059 = vadd.f32 %v2034, %v3058
    %v3060 = vpop.f32.mrf.mxu0
    %3061 = vmatprep.mubr.f32.mxu0 %v1391
    %3062 = vmatmul.mubr.f32.gmra.mxu0 %v1390
    %v3063 = vpop.f32.mrf.mxu0
    %v3064 = vadd.f32 %v2039, %v3063
    %v3065 = vpop.f32.mrf.mxu0
    %3066 = vmatprep.mubr.f32.mxu0 %v1395
    %3067 = vmatmul.mubr.f32.gmra.mxu0 %v1394
    %v3068 = vpop.f32.mrf.mxu0
    %v3069 = vadd.f32 %v2044, %v3068
    %v3070 = vpop.f32.mrf.mxu0
    %3071 = vmatprep.mubr.f32.mxu0 %v1399
    %3072 = vmatmul.mubr.f32.gmra.mxu0 %v1398
    %v3073 = vpop.f32.mrf.mxu0
    %v3074 = vadd.f32 %v2049, %v3073
    %v3075 = vpop.f32.mrf.mxu0
    %3076 = vmatprep.mubr.f32.mxu0 %v1403
    %3077 = vmatmul.mubr.f32.gmra.mxu0 %v1402
    %v3078 = vpop.f32.mrf.mxu0
    %v3079 = vadd.f32 %v2054, %v3078
    %v3080 = vpop.f32.mrf.mxu0
    %3081 = vmatprep.mubr.f32.mxu0 %v1407
    %3082 = vmatmul.mubr.f32.gmra.mxu0 %v1406
    %v3083 = vpop.f32.mrf.mxu0
    %v3084 = vadd.f32 %v2059, %v3083
    %v3085 = vpop.f32.mrf.mxu0
    %3086 = vmatprep.mubr.f32.mxu0 %v1411
    %3087 = vmatmul.mubr.f32.gmra.mxu0 %v1410
    %v3088 = vpop.f32.mrf.mxu0
    %v3089 = vadd.f32 %v2064, %v3088
    %v3090 = vpop.f32.mrf.mxu0
    %3091 = vmatprep.mubr.f32.mxu0 %v1415
    %3092 = vmatmul.mubr.f32.gmra.mxu0 %v1414
    %v3093 = vpop.f32.mrf.mxu0
    %v3094 = vadd.f32 %v2069, %v3093
    %v3095 = vpop.f32.mrf.mxu0
    %3096 = vmatprep.mubr.f32.mxu0 %v1419
    %3097 = vmatmul.mubr.f32.gmra.mxu0 %v1418
    %v3098 = vpop.f32.mrf.mxu0
    %v3099 = vadd.f32 %v2074, %v3098
    %v3100 = vpop.f32.mrf.mxu0
    %3101 = vmatprep.mubr.f32.mxu0 %v1423
    %3102 = vmatmul.mubr.f32.gmra.mxu0 %v1422
    %v3103 = vpop.f32.mrf.mxu0
    %v3104 = vadd.f32 %v2079, %v3103
    %v3105 = vpop.f32.mrf.mxu0
    %3106 = vmatprep.mubr.f32.mxu0 %v1427
    %3107 = vmatmul.mubr.f32.gmra.mxu0 %v1426
    %v3108 = vpop.f32.mrf.mxu0
    %v3109 = vadd.f32 %v2084, %v3108
    %v3110 = vpop.f32.mrf.mxu0
    %3111 = vmatprep.mubr.f32.mxu0 %v1431
    %3112 = vmatmul.mubr.f32.gmra.mxu0 %v1430
    %v3113 = vpop.f32.mrf.mxu0
    %v3114 = vadd.f32 %v2089, %v3113
    %v3115 = vpop.f32.mrf.mxu0
    %3116 = vmatprep.mubr.f32.mxu0 %v1435
    %3117 = vmatmul.mubr.f32.gmra.mxu0 %v1434
    %v3118 = vpop.f32.mrf.mxu0
    %v3119 = vadd.f32 %v2094, %v3118
    %v3120 = vpop.f32.mrf.mxu0
    %3121 = vmatprep.mubr.f32.mxu0 %v1439
    %3122 = vmatmul.mubr.f32.gmra.mxu0 %v1438
    %v3123 = vpop.f32.mrf.mxu0
    %v3124 = vadd.f32 %v2099, %v3123
    %v3125 = vpop.f32.mrf.mxu0
    %3126 = vmatprep.mubr.f32.mxu0 %v1443
    %3127 = vmatmul.mubr.f32.gmra.mxu0 %v1442
    %v3128 = vpop.f32.mrf.mxu0
    %v3129 = vadd.f32 %v2104, %v3128
    %v3130 = vpop.f32.mrf.mxu0
    %3131 = vmatprep.mubr.f32.mxu0 %v1447
    %3132 = vmatmul.mubr.f32.gmra.mxu0 %v1446
    %v3133 = vpop.f32.mrf.mxu0
    %v3134 = vadd.f32 %v2109, %v3133
    %v3135 = vpop.f32.mrf.mxu0
    %3136 = vmatprep.mubr.f32.mxu0 %v1451
    %3137 = vmatmul.mubr.f32.gmra.mxu0 %v1450
    %v3138 = vpop.f32.mrf.mxu0
    %v3139 = vadd.f32 %v2114, %v3138
    %v3140 = vpop.f32.mrf.mxu0
    %3141 = vmatprep.mubr.f32.mxu0 %v1455
    %3142 = vmatmul.mubr.f32.gmra.mxu0 %v1454
    %v3143 = vpop.f32.mrf.mxu0
    %v3144 = vadd.f32 %v2119, %v3143
    %v3145 = vpop.f32.mrf.mxu0
    %3146 = vmatprep.mubr.f32.mxu0 %v1459
    %3147 = vmatmul.mubr.f32.gmra.mxu0 %v1458
    %v3148 = vpop.f32.mrf.mxu0
    %v3149 = vadd.f32 %v2124, %v3148
    %v3150 = vpop.f32.mrf.mxu0
    %3151 = vmatprep.mubr.f32.mxu0 %v1463
    %3152 = vmatmul.mubr.f32.gmra.mxu0 %v1462
    %v3153 = vpop.f32.mrf.mxu0
    %v3154 = vadd.f32 %v2129, %v3153
    %v3155 = vpop.f32.mrf.mxu0
    %3156 = vmatprep.mubr.f32.mxu0 %v1467
    %3157 = vmatmul.mubr.f32.gmra.mxu0 %v1466
    %v3158 = vpop.f32.mrf.mxu0
    %v3159 = vadd.f32 %v2134, %v3158
    %v3160 = vpop.f32.mrf.mxu0
    %3161 = vmatprep.mubr.f32.mxu0 %v1471
    %3162 = vmatmul.mubr.f32.gmra.mxu0 %v1470
    %v3163 = vpop.f32.mrf.mxu0
    %v3164 = vadd.f32 %v2139, %v3163
    %v3165 = vpop.f32.mrf.mxu0
    %3166 = vmatprep.mubr.f32.mxu0 %v1475
    %3167 = vmatmul.mubr.f32.gmra.mxu0 %v1474
    %v3168 = vpop.f32.mrf.mxu0
    %v3169 = vadd.f32 %v2144, %v3168
    %v3170 = vpop.f32.mrf.mxu0
    %3171 = vmatprep.mubr.f32.mxu0 %v1479
    %3172 = vmatmul.mubr.f32.gmra.mxu0 %v1478
    %v3173 = vpop.f32.mrf.mxu0
    %v3174 = vadd.f32 %v2149, %v3173
    %v3175 = vpop.f32.mrf.mxu0
    %3176 = vmatprep.mubr.f32.mxu0 %v1483
    %3177 = vmatmul.mubr.f32.gmra.mxu0 %v1482
    %v3178 = vpop.f32.mrf.mxu0
    %v3179 = vadd.f32 %v2154, %v3178
    %v3180 = vpop.f32.mrf.mxu0
    %3181 = vmatprep.mubr.f32.mxu0 %v1487
    %3182 = vmatmul.mubr.f32.gmra.mxu0 %v1486
    %v3183 = vpop.f32.mrf.mxu0
    %v3184 = vadd.f32 %v2159, %v3183
    %v3185 = vpop.f32.mrf.mxu0
    %3186 = vmatprep.mubr.f32.mxu0 %v1491
    %3187 = vmatmul.mubr.f32.gmra.mxu0 %v1490
    %v3188 = vpop.f32.mrf.mxu0
    %v3189 = vadd.f32 %v2164, %v3188
    %v3190 = vpop.f32.mrf.mxu0
    %3191 = vmatprep.mubr.f32.mxu0 %v1495
    %3192 = vmatmul.mubr.f32.gmra.mxu0 %v1494
    %v3193 = vpop.f32.mrf.mxu0
    %v3194 = vadd.f32 %v2169, %v3193
    %v3195 = vpop.f32.mrf.mxu0
    %3196 = vmatprep.mubr.f32.mxu0 %v1499
    %3197 = vmatmul.mubr.f32.gmra.mxu0 %v1498
    %v3198 = vpop.f32.mrf.mxu0
    %v3199 = vadd.f32 %v2174, %v3198
    %v3200 = vpop.f32.mrf.mxu0
    %3201 = vmatprep.mubr.f32.mxu0 %v1503
    %3202 = vmatmul.mubr.f32.gmra.mxu0 %v1502
    %v3203 = vpop.f32.mrf.mxu0
    %v3204 = vadd.f32 %v2179, %v3203
    %v3205 = vpop.f32.mrf.mxu0
    %3206 = vmatprep.mubr.f32.mxu0 %v1507
    %3207 = vmatmul.mubr.f32.gmra.mxu0 %v1506
    %v3208 = vpop.f32.mrf.mxu0
    %v3209 = vadd.f32 %v2184, %v3208
    %v3210 = vpop.f32.mrf.mxu0
    %3211 = vmatprep.mubr.f32.mxu0 %v1511
    %3212 = vmatmul.mubr.f32.gmra.mxu0 %v1510
    %v3213 = vpop.f32.mrf.mxu0
    %v3214 = vadd.f32 %v2189, %v3213
    %v3215 = vpop.f32.mrf.mxu0
    %3216 = vmatprep.mubr.f32.mxu0 %v1515
    %3217 = vmatmul.mubr.f32.gmra.mxu0 %v1514
    %v3218 = vpop.f32.mrf.mxu0
    %v3219 = vadd.f32 %v2194, %v3218
    %v3220 = vpop.f32.mrf.mxu0
    %3221 = vmatprep.mubr.f32.mxu0 %v1519
    %3222 = vmatmul.mubr.f32.gmra.mxu0 %v1518
    %v3223 = vpop.f32.mrf.mxu0
    %v3224 = vadd.f32 %v2199, %v3223
    %v3225 = vpop.f32.mrf.mxu0
    %3226 = vmatprep.mubr.f32.mxu0 %v1523
    %3227 = vmatmul.mubr.f32.gmra.mxu0 %v1522
    %v3228 = vpop.f32.mrf.mxu0
    %v3229 = vadd.f32 %v2204, %v3228
    %v3230 = vpop.f32.mrf.mxu0
    %3231 = vmatprep.mubr.f32.mxu0 %v1527
    %3232 = vmatmul.mubr.f32.gmra.mxu0 %v1526
    %v3233 = vpop.f32.mrf.mxu0
    %v3234 = vadd.f32 %v2209, %v3233
    %v3235 = vpop.f32.mrf.mxu0
    %3236 = vmatprep.mubr.f32.mxu0 %v1531
    %3237 = vmatmul.mubr.f32.gmra.mxu0 %v1530
    %v3238 = vpop.f32.mrf.mxu0
    %v3239 = vadd.f32 %v2214, %v3238
    %v3240 = vpop.f32.mrf.mxu0
    %3241 = vmatprep.mubr.f32.mxu0 %v1535
    %3242 = vmatmul.mubr.f32.gmra.mxu0 %v1534
    %v3243 = vpop.f32.mrf.mxu0
    %v3244 = vadd.f32 %v2219, %v3243
    %v3245 = vpop.f32.mrf.mxu0
    %3246 = vmatprep.mubr.f32.mxu0 %v1539
    %3247 = vmatmul.mubr.f32.gmra.mxu0 %v1538
    %v3248 = vpop.f32.mrf.mxu0
    %v3249 = vadd.f32 %v2224, %v3248
    %v3250 = vpop.f32.mrf.mxu0
    %3251 = vmatprep.mubr.f32.mxu0 %v1543
    %3252 = vmatmul.mubr.f32.gmra.mxu0 %v1542
    %v3253 = vpop.f32.mrf.mxu0
    %v3254 = vadd.f32 %v2229, %v3253
    %v3255 = vpop.f32.mrf.mxu0
    %3256 = vmatprep.mubr.f32.mxu0 %v1547
    %3257 = vmatmul.mubr.f32.gmra.mxu0 %v1546
    %v3258 = vpop.f32.mrf.mxu0
    %v3259 = vadd.f32 %v2234, %v3258
    %v3260 = vpop.f32.mrf.mxu0
    %3261 = vmatprep.mubr.f32.mxu0 %v1551
    %3262 = vmatmul.mubr.f32.gmra.mxu0 %v1550
    %v3263 = vpop.f32.mrf.mxu0
    %v3264 = vadd.f32 %v2239, %v3263
    %v3265 = vpop.f32.mrf.mxu0
    %3266 = vmatprep.mubr.f32.mxu0 %v1555
    %3267 = vmatmul.mubr.f32.gmra.mxu0 %v1554
    %v3268 = vpop.f32.mrf.mxu0
    %v3269 = vadd.f32 %v2244, %v3268
    %v3270 = vpop.f32.mrf.mxu0
    %3271 = vmatprep.mubr.f32.mxu0 %v1559
    %3272 = vmatmul.mubr.f32.gmra.mxu0 %v1558
    %v3273 = vpop.f32.mrf.mxu0
    %v3274 = vadd.f32 %v2249, %v3273
    %v3275 = vpop.f32.mrf.mxu0
    %3276 = vmatprep.mubr.f32.mxu0 %v1563
    %3277 = vmatmul.mubr.f32.gmra.mxu0 %v1562
    %v3278 = vpop.f32.mrf.mxu0
    %v3279 = vadd.f32 %v2254, %v3278
    %v3280 = vpop.f32.mrf.mxu0
    %3281 = vmatprep.mubr.f32.mxu0 %v1567
    %3282 = vmatmul.mubr.f32.gmra.mxu0 %v1566
    %v3283 = vpop.f32.mrf.mxu0
    %v3284 = vadd.f32 %v2259, %v3283
    %v3285 = vpop.f32.mrf.mxu0
    %3286 = vmatprep.mubr.f32.mxu0 %v1571
    %3287 = vmatmul.mubr.f32.gmra.mxu0 %v1570
    %v3288 = vpop.f32.mrf.mxu0
    %v3289 = vadd.f32 %v2264, %v3288
    %v3290 = vpop.f32.mrf.mxu0
    %3291 = vmatprep.mubr.f32.mxu0 %v1575
    %3292 = vmatmul.mubr.f32.gmra.mxu0 %v1574
    %v3293 = vpop.f32.mrf.mxu0
    %v3294 = vadd.f32 %v2269, %v3293
    %v3295 = vpop.f32.mrf.mxu0
    %3296 = vmatprep.mubr.f32.mxu0 %v1579
    %3297 = vmatmul.mubr.f32.gmra.mxu0 %v1578
    %v3298 = vpop.f32.mrf.mxu0
    %v3299 = vadd.f32 %v2274, %v3298
    %v3300 = vpop.f32.mrf.mxu0
    %3301 = vmatprep.mubr.f32.mxu0 %v1583
    %3302 = vmatmul.mubr.f32.gmra.mxu0 %v1582
    %v3303 = vpop.f32.mrf.mxu0
    %v3304 = vadd.f32 %v2279, %v3303
    %v3305 = vpop.f32.mrf.mxu0
    %3306 = vmatprep.mubr.f32.mxu0 %v1587
    %3307 = vmatmul.mubr.f32.gmra.mxu0 %v1586
    %v3308 = vpop.f32.mrf.mxu0
    %v3309 = vadd.f32 %v2284, %v3308
    %v3310 = vpop.f32.mrf.mxu0
    %3311 = vmatprep.mubr.f32.mxu0 %v1591
    %3312 = vmatmul.mubr.f32.gmra.mxu0 %v1590
    %v3313 = vpop.f32.mrf.mxu0
    %v3314 = vadd.f32 %v2289, %v3313
    %v3315 = vpop.f32.mrf.mxu0
    %3316 = vmatprep.mubr.f32.mxu0 %v1595
    %3317 = vmatmul.mubr.f32.gmra.mxu0 %v1594
    %v3318 = vpop.f32.mrf.mxu0
    %v3319 = vadd.f32 %v2294, %v3318
    %v3320 = vpop.f32.mrf.mxu0
    %3321 = vmatprep.mubr.f32.mxu0 %v1599
    %3322 = vmatmul.mubr.f32.gmra.mxu0 %v1598
    %v3323 = vpop.f32.mrf.mxu0
    %v3324 = vadd.f32 %v2299, %v3323
    %v3325 = vpop.f32.mrf.mxu0
    %3326 = vmatprep.mubr.f32.mxu0 %v1603
    %3327 = vmatmul.mubr.f32.gmra.mxu0 %v1602
    %v3328 = vpop.f32.mrf.mxu0
    %v3329 = vadd.f32 %v2304, %v3328
    %v3330 = vpop.f32.mrf.mxu0
    %3331 = vmatprep.mubr.f32.mxu0 %v1607
    %3332 = vmatmul.mubr.f32.gmra.mxu0 %v1606
    %v3333 = vpop.f32.mrf.mxu0
    %v3334 = vadd.f32 %v2309, %v3333
    %v3335 = vpop.f32.mrf.mxu0
    %3336 = vmatprep.mubr.f32.mxu0 %v1611
    %3337 = vmatmul.mubr.f32.gmra.mxu0 %v1610
    %v3338 = vpop.f32.mrf.mxu0
    %v3339 = vadd.f32 %v2314, %v3338
    %v3340 = vpop.f32.mrf.mxu0
    %3341 = vmatprep.mubr.f32.mxu0 %v1615
    %3342 = vmatmul.mubr.f32.gmra.mxu0 %v1614
    %v3343 = vpop.f32.mrf.mxu0
    %v3344 = vadd.f32 %v2319, %v3343
    %v3345 = vpop.f32.mrf.mxu0
    %3346 = vmatprep.mubr.f32.mxu0 %v1619
    %3347 = vmatmul.mubr.f32.gmra.mxu0 %v1618
    %v3348 = vpop.f32.mrf.mxu0
    %v3349 = vadd.f32 %v2324, %v3348
    %v3350 = vpop.f32.mrf.mxu0
    %3351 = vmatprep.mubr.f32.mxu0 %v1623
    %3352 = vmatmul.mubr.f32.gmra.mxu0 %v1622
    %v3353 = vpop.f32.mrf.mxu0
    %v3354 = vadd.f32 %v2329, %v3353
    %v3355 = vpop.f32.mrf.mxu0
    %3356 = vmatprep.mubr.f32.mxu0 %v1627
    %3357 = vmatmul.mubr.f32.gmra.mxu0 %v1626
    %v3358 = vpop.f32.mrf.mxu0
    %v3359 = vadd.f32 %v2334, %v3358
    %v3360 = vpop.f32.mrf.mxu0
    %3361 = vmatprep.mubr.f32.mxu0 %v1631
    %3362 = vmatmul.mubr.f32.gmra.mxu0 %v1630
    %v3363 = vpop.f32.mrf.mxu0
    %v3364 = vadd.f32 %v2339, %v3363
    %v3365 = vpop.f32.mrf.mxu0
    %3366 = vmatprep.mubr.f32.mxu0 %v1635
    %3367 = vmatmul.mubr.f32.gmra.mxu0 %v1634
    %v3368 = vpop.f32.mrf.mxu0
    %v3369 = vadd.f32 %v2344, %v3368
    %v3370 = vpop.f32.mrf.mxu0
    %3371 = vmatprep.mubr.f32.mxu0 %v1639
    %3372 = vmatmul.mubr.f32.gmra.mxu0 %v1638
    %v3373 = vpop.f32.mrf.mxu0
    %v3374 = vadd.f32 %v2349, %v3373
    %v3375 = vpop.f32.mrf.mxu0
    %3376 = vmatprep.mubr.f32.mxu0 %v1643
    %3377 = vmatmul.mubr.f32.gmra.mxu0 %v1642
    %v3378 = vpop.f32.mrf.mxu0
    %v3379 = vadd.f32 %v2354, %v3378
    %v3380 = vpop.f32.mrf.mxu0
    %3381 = vmatprep.mubr.f32.mxu0 %v1647
    %3382 = vmatmul.mubr.f32.gmra.mxu0 %v1646
    %v3383 = vpop.f32.mrf.mxu0
    %v3384 = vadd.f32 %v2359, %v3383
    %v3385 = vpop.f32.mrf.mxu0
    %3386 = vmatprep.mubr.f32.mxu0 %v1651
    %3387 = vmatmul.mubr.f32.gmra.mxu0 %v1650
    %v3388 = vpop.f32.mrf.mxu0
    %v3389 = vadd.f32 %v2364, %v3388
    %v3390 = vpop.f32.mrf.mxu0
    %3391 = vmatprep.mubr.f32.mxu0 %v1655
    %3392 = vmatmul.mubr.f32.gmra.mxu0 %v1654
    %v3393 = vpop.f32.mrf.mxu0
    %v3394 = vadd.f32 %v2369, %v3393
    %v3395 = vpop.f32.mrf.mxu0
    %3396 = vmatprep.mubr.f32.mxu0 %v1659
    %3397 = vmatmul.mubr.f32.gmra.mxu0 %v1658
    %v3398 = vpop.f32.mrf.mxu0
    %v3399 = vadd.f32 %v2374, %v3398
    %v3400 = vpop.f32.mrf.mxu0
    %3401 = vmatprep.mubr.f32.mxu0 %v1663
    %3402 = vmatmul.mubr.f32.gmra.mxu0 %v1662
    %v3403 = vpop.f32.mrf.mxu0
    %v3404 = vadd.f32 %v2379, %v3403
    %v3405 = vpop.f32.mrf.mxu0
    %3406 = vmatprep.mubr.f32.mxu0 %v1667
    %3407 = vmatmul.mubr.f32.gmra.mxu0 %v1666
    %v3408 = vpop.f32.mrf.mxu0
    %v3409 = vadd.f32 %v2384, %v3408
    %v3410 = vpop.f32.mrf.mxu0
    %3411 = vmatprep.mubr.f32.mxu0 %v1671
    %3412 = vmatmul.mubr.f32.gmra.mxu0 %v1670
    %v3413 = vpop.f32.mrf.mxu0
    %v3414 = vadd.f32 %v2389, %v3413
    %v3415 = vpop.f32.mrf.mxu0
    %3416 = vmatprep.mubr.f32.mxu0 %v1675
    %3417 = vmatmul.mubr.f32.gmra.mxu0 %v1674
    %v3418 = vpop.f32.mrf.mxu0
    %v3419 = vadd.f32 %v2394, %v3418
    %v3420 = vpop.f32.mrf.mxu0
    %3421 = vmatprep.mubr.f32.mxu0 %v1679
    %3422 = vmatmul.mubr.f32.gmra.mxu0 %v1678
    %v3423 = vpop.f32.mrf.mxu0
    %v3424 = vadd.f32 %v2399, %v3423
    %v3425 = vpop.f32.mrf.mxu0
    %3426 = vmatprep.mubr.f32.mxu0 %v1683
    %3427 = vmatmul.mubr.f32.gmra.mxu0 %v1682
    %v3428 = vpop.f32.mrf.mxu0
    %v3429 = vadd.f32 %v2404, %v3428
    %v3430 = vpop.f32.mrf.mxu0
    %3431 = vdwg.mxu0
    %3432 = vmatprep.subr.mxu0 0.0
    %3433 = vmatpush1.msra.mxu0 %v1191
    %3434 = vmatprep.subr.mxu0 0.0
    %3435 = vmatpush1.msra.mxu0 %v1190
    %3436 = vmatprep.subr.mxu0 0.0
    %3437 = vmatpush1.msra.mxu0 %v1189
    %3438 = vmatprep.subr.mxu0 0.0
    %3439 = vmatpush1.msra.mxu0 %v1188
    %3440 = vmatprep.subr.mxu0 0.0
    %3441 = vmatpush1.msra.mxu0 %v1187
    %3442 = vmatprep.subr.mxu0 0.0
    %3443 = vmatpush1.msra.mxu0 %v1186
    %3444 = vmatprep.subr.mxu0 0.0
    %3445 = vmatpush1.msra.mxu0 %v1185
    %3446 = vmatprep.subr.mxu0 0.0
    %3447 = vmatpush1.msra.mxu0 %v1184
    %3448 = vmatprep.subr.mxu0 0.0
    %3449 = vmatpush1.msra.mxu0 %v1183
    %3450 = vmatprep.subr.mxu0 0.0
    %3451 = vmatpush1.msra.mxu0 %v1182
    %3452 = vmatprep.subr.mxu0 0.0
    %3453 = vmatpush1.msra.mxu0 %v1181
    %3454 = vmatprep.subr.mxu0 0.0
    %3455 = vmatpush1.msra.mxu0 %v1180
    %3456 = vmatprep.subr.mxu0 0.0
    %3457 = vmatpush1.msra.mxu0 %v1179
    %3458 = vmatprep.subr.mxu0 0.0
    %3459 = vmatpush1.msra.mxu0 %v1178
    %3460 = vmatprep.subr.mxu0 0.0
    %3461 = vmatpush1.msra.mxu0 %v1177
    %3462 = vmatprep.subr.mxu0 0.0
    %3463 = vmatpush1.msra.mxu0 %v1176
    %3464 = vmatprep.subr.mxu0 0.0
    %3465 = vmatpush2.msra.mxu0 0.0
    %3466 = vmatprep.subr.mxu0 0.0
    %3467 = vmatpush2.msra.mxu0 0.0
    %3468 = vmatprep.subr.mxu0 0.0
    %3469 = vmatpush2.msra.mxu0 %v1205
    %3470 = vmatprep.subr.mxu0 0.0
    %3471 = vmatpush2.msra.mxu0 %v1204
    %3472 = vmatprep.subr.mxu0 0.0
    %3473 = vmatpush2.msra.mxu0 %v1203
    %3474 = vmatprep.subr.mxu0 0.0
    %3475 = vmatpush2.msra.mxu0 %v1202
    %3476 = vmatprep.subr.mxu0 0.0
    %3477 = vmatpush2.msra.mxu0 %v1201
    %3478 = vmatprep.subr.mxu0 0.0
    %3479 = vmatpush2.msra.mxu0 %v1200
    %3480 = vmatprep.subr.mxu0 0.0
    %3481 = vmatpush2.msra.mxu0 %v1199
    %3482 = vmatprep.subr.mxu0 0.0
    %3483 = vmatpush2.msra.mxu0 %v1198
    %3484 = vmatprep.subr.mxu0 0.0
    %3485 = vmatpush2.msra.mxu0 %v1197
    %3486 = vmatprep.subr.mxu0 0.0
    %3487 = vmatpush2.msra.mxu0 %v1196
    %3488 = vmatprep.subr.mxu0 0.0
    %3489 = vmatpush2.msra.mxu0 %v1195
    %3490 = vmatprep.subr.mxu0 0.0
    %3491 = vmatpush2.msra.mxu0 %v1194
    %3492 = vmatprep.subr.mxu0 0.0
    %3493 = vmatpush2.msra.mxu0 %v1193
    %3494 = vmatprep.subr.mxu0 0.0
    %3495 = vmatpush2.msra.mxu0 %v1192
    %3496 = vmatprep.mubr.f32.mxu0 %v2408
    %3497 = vmatmul.mubr.f32.gmra.mxu0 %v1208
    %v3498 = vpop.f32.mrf.mxu0
    %v3499 = vadd.f32 %v2834, %v3498
    %v3500 = vpop.f32.mrf.mxu0
    %3501 = vmatprep.mubr.f32.mxu0 %v2411
    %3502 = vmatmul.mubr.f32.gmra.mxu0 %v1212
    %v3503 = vpop.f32.mrf.mxu0
    %v3504 = vadd.f32 %v2839, %v3503
    %v3505 = vpop.f32.mrf.mxu0
    %3506 = vmatprep.mubr.f32.mxu0 %v2414
    %3507 = vmatmul.mubr.f32.gmra.mxu0 %v1216
    %v3508 = vpop.f32.mrf.mxu0
    %v3509 = vadd.f32 %v2844, %v3508
    %v3510 = vpop.f32.mrf.mxu0
    %3511 = vmatprep.mubr.f32.mxu0 %v2417
    %3512 = vmatmul.mubr.f32.gmra.mxu0 %v1220
    %v3513 = vpop.f32.mrf.mxu0
    %v3514 = vadd.f32 %v2849, %v3513
    %v3515 = vpop.f32.mrf.mxu0
    %3516 = vmatprep.mubr.f32.mxu0 %v2420
    %3517 = vmatmul.mubr.f32.gmra.mxu0 %v1224
    %v3518 = vpop.f32.mrf.mxu0
    %v3519 = vadd.f32 %v2854, %v3518
    %v3520 = vpop.f32.mrf.mxu0
    %3521 = vmatprep.mubr.f32.mxu0 %v2423
    %3522 = vmatmul.mubr.f32.gmra.mxu0 %v1228
    %v3523 = vpop.f32.mrf.mxu0
    %v3524 = vadd.f32 %v2859, %v3523
    %v3525 = vpop.f32.mrf.mxu0
    %3526 = vmatprep.mubr.f32.mxu0 %v2426
    %3527 = vmatmul.mubr.f32.gmra.mxu0 %v1232
    %v3528 = vpop.f32.mrf.mxu0
    %v3529 = vadd.f32 %v2864, %v3528
    %v3530 = vpop.f32.mrf.mxu0
    %3531 = vmatprep.mubr.f32.mxu0 %v2429
    %3532 = vmatmul.mubr.f32.gmra.mxu0 %v1236
    %v3533 = vpop.f32.mrf.mxu0
    %v3534 = vadd.f32 %v2869, %v3533
    %v3535 = vpop.f32.mrf.mxu0
    %3536 = vmatprep.mubr.f32.mxu0 %v2432
    %3537 = vmatmul.mubr.f32.gmra.mxu0 %v1240
    %v3538 = vpop.f32.mrf.mxu0
    %v3539 = vadd.f32 %v2874, %v3538
    %v3540 = vpop.f32.mrf.mxu0
    %3541 = vmatprep.mubr.f32.mxu0 %v2435
    %3542 = vmatmul.mubr.f32.gmra.mxu0 %v1244
    %v3543 = vpop.f32.mrf.mxu0
    %v3544 = vadd.f32 %v2879, %v3543
    %v3545 = vpop.f32.mrf.mxu0
    %3546 = vmatprep.mubr.f32.mxu0 %v2438
    %3547 = vmatmul.mubr.f32.gmra.mxu0 %v1248
    %v3548 = vpop.f32.mrf.mxu0
    %v3549 = vadd.f32 %v2884, %v3548
    %v3550 = vpop.f32.mrf.mxu0
    %3551 = vmatprep.mubr.f32.mxu0 %v2441
    %3552 = vmatmul.mubr.f32.gmra.mxu0 %v1252
    %v3553 = vpop.f32.mrf.mxu0
    %v3554 = vadd.f32 %v2889, %v3553
    %v3555 = vpop.f32.mrf.mxu0
    %3556 = vmatprep.mubr.f32.mxu0 %v2444
    %3557 = vmatmul.mubr.f32.gmra.mxu0 %v1256
    %v3558 = vpop.f32.mrf.mxu0
    %v3559 = vadd.f32 %v2894, %v3558
    %v3560 = vpop.f32.mrf.mxu0
    %3561 = vmatprep.mubr.f32.mxu0 %v2447
    %3562 = vmatmul.mubr.f32.gmra.mxu0 %v1260
    %v3563 = vpop.f32.mrf.mxu0
    %v3564 = vadd.f32 %v2899, %v3563
    %v3565 = vpop.f32.mrf.mxu0
    %3566 = vmatprep.mubr.f32.mxu0 %v2450
    %3567 = vmatmul.mubr.f32.gmra.mxu0 %v1264
    %v3568 = vpop.f32.mrf.mxu0
    %v3569 = vadd.f32 %v2904, %v3568
    %v3570 = vpop.f32.mrf.mxu0
    %3571 = vmatprep.mubr.f32.mxu0 %v2453
    %3572 = vmatmul.mubr.f32.gmra.mxu0 %v1268
    %v3573 = vpop.f32.mrf.mxu0
    %v3574 = vadd.f32 %v2909, %v3573
    %v3575 = vpop.f32.mrf.mxu0
    %3576 = vmatprep.mubr.f32.mxu0 %v2456
    %3577 = vmatmul.mubr.f32.gmra.mxu0 %v1272
    %v3578 = vpop.f32.mrf.mxu0
    %v3579 = vadd.f32 %v2914, %v3578
    %v3580 = vpop.f32.mrf.mxu0
    %3581 = vmatprep.mubr.f32.mxu0 %v2459
    %3582 = vmatmul.mubr.f32.gmra.mxu0 %v1276
    %v3583 = vpop.f32.mrf.mxu0
    %v3584 = vadd.f32 %v2919, %v3583
    %v3585 = vpop.f32.mrf.mxu0
    %3586 = vmatprep.mubr.f32.mxu0 %v2462
    %3587 = vmatmul.mubr.f32.gmra.mxu0 %v1280
    %v3588 = vpop.f32.mrf.mxu0
    %v3589 = vadd.f32 %v2924, %v3588
    %v3590 = vpop.f32.mrf.mxu0
    %3591 = vmatprep.mubr.f32.mxu0 %v2465
    %3592 = vmatmul.mubr.f32.gmra.mxu0 %v1284
    %v3593 = vpop.f32.mrf.mxu0
    %v3594 = vadd.f32 %v2929, %v3593
    %v3595 = vpop.f32.mrf.mxu0
    %3596 = vmatprep.mubr.f32.mxu0 %v2468
    %3597 = vmatmul.mubr.f32.gmra.mxu0 %v1288
    %v3598 = vpop.f32.mrf.mxu0
    %v3599 = vadd.f32 %v2934, %v3598
    %v3600 = vpop.f32.mrf.mxu0
    %3601 = vmatprep.mubr.f32.mxu0 %v2471
    %3602 = vmatmul.mubr.f32.gmra.mxu0 %v1292
    %v3603 = vpop.f32.mrf.mxu0
    %v3604 = vadd.f32 %v2939, %v3603
    %v3605 = vpop.f32.mrf.mxu0
    %3606 = vmatprep.mubr.f32.mxu0 %v2474
    %3607 = vmatmul.mubr.f32.gmra.mxu0 %v1296
    %v3608 = vpop.f32.mrf.mxu0
    %v3609 = vadd.f32 %v2944, %v3608
    %v3610 = vpop.f32.mrf.mxu0
    %3611 = vmatprep.mubr.f32.mxu0 %v2477
    %3612 = vmatmul.mubr.f32.gmra.mxu0 %v1300
    %v3613 = vpop.f32.mrf.mxu0
    %v3614 = vadd.f32 %v2949, %v3613
    %v3615 = vpop.f32.mrf.mxu0
    %3616 = vmatprep.mubr.f32.mxu0 %v2480
    %3617 = vmatmul.mubr.f32.gmra.mxu0 %v1304
    %v3618 = vpop.f32.mrf.mxu0
    %v3619 = vadd.f32 %v2954, %v3618
    %v3620 = vpop.f32.mrf.mxu0
    %3621 = vmatprep.mubr.f32.mxu0 %v2483
    %3622 = vmatmul.mubr.f32.gmra.mxu0 %v1308
    %v3623 = vpop.f32.mrf.mxu0
    %v3624 = vadd.f32 %v2959, %v3623
    %v3625 = vpop.f32.mrf.mxu0
    %3626 = vmatprep.mubr.f32.mxu0 %v2486
    %3627 = vmatmul.mubr.f32.gmra.mxu0 %v1312
    %v3628 = vpop.f32.mrf.mxu0
    %v3629 = vadd.f32 %v2964, %v3628
    %v3630 = vpop.f32.mrf.mxu0
    %3631 = vmatprep.mubr.f32.mxu0 %v2489
    %3632 = vmatmul.mubr.f32.gmra.mxu0 %v1316
    %v3633 = vpop.f32.mrf.mxu0
    %v3634 = vadd.f32 %v2969, %v3633
    %v3635 = vpop.f32.mrf.mxu0
    %3636 = vmatprep.mubr.f32.mxu0 %v2492
    %3637 = vmatmul.mubr.f32.gmra.mxu0 %v1320
    %v3638 = vpop.f32.mrf.mxu0
    %v3639 = vadd.f32 %v2974, %v3638
    %v3640 = vpop.f32.mrf.mxu0
    %3641 = vmatprep.mubr.f32.mxu0 %v2495
    %3642 = vmatmul.mubr.f32.gmra.mxu0 %v1324
    %v3643 = vpop.f32.mrf.mxu0
    %v3644 = vadd.f32 %v2979, %v3643
    %v3645 = vpop.f32.mrf.mxu0
    %3646 = vmatprep.mubr.f32.mxu0 %v2498
    %3647 = vmatmul.mubr.f32.gmra.mxu0 %v1328
    %v3648 = vpop.f32.mrf.mxu0
    %v3649 = vadd.f32 %v2984, %v3648
    %v3650 = vpop.f32.mrf.mxu0
    %3651 = vmatprep.mubr.f32.mxu0 %v2501
    %3652 = vmatmul.mubr.f32.gmra.mxu0 %v1332
    %v3653 = vpop.f32.mrf.mxu0
    %v3654 = vadd.f32 %v2989, %v3653
    %v3655 = vpop.f32.mrf.mxu0
    %3656 = vmatprep.mubr.f32.mxu0 %v2504
    %3657 = vmatmul.mubr.f32.gmra.mxu0 %v1336
    %v3658 = vpop.f32.mrf.mxu0
    %v3659 = vadd.f32 %v2994, %v3658
    %v3660 = vpop.f32.mrf.mxu0
    %3661 = vmatprep.mubr.f32.mxu0 %v2507
    %3662 = vmatmul.mubr.f32.gmra.mxu0 %v1340
    %v3663 = vpop.f32.mrf.mxu0
    %v3664 = vadd.f32 %v2999, %v3663
    %v3665 = vpop.f32.mrf.mxu0
    %3666 = vmatprep.mubr.f32.mxu0 %v2510
    %3667 = vmatmul.mubr.f32.gmra.mxu0 %v1344
    %v3668 = vpop.f32.mrf.mxu0
    %v3669 = vadd.f32 %v3004, %v3668
    %v3670 = vpop.f32.mrf.mxu0
    %3671 = vmatprep.mubr.f32.mxu0 %v2513
    %3672 = vmatmul.mubr.f32.gmra.mxu0 %v1348
    %v3673 = vpop.f32.mrf.mxu0
    %v3674 = vadd.f32 %v3009, %v3673
    %v3675 = vpop.f32.mrf.mxu0
    %3676 = vmatprep.mubr.f32.mxu0 %v2516
    %3677 = vmatmul.mubr.f32.gmra.mxu0 %v1352
    %v3678 = vpop.f32.mrf.mxu0
    %v3679 = vadd.f32 %v3014, %v3678
    %v3680 = vpop.f32.mrf.mxu0
    %3681 = vmatprep.mubr.f32.mxu0 %v2519
    %3682 = vmatmul.mubr.f32.gmra.mxu0 %v1356
    %v3683 = vpop.f32.mrf.mxu0
    %v3684 = vadd.f32 %v3019, %v3683
    %v3685 = vpop.f32.mrf.mxu0
    %3686 = vmatprep.mubr.f32.mxu0 %v2522
    %3687 = vmatmul.mubr.f32.gmra.mxu0 %v1360
    %v3688 = vpop.f32.mrf.mxu0
    %v3689 = vadd.f32 %v3024, %v3688
    %v3690 = vpop.f32.mrf.mxu0
    %3691 = vmatprep.mubr.f32.mxu0 %v2525
    %3692 = vmatmul.mubr.f32.gmra.mxu0 %v1364
    %v3693 = vpop.f32.mrf.mxu0
    %v3694 = vadd.f32 %v3029, %v3693
    %v3695 = vpop.f32.mrf.mxu0
    %3696 = vmatprep.mubr.f32.mxu0 %v2528
    %3697 = vmatmul.mubr.f32.gmra.mxu0 %v1368
    %v3698 = vpop.f32.mrf.mxu0
    %v3699 = vadd.f32 %v3034, %v3698
    %v3700 = vpop.f32.mrf.mxu0
    %3701 = vmatprep.mubr.f32.mxu0 %v2531
    %3702 = vmatmul.mubr.f32.gmra.mxu0 %v1372
    %v3703 = vpop.f32.mrf.mxu0
    %v3704 = vadd.f32 %v3039, %v3703
    %v3705 = vpop.f32.mrf.mxu0
    %3706 = vmatprep.mubr.f32.mxu0 %v2534
    %3707 = vmatmul.mubr.f32.gmra.mxu0 %v1376
    %v3708 = vpop.f32.mrf.mxu0
    %v3709 = vadd.f32 %v3044, %v3708
    %v3710 = vpop.f32.mrf.mxu0
    %3711 = vmatprep.mubr.f32.mxu0 %v2537
    %3712 = vmatmul.mubr.f32.gmra.mxu0 %v1380
    %v3713 = vpop.f32.mrf.mxu0
    %v3714 = vadd.f32 %v3049, %v3713
    %v3715 = vpop.f32.mrf.mxu0
    %3716 = vmatprep.mubr.f32.mxu0 %v2540
    %3717 = vmatmul.mubr.f32.gmra.mxu0 %v1384
    %v3718 = vpop.f32.mrf.mxu0
    %v3719 = vadd.f32 %v3054, %v3718
    %v3720 = vpop.f32.mrf.mxu0
    %3721 = vmatprep.mubr.f32.mxu0 %v2543
    %3722 = vmatmul.mubr.f32.gmra.mxu0 %v1388
    %v3723 = vpop.f32.mrf.mxu0
    %v3724 = vadd.f32 %v3059, %v3723
    %v3725 = vpop.f32.mrf.mxu0
    %3726 = vmatprep.mubr.f32.mxu0 %v2546
    %3727 = vmatmul.mubr.f32.gmra.mxu0 %v1392
    %v3728 = vpop.f32.mrf.mxu0
    %v3729 = vadd.f32 %v3064, %v3728
    %v3730 = vpop.f32.mrf.mxu0
    %3731 = vmatprep.mubr.f32.mxu0 %v2549
    %3732 = vmatmul.mubr.f32.gmra.mxu0 %v1396
    %v3733 = vpop.f32.mrf.mxu0
    %v3734 = vadd.f32 %v3069, %v3733
    %v3735 = vpop.f32.mrf.mxu0
    %3736 = vmatprep.mubr.f32.mxu0 %v2552
    %3737 = vmatmul.mubr.f32.gmra.mxu0 %v1400
    %v3738 = vpop.f32.mrf.mxu0
    %v3739 = vadd.f32 %v3074, %v3738
    %v3740 = vpop.f32.mrf.mxu0
    %3741 = vmatprep.mubr.f32.mxu0 %v2555
    %3742 = vmatmul.mubr.f32.gmra.mxu0 %v1404
    %v3743 = vpop.f32.mrf.mxu0
    %v3744 = vadd.f32 %v3079, %v3743
    %v3745 = vpop.f32.mrf.mxu0
    %3746 = vmatprep.mubr.f32.mxu0 %v2558
    %3747 = vmatmul.mubr.f32.gmra.mxu0 %v1408
    %v3748 = vpop.f32.mrf.mxu0
    %v3749 = vadd.f32 %v3084, %v3748
    %v3750 = vpop.f32.mrf.mxu0
    %3751 = vmatprep.mubr.f32.mxu0 %v2561
    %3752 = vmatmul.mubr.f32.gmra.mxu0 %v1412
    %v3753 = vpop.f32.mrf.mxu0
    %v3754 = vadd.f32 %v3089, %v3753
    %v3755 = vpop.f32.mrf.mxu0
    %3756 = vmatprep.mubr.f32.mxu0 %v2564
    %3757 = vmatmul.mubr.f32.gmra.mxu0 %v1416
    %v3758 = vpop.f32.mrf.mxu0
    %v3759 = vadd.f32 %v3094, %v3758
    %v3760 = vpop.f32.mrf.mxu0
    %3761 = vmatprep.mubr.f32.mxu0 %v2567
    %3762 = vmatmul.mubr.f32.gmra.mxu0 %v1420
    %v3763 = vpop.f32.mrf.mxu0
    %v3764 = vadd.f32 %v3099, %v3763
    %v3765 = vpop.f32.mrf.mxu0
    %3766 = vmatprep.mubr.f32.mxu0 %v2570
    %3767 = vmatmul.mubr.f32.gmra.mxu0 %v1424
    %v3768 = vpop.f32.mrf.mxu0
    %v3769 = vadd.f32 %v3104, %v3768
    %v3770 = vpop.f32.mrf.mxu0
    %3771 = vmatprep.mubr.f32.mxu0 %v2573
    %3772 = vmatmul.mubr.f32.gmra.mxu0 %v1428
    %v3773 = vpop.f32.mrf.mxu0
    %v3774 = vadd.f32 %v3109, %v3773
    %v3775 = vpop.f32.mrf.mxu0
    %3776 = vmatprep.mubr.f32.mxu0 %v2576
    %3777 = vmatmul.mubr.f32.gmra.mxu0 %v1432
    %v3778 = vpop.f32.mrf.mxu0
    %v3779 = vadd.f32 %v3114, %v3778
    %v3780 = vpop.f32.mrf.mxu0
    %3781 = vmatprep.mubr.f32.mxu0 %v2579
    %3782 = vmatmul.mubr.f32.gmra.mxu0 %v1436
    %v3783 = vpop.f32.mrf.mxu0
    %v3784 = vadd.f32 %v3119, %v3783
    %v3785 = vpop.f32.mrf.mxu0
    %3786 = vmatprep.mubr.f32.mxu0 %v2582
    %3787 = vmatmul.mubr.f32.gmra.mxu0 %v1440
    %v3788 = vpop.f32.mrf.mxu0
    %v3789 = vadd.f32 %v3124, %v3788
    %v3790 = vpop.f32.mrf.mxu0
    %3791 = vmatprep.mubr.f32.mxu0 %v2585
    %3792 = vmatmul.mubr.f32.gmra.mxu0 %v1444
    %v3793 = vpop.f32.mrf.mxu0
    %v3794 = vadd.f32 %v3129, %v3793
    %v3795 = vpop.f32.mrf.mxu0
    %3796 = vmatprep.mubr.f32.mxu0 %v2588
    %3797 = vmatmul.mubr.f32.gmra.mxu0 %v1448
    %v3798 = vpop.f32.mrf.mxu0
    %v3799 = vadd.f32 %v3134, %v3798
    %v3800 = vpop.f32.mrf.mxu0
    %3801 = vmatprep.mubr.f32.mxu0 %v2591
    %3802 = vmatmul.mubr.f32.gmra.mxu0 %v1452
    %v3803 = vpop.f32.mrf.mxu0
    %v3804 = vadd.f32 %v3139, %v3803
    %v3805 = vpop.f32.mrf.mxu0
    %3806 = vmatprep.mubr.f32.mxu0 %v2594
    %3807 = vmatmul.mubr.f32.gmra.mxu0 %v1456
    %v3808 = vpop.f32.mrf.mxu0
    %v3809 = vadd.f32 %v3144, %v3808
    %v3810 = vpop.f32.mrf.mxu0
    %3811 = vmatprep.mubr.f32.mxu0 %v2597
    %3812 = vmatmul.mubr.f32.gmra.mxu0 %v1460
    %v3813 = vpop.f32.mrf.mxu0
    %v3814 = vadd.f32 %v3149, %v3813
    %v3815 = vpop.f32.mrf.mxu0
    %3816 = vmatprep.mubr.f32.mxu0 %v2600
    %3817 = vmatmul.mubr.f32.gmra.mxu0 %v1464
    %v3818 = vpop.f32.mrf.mxu0
    %v3819 = vadd.f32 %v3154, %v3818
    %v3820 = vpop.f32.mrf.mxu0
    %3821 = vmatprep.mubr.f32.mxu0 %v2603
    %3822 = vmatmul.mubr.f32.gmra.mxu0 %v1468
    %v3823 = vpop.f32.mrf.mxu0
    %v3824 = vadd.f32 %v3159, %v3823
    %v3825 = vpop.f32.mrf.mxu0
    %3826 = vmatprep.mubr.f32.mxu0 %v2606
    %3827 = vmatmul.mubr.f32.gmra.mxu0 %v1472
    %v3828 = vpop.f32.mrf.mxu0
    %v3829 = vadd.f32 %v3164, %v3828
    %v3830 = vpop.f32.mrf.mxu0
    %3831 = vmatprep.mubr.f32.mxu0 %v2609
    %3832 = vmatmul.mubr.f32.gmra.mxu0 %v1476
    %v3833 = vpop.f32.mrf.mxu0
    %v3834 = vadd.f32 %v3169, %v3833
    %v3835 = vpop.f32.mrf.mxu0
    %3836 = vmatprep.mubr.f32.mxu0 %v2612
    %3837 = vmatmul.mubr.f32.gmra.mxu0 %v1480
    %v3838 = vpop.f32.mrf.mxu0
    %v3839 = vadd.f32 %v3174, %v3838
    %v3840 = vpop.f32.mrf.mxu0
    %3841 = vmatprep.mubr.f32.mxu0 %v2615
    %3842 = vmatmul.mubr.f32.gmra.mxu0 %v1484
    %v3843 = vpop.f32.mrf.mxu0
    %v3844 = vadd.f32 %v3179, %v3843
    %v3845 = vpop.f32.mrf.mxu0
    %3846 = vmatprep.mubr.f32.mxu0 %v2618
    %3847 = vmatmul.mubr.f32.gmra.mxu0 %v1488
    %v3848 = vpop.f32.mrf.mxu0
    %v3849 = vadd.f32 %v3184, %v3848
    %v3850 = vpop.f32.mrf.mxu0
    %3851 = vmatprep.mubr.f32.mxu0 %v2621
    %3852 = vmatmul.mubr.f32.gmra.mxu0 %v1492
    %v3853 = vpop.f32.mrf.mxu0
    %v3854 = vadd.f32 %v3189, %v3853
    %v3855 = vpop.f32.mrf.mxu0
    %3856 = vmatprep.mubr.f32.mxu0 %v2624
    %3857 = vmatmul.mubr.f32.gmra.mxu0 %v1496
    %v3858 = vpop.f32.mrf.mxu0
    %v3859 = vadd.f32 %v3194, %v3858
    %v3860 = vpop.f32.mrf.mxu0
    %3861 = vmatprep.mubr.f32.mxu0 %v2627
    %3862 = vmatmul.mubr.f32.gmra.mxu0 %v1500
    %v3863 = vpop.f32.mrf.mxu0
    %v3864 = vadd.f32 %v3199, %v3863
    %v3865 = vpop.f32.mrf.mxu0
    %3866 = vmatprep.mubr.f32.mxu0 %v2630
    %3867 = vmatmul.mubr.f32.gmra.mxu0 %v1504
    %v3868 = vpop.f32.mrf.mxu0
    %v3869 = vadd.f32 %v3204, %v3868
    %v3870 = vpop.f32.mrf.mxu0
    %3871 = vmatprep.mubr.f32.mxu0 %v2633
    %3872 = vmatmul.mubr.f32.gmra.mxu0 %v1508
    %v3873 = vpop.f32.mrf.mxu0
    %v3874 = vadd.f32 %v3209, %v3873
    %v3875 = vpop.f32.mrf.mxu0
    %3876 = vmatprep.mubr.f32.mxu0 %v2636
    %3877 = vmatmul.mubr.f32.gmra.mxu0 %v1512
    %v3878 = vpop.f32.mrf.mxu0
    %v3879 = vadd.f32 %v3214, %v3878
    %v3880 = vpop.f32.mrf.mxu0
    %3881 = vmatprep.mubr.f32.mxu0 %v2639
    %3882 = vmatmul.mubr.f32.gmra.mxu0 %v1516
    %v3883 = vpop.f32.mrf.mxu0
    %v3884 = vadd.f32 %v3219, %v3883
    %v3885 = vpop.f32.mrf.mxu0
    %3886 = vmatprep.mubr.f32.mxu0 %v2642
    %3887 = vmatmul.mubr.f32.gmra.mxu0 %v1520
    %v3888 = vpop.f32.mrf.mxu0
    %v3889 = vadd.f32 %v3224, %v3888
    %v3890 = vpop.f32.mrf.mxu0
    %3891 = vmatprep.mubr.f32.mxu0 %v2645
    %3892 = vmatmul.mubr.f32.gmra.mxu0 %v1524
    %v3893 = vpop.f32.mrf.mxu0
    %v3894 = vadd.f32 %v3229, %v3893
    %v3895 = vpop.f32.mrf.mxu0
    %3896 = vmatprep.mubr.f32.mxu0 %v2648
    %3897 = vmatmul.mubr.f32.gmra.mxu0 %v1528
    %v3898 = vpop.f32.mrf.mxu0
    %v3899 = vadd.f32 %v3234, %v3898
    %v3900 = vpop.f32.mrf.mxu0
    %3901 = vmatprep.mubr.f32.mxu0 %v2651
    %3902 = vmatmul.mubr.f32.gmra.mxu0 %v1532
    %v3903 = vpop.f32.mrf.mxu0
    %v3904 = vadd.f32 %v3239, %v3903
    %v3905 = vpop.f32.mrf.mxu0
    %3906 = vmatprep.mubr.f32.mxu0 %v2654
    %3907 = vmatmul.mubr.f32.gmra.mxu0 %v1536
    %v3908 = vpop.f32.mrf.mxu0
    %v3909 = vadd.f32 %v3244, %v3908
    %v3910 = vpop.f32.mrf.mxu0
    %3911 = vmatprep.mubr.f32.mxu0 %v2657
    %3912 = vmatmul.mubr.f32.gmra.mxu0 %v1540
    %v3913 = vpop.f32.mrf.mxu0
    %v3914 = vadd.f32 %v3249, %v3913
    %v3915 = vpop.f32.mrf.mxu0
    %3916 = vmatprep.mubr.f32.mxu0 %v2660
    %3917 = vmatmul.mubr.f32.gmra.mxu0 %v1544
    %v3918 = vpop.f32.mrf.mxu0
    %v3919 = vadd.f32 %v3254, %v3918
    %v3920 = vpop.f32.mrf.mxu0
    %3921 = vmatprep.mubr.f32.mxu0 %v2663
    %3922 = vmatmul.mubr.f32.gmra.mxu0 %v1548
    %v3923 = vpop.f32.mrf.mxu0
    %v3924 = vadd.f32 %v3259, %v3923
    %v3925 = vpop.f32.mrf.mxu0
    %3926 = vmatprep.mubr.f32.mxu0 %v2666
    %3927 = vmatmul.mubr.f32.gmra.mxu0 %v1552
    %v3928 = vpop.f32.mrf.mxu0
    %v3929 = vadd.f32 %v3264, %v3928
    %v3930 = vpop.f32.mrf.mxu0
    %3931 = vmatprep.mubr.f32.mxu0 %v2669
    %3932 = vmatmul.mubr.f32.gmra.mxu0 %v1556
    %v3933 = vpop.f32.mrf.mxu0
    %v3934 = vadd.f32 %v3269, %v3933
    %v3935 = vpop.f32.mrf.mxu0
    %3936 = vmatprep.mubr.f32.mxu0 %v2672
    %3937 = vmatmul.mubr.f32.gmra.mxu0 %v1560
    %v3938 = vpop.f32.mrf.mxu0
    %v3939 = vadd.f32 %v3274, %v3938
    %v3940 = vpop.f32.mrf.mxu0
    %3941 = vmatprep.mubr.f32.mxu0 %v2675
    %3942 = vmatmul.mubr.f32.gmra.mxu0 %v1564
    %v3943 = vpop.f32.mrf.mxu0
    %v3944 = vadd.f32 %v3279, %v3943
    %v3945 = vpop.f32.mrf.mxu0
    %3946 = vmatprep.mubr.f32.mxu0 %v2678
    %3947 = vmatmul.mubr.f32.gmra.mxu0 %v1568
    %v3948 = vpop.f32.mrf.mxu0
    %v3949 = vadd.f32 %v3284, %v3948
    %v3950 = vpop.f32.mrf.mxu0
    %3951 = vmatprep.mubr.f32.mxu0 %v2681
    %3952 = vmatmul.mubr.f32.gmra.mxu0 %v1572
    %v3953 = vpop.f32.mrf.mxu0
    %v3954 = vadd.f32 %v3289, %v3953
    %v3955 = vpop.f32.mrf.mxu0
    %3956 = vmatprep.mubr.f32.mxu0 %v2684
    %3957 = vmatmul.mubr.f32.gmra.mxu0 %v1576
    %v3958 = vpop.f32.mrf.mxu0
    %v3959 = vadd.f32 %v3294, %v3958
    %v3960 = vpop.f32.mrf.mxu0
    %3961 = vmatprep.mubr.f32.mxu0 %v2687
    %3962 = vmatmul.mubr.f32.gmra.mxu0 %v1580
    %v3963 = vpop.f32.mrf.mxu0
    %v3964 = vadd.f32 %v3299, %v3963
    %v3965 = vpop.f32.mrf.mxu0
    %3966 = vmatprep.mubr.f32.mxu0 %v2690
    %3967 = vmatmul.mubr.f32.gmra.mxu0 %v1584
    %v3968 = vpop.f32.mrf.mxu0
    %v3969 = vadd.f32 %v3304, %v3968
    %v3970 = vpop.f32.mrf.mxu0
    %3971 = vmatprep.mubr.f32.mxu0 %v2693
    %3972 = vmatmul.mubr.f32.gmra.mxu0 %v1588
    %v3973 = vpop.f32.mrf.mxu0
    %v3974 = vadd.f32 %v3309, %v3973
    %v3975 = vpop.f32.mrf.mxu0
    %3976 = vmatprep.mubr.f32.mxu0 %v2696
    %3977 = vmatmul.mubr.f32.gmra.mxu0 %v1592
    %v3978 = vpop.f32.mrf.mxu0
    %v3979 = vadd.f32 %v3314, %v3978
    %v3980 = vpop.f32.mrf.mxu0
    %3981 = vmatprep.mubr.f32.mxu0 %v2699
    %3982 = vmatmul.mubr.f32.gmra.mxu0 %v1596
    %v3983 = vpop.f32.mrf.mxu0
    %v3984 = vadd.f32 %v3319, %v3983
    %v3985 = vpop.f32.mrf.mxu0
    %3986 = vmatprep.mubr.f32.mxu0 %v2702
    %3987 = vmatmul.mubr.f32.gmra.mxu0 %v1600
    %v3988 = vpop.f32.mrf.mxu0
    %v3989 = vadd.f32 %v3324, %v3988
    %v3990 = vpop.f32.mrf.mxu0
    %3991 = vmatprep.mubr.f32.mxu0 %v2705
    %3992 = vmatmul.mubr.f32.gmra.mxu0 %v1604
    %v3993 = vpop.f32.mrf.mxu0
    %v3994 = vadd.f32 %v3329, %v3993
    %v3995 = vpop.f32.mrf.mxu0
    %3996 = vmatprep.mubr.f32.mxu0 %v2708
    %3997 = vmatmul.mubr.f32.gmra.mxu0 %v1608
    %v3998 = vpop.f32.mrf.mxu0
    %v3999 = vadd.f32 %v3334, %v3998
    %v4000 = vpop.f32.mrf.mxu0
    %4001 = vmatprep.mubr.f32.mxu0 %v2711
    %4002 = vmatmul.mubr.f32.gmra.mxu0 %v1612
    %v4003 = vpop.f32.mrf.mxu0
    %v4004 = vadd.f32 %v3339, %v4003
    %v4005 = vpop.f32.mrf.mxu0
    %4006 = vmatprep.mubr.f32.mxu0 %v2714
    %4007 = vmatmul.mubr.f32.gmra.mxu0 %v1616
    %v4008 = vpop.f32.mrf.mxu0
    %v4009 = vadd.f32 %v3344, %v4008
    %v4010 = vpop.f32.mrf.mxu0
    %4011 = vmatprep.mubr.f32.mxu0 %v2717
    %4012 = vmatmul.mubr.f32.gmra.mxu0 %v1620
    %v4013 = vpop.f32.mrf.mxu0
    %v4014 = vadd.f32 %v3349, %v4013
    %v4015 = vpop.f32.mrf.mxu0
    %4016 = vmatprep.mubr.f32.mxu0 %v2720
    %4017 = vmatmul.mubr.f32.gmra.mxu0 %v1624
    %v4018 = vpop.f32.mrf.mxu0
    %v4019 = vadd.f32 %v3354, %v4018
    %v4020 = vpop.f32.mrf.mxu0
    %4021 = vmatprep.mubr.f32.mxu0 %v2723
    %4022 = vmatmul.mubr.f32.gmra.mxu0 %v1628
    %v4023 = vpop.f32.mrf.mxu0
    %v4024 = vadd.f32 %v3359, %v4023
    %v4025 = vpop.f32.mrf.mxu0
    %4026 = vmatprep.mubr.f32.mxu0 %v2726
    %4027 = vmatmul.mubr.f32.gmra.mxu0 %v1632
    %v4028 = vpop.f32.mrf.mxu0
    %v4029 = vadd.f32 %v3364, %v4028
    %v4030 = vpop.f32.mrf.mxu0
    %4031 = vmatprep.mubr.f32.mxu0 %v2729
    %4032 = vmatmul.mubr.f32.gmra.mxu0 %v1636
    %v4033 = vpop.f32.mrf.mxu0
    %v4034 = vadd.f32 %v3369, %v4033
    %v4035 = vpop.f32.mrf.mxu0
    %4036 = vmatprep.mubr.f32.mxu0 %v2732
    %4037 = vmatmul.mubr.f32.gmra.mxu0 %v1640
    %v4038 = vpop.f32.mrf.mxu0
    %v4039 = vadd.f32 %v3374, %v4038
    %v4040 = vpop.f32.mrf.mxu0
    %4041 = vmatprep.mubr.f32.mxu0 %v2735
    %4042 = vmatmul.mubr.f32.gmra.mxu0 %v1644
    %v4043 = vpop.f32.mrf.mxu0
    %v4044 = vadd.f32 %v3379, %v4043
    %v4045 = vpop.f32.mrf.mxu0
    %4046 = vmatprep.mubr.f32.mxu0 %v2738
    %4047 = vmatmul.mubr.f32.gmra.mxu0 %v1648
    %v4048 = vpop.f32.mrf.mxu0
    %v4049 = vadd.f32 %v3384, %v4048
    %v4050 = vpop.f32.mrf.mxu0
    %4051 = vmatprep.mubr.f32.mxu0 %v2741
    %4052 = vmatmul.mubr.f32.gmra.mxu0 %v1652
    %v4053 = vpop.f32.mrf.mxu0
    %v4054 = vadd.f32 %v3389, %v4053
    %v4055 = vpop.f32.mrf.mxu0
    %4056 = vmatprep.mubr.f32.mxu0 %v2744
    %4057 = vmatmul.mubr.f32.gmra.mxu0 %v1656
    %v4058 = vpop.f32.mrf.mxu0
    %v4059 = vadd.f32 %v3394, %v4058
    %v4060 = vpop.f32.mrf.mxu0
    %4061 = vmatprep.mubr.f32.mxu0 %v2747
    %4062 = vmatmul.mubr.f32.gmra.mxu0 %v1660
    %v4063 = vpop.f32.mrf.mxu0
    %v4064 = vadd.f32 %v3399, %v4063
    %v4065 = vpop.f32.mrf.mxu0
    %4066 = vmatprep.mubr.f32.mxu0 %v2750
    %4067 = vmatmul.mubr.f32.gmra.mxu0 %v1664
    %v4068 = vpop.f32.mrf.mxu0
    %v4069 = vadd.f32 %v3404, %v4068
    %v4070 = vpop.f32.mrf.mxu0
    %4071 = vmatprep.mubr.f32.mxu0 %v2753
    %4072 = vmatmul.mubr.f32.gmra.mxu0 %v1668
    %v4073 = vpop.f32.mrf.mxu0
    %v4074 = vadd.f32 %v3409, %v4073
    %v4075 = vpop.f32.mrf.mxu0
    %4076 = vmatprep.mubr.f32.mxu0 %v2756
    %4077 = vmatmul.mubr.f32.gmra.mxu0 %v1672
    %v4078 = vpop.f32.mrf.mxu0
    %v4079 = vadd.f32 %v3414, %v4078
    %v4080 = vpop.f32.mrf.mxu0
    %4081 = vmatprep.mubr.f32.mxu0 %v2759
    %4082 = vmatmul.mubr.f32.gmra.mxu0 %v1676
    %v4083 = vpop.f32.mrf.mxu0
    %v4084 = vadd.f32 %v3419, %v4083
    %v4085 = vpop.f32.mrf.mxu0
    %4086 = vmatprep.mubr.f32.mxu0 %v2762
    %4087 = vmatmul.mubr.f32.gmra.mxu0 %v1680
    %v4088 = vpop.f32.mrf.mxu0
    %v4089 = vadd.f32 %v3424, %v4088
    %v4090 = vpop.f32.mrf.mxu0
    %4091 = vmatprep.mubr.f32.mxu0 %v2765
    %4092 = vmatmul.mubr.f32.gmra.mxu0 %v1684
    %v4093 = vpop.f32.mrf.mxu0
    %v4094 = vadd.f32 %v3429, %v4093
    %v4095 = vpop.f32.mrf.mxu0
    %4096 = vdwg.mxu0
    %v4097 = vmul.f32 %v3499, 0.2
    %v4098 = vmul.f32 %v3504, 0.2
    %v4099 = vmul.f32 %v3509, 0.2
    %v4100 = vmul.f32 %v3514, 0.2
    %v4101 = vmul.f32 %v3519, 0.2
    %v4102 = vmul.f32 %v3524, 0.2
    %v4103 = vmul.f32 %v3529, 0.2
    %v4104 = vmul.f32 %v3534, 0.2
    %v4105 = vmul.f32 %v3539, 0.2
    %v4106 = vmul.f32 %v3544, 0.2
    %v4107 = vmul.f32 %v3549, 0.2
    %v4108 = vmul.f32 %v3554, 0.2
    %v4109 = vmul.f32 %v3559, 0.2
    %v4110 = vmul.f32 %v3564, 0.2
    %v4111 = vmul.f32 %v3569, 0.2
    %v4112 = vmul.f32 %v3574, 0.2
    %v4113 = vmul.f32 %v3579, 0.2
    %v4114 = vmul.f32 %v3584, 0.2
    %v4115 = vmul.f32 %v3589, 0.2
    %v4116 = vmul.f32 %v3594, 0.2
    %v4117 = vmul.f32 %v3599, 0.2
    %v4118 = vmul.f32 %v3604, 0.2
    %v4119 = vmul.f32 %v3609, 0.2
    %v4120 = vmul.f32 %v3614, 0.2
    %v4121 = vmul.f32 %v3619, 0.2
    %v4122 = vmul.f32 %v3624, 0.2
    %v4123 = vmul.f32 %v3629, 0.2
    %v4124 = vmul.f32 %v3634, 0.2
    %v4125 = vmul.f32 %v3639, 0.2
    %v4126 = vmul.f32 %v3644, 0.2
    %v4127 = vmul.f32 %v3649, 0.2
    %v4128 = vmul.f32 %v3654, 0.2
    %v4129 = vmul.f32 %v3659, 0.2
    %v4130 = vmul.f32 %v3664, 0.2
    %v4131 = vmul.f32 %v3669, 0.2
    %v4132 = vmul.f32 %v3674, 0.2
    %v4133 = vmul.f32 %v3679, 0.2
    %v4134 = vmul.f32 %v3684, 0.2
    %v4135 = vmul.f32 %v3689, 0.2
    %v4136 = vmul.f32 %v3694, 0.2
    %v4137 = vmul.f32 %v3699, 0.2
    %v4138 = vmul.f32 %v3704, 0.2
    %v4139 = vmul.f32 %v3709, 0.2
    %v4140 = vmul.f32 %v3714, 0.2
    %v4141 = vmul.f32 %v3719, 0.2
    %v4142 = vmul.f32 %v3724, 0.2
    %v4143 = vmul.f32 %v3729, 0.2
    %v4144 = vmul.f32 %v3734, 0.2
    %v4145 = vmul.f32 %v3739, 0.2
    %v4146 = vmul.f32 %v3744, 0.2
    %v4147 = vmul.f32 %v3749, 0.2
    %v4148 = vmul.f32 %v3754, 0.2
    %v4149 = vmul.f32 %v3759, 0.2
    %v4150 = vmul.f32 %v3764, 0.2
    %v4151 = vmul.f32 %v3769, 0.2
    %v4152 = vmul.f32 %v3774, 0.2
    %v4153 = vmul.f32 %v3779, 0.2
    %v4154 = vmul.f32 %v3784, 0.2
    %v4155 = vmul.f32 %v3789, 0.2
    %v4156 = vmul.f32 %v3794, 0.2
    %v4157 = vmul.f32 %v3799, 0.2
    %v4158 = vmul.f32 %v3804, 0.2
    %v4159 = vmul.f32 %v3809, 0.2
    %v4160 = vmul.f32 %v3814, 0.2
    %v4161 = vmul.f32 %v3819, 0.2
    %v4162 = vmul.f32 %v3824, 0.2
    %v4163 = vmul.f32 %v3829, 0.2
    %v4164 = vmul.f32 %v3834, 0.2
    %v4165 = vmul.f32 %v3839, 0.2
    %v4166 = vmul.f32 %v3844, 0.2
    %v4167 = vmul.f32 %v3849, 0.2
    %v4168 = vmul.f32 %v3854, 0.2
    %v4169 = vmul.f32 %v3859, 0.2
    %v4170 = vmul.f32 %v3864, 0.2
    %v4171 = vmul.f32 %v3869, 0.2
    %v4172 = vmul.f32 %v3874, 0.2
    %v4173 = vmul.f32 %v3879, 0.2
    %v4174 = vmul.f32 %v3884, 0.2
    %v4175 = vmul.f32 %v3889, 0.2
    %v4176 = vmul.f32 %v3894, 0.2
    %v4177 = vmul.f32 %v3899, 0.2
    %v4178 = vmul.f32 %v3904, 0.2
    %v4179 = vmul.f32 %v3909, 0.2
    %v4180 = vmul.f32 %v3914, 0.2
    %v4181 = vmul.f32 %v3919, 0.2
    %v4182 = vmul.f32 %v3924, 0.2
    %v4183 = vmul.f32 %v3929, 0.2
    %v4184 = vmul.f32 %v3934, 0.2
    %v4185 = vmul.f32 %v3939, 0.2
    %v4186 = vmul.f32 %v3944, 0.2
    %v4187 = vmul.f32 %v3949, 0.2
    %v4188 = vmul.f32 %v3954, 0.2
    %v4189 = vmul.f32 %v3959, 0.2
    %v4190 = vmul.f32 %v3964, 0.2
    %v4191 = vmul.f32 %v3969, 0.2
    %v4192 = vmul.f32 %v3974, 0.2
    %v4193 = vmul.f32 %v3979, 0.2
    %v4194 = vmul.f32 %v3984, 0.2
    %v4195 = vmul.f32 %v3989, 0.2
    %v4196 = vmul.f32 %v3994, 0.2
    %v4197 = vmul.f32 %v3999, 0.2
    %v4198 = vmul.f32 %v4004, 0.2
    %v4199 = vmul.f32 %v4009, 0.2
    %v4200 = vmul.f32 %v4014, 0.2
    %v4201 = vmul.f32 %v4019, 0.2
    %v4202 = vmul.f32 %v4024, 0.2
    %v4203 = vmul.f32 %v4029, 0.2
    %v4204 = vmul.f32 %v4034, 0.2
    %v4205 = vmul.f32 %v4039, 0.2
    %v4206 = vmul.f32 %v4044, 0.2
    %v4207 = vmul.f32 %v4049, 0.2
    %v4208 = vmul.f32 %v4054, 0.2
    %v4209 = vmul.f32 %v4059, 0.2
    %v4210 = vmul.f32 %v4064, 0.2
    %v4211 = vmul.f32 %v4069, 0.2
    %v4212 = vmul.f32 %v4074, 0.2
    %v4213 = vmul.f32 %v4079, 0.2
    %v4214 = vmul.f32 %v4084, 0.2
    %v4215 = vmul.f32 %v4089, 0.2
    %v4216 = vmul.f32 %v4094, 0.2
    %v4217 = vmax.f32 %v3499, %v4097
    %v4218 = vmax.f32 %v3504, %v4098
    %v4219 = vmax.f32 %v3509, %v4099
    %v4220 = vmax.f32 %v3514, %v4100
    %v4221 = vmax.f32 %v3519, %v4101
    %v4222 = vmax.f32 %v3524, %v4102
    %v4223 = vmax.f32 %v3529, %v4103
    %v4224 = vmax.f32 %v3534, %v4104
    %v4225 = vmax.f32 %v3539, %v4105
    %v4226 = vmax.f32 %v3544, %v4106
    %v4227 = vmax.f32 %v3549, %v4107
    %v4228 = vmax.f32 %v3554, %v4108
    %v4229 = vmax.f32 %v3559, %v4109
    %v4230 = vmax.f32 %v3564, %v4110
    %v4231 = vmax.f32 %v3569, %v4111
    %v4232 = vmax.f32 %v3574, %v4112
    %v4233 = vmax.f32 %v3579, %v4113
    %v4234 = vmax.f32 %v3584, %v4114
    %v4235 = vmax.f32 %v3589, %v4115
    %v4236 = vmax.f32 %v3594, %v4116
    %v4237 = vmax.f32 %v3599, %v4117
    %v4238 = vmax.f32 %v3604, %v4118
    %v4239 = vmax.f32 %v3609, %v4119
    %v4240 = vmax.f32 %v3614, %v4120
    %v4241 = vmax.f32 %v3619, %v4121
    %v4242 = vmax.f32 %v3624, %v4122
    %v4243 = vmax.f32 %v3629, %v4123
    %v4244 = vmax.f32 %v3634, %v4124
    %v4245 = vmax.f32 %v3639, %v4125
    %v4246 = vmax.f32 %v3644, %v4126
    %v4247 = vmax.f32 %v3649, %v4127
    %v4248 = vmax.f32 %v3654, %v4128
    %v4249 = vmax.f32 %v3659, %v4129
    %v4250 = vmax.f32 %v3664, %v4130
    %v4251 = vmax.f32 %v3669, %v4131
    %v4252 = vmax.f32 %v3674, %v4132
    %v4253 = vmax.f32 %v3679, %v4133
    %v4254 = vmax.f32 %v3684, %v4134
    %v4255 = vmax.f32 %v3689, %v4135
    %v4256 = vmax.f32 %v3694, %v4136
    %v4257 = vmax.f32 %v3699, %v4137
    %v4258 = vmax.f32 %v3704, %v4138
    %v4259 = vmax.f32 %v3709, %v4139
    %v4260 = vmax.f32 %v3714, %v4140
    %v4261 = vmax.f32 %v3719, %v4141
    %v4262 = vmax.f32 %v3724, %v4142
    %v4263 = vmax.f32 %v3729, %v4143
    %v4264 = vmax.f32 %v3734, %v4144
    %v4265 = vmax.f32 %v3739, %v4145
    %v4266 = vmax.f32 %v3744, %v4146
    %v4267 = vmax.f32 %v3749, %v4147
    %v4268 = vmax.f32 %v3754, %v4148
    %v4269 = vmax.f32 %v3759, %v4149
    %v4270 = vmax.f32 %v3764, %v4150
    %v4271 = vmax.f32 %v3769, %v4151
    %v4272 = vmax.f32 %v3774, %v4152
    %v4273 = vmax.f32 %v3779, %v4153
    %v4274 = vmax.f32 %v3784, %v4154
    %v4275 = vmax.f32 %v3789, %v4155
    %v4276 = vmax.f32 %v3794, %v4156
    %v4277 = vmax.f32 %v3799, %v4157
    %v4278 = vmax.f32 %v3804, %v4158
    %v4279 = vmax.f32 %v3809, %v4159
    %v4280 = vmax.f32 %v3814, %v4160
    %v4281 = vmax.f32 %v3819, %v4161
    %v4282 = vmax.f32 %v3824, %v4162
    %v4283 = vmax.f32 %v3829, %v4163
    %v4284 = vmax.f32 %v3834, %v4164
    %v4285 = vmax.f32 %v3839, %v4165
    %v4286 = vmax.f32 %v3844, %v4166
    %v4287 = vmax.f32 %v3849, %v4167
    %v4288 = vmax.f32 %v3854, %v4168
    %v4289 = vmax.f32 %v3859, %v4169
    %v4290 = vmax.f32 %v3864, %v4170
    %v4291 = vmax.f32 %v3869, %v4171
    %v4292 = vmax.f32 %v3874, %v4172
    %v4293 = vmax.f32 %v3879, %v4173
    %v4294 = vmax.f32 %v3884, %v4174
    %v4295 = vmax.f32 %v3889, %v4175
    %v4296 = vmax.f32 %v3894, %v4176
    %v4297 = vmax.f32 %v3899, %v4177
    %v4298 = vmax.f32 %v3904, %v4178
    %v4299 = vmax.f32 %v3909, %v4179
    %v4300 = vmax.f32 %v3914, %v4180
    %v4301 = vmax.f32 %v3919, %v4181
    %v4302 = vmax.f32 %v3924, %v4182
    %v4303 = vmax.f32 %v3929, %v4183
    %v4304 = vmax.f32 %v3934, %v4184
    %v4305 = vmax.f32 %v3939, %v4185
    %v4306 = vmax.f32 %v3944, %v4186
    %v4307 = vmax.f32 %v3949, %v4187
    %v4308 = vmax.f32 %v3954, %v4188
    %v4309 = vmax.f32 %v3959, %v4189
    %v4310 = vmax.f32 %v3964, %v4190
    %v4311 = vmax.f32 %v3969, %v4191
    %v4312 = vmax.f32 %v3974, %v4192
    %v4313 = vmax.f32 %v3979, %v4193
    %v4314 = vmax.f32 %v3984, %v4194
    %v4315 = vmax.f32 %v3989, %v4195
    %v4316 = vmax.f32 %v3994, %v4196
    %v4317 = vmax.f32 %v3999, %v4197
    %v4318 = vmax.f32 %v4004, %v4198
    %v4319 = vmax.f32 %v4009, %v4199
    %v4320 = vmax.f32 %v4014, %v4200
    %v4321 = vmax.f32 %v4019, %v4201
    %v4322 = vmax.f32 %v4024, %v4202
    %v4323 = vmax.f32 %v4029, %v4203
    %v4324 = vmax.f32 %v4034, %v4204
    %v4325 = vmax.f32 %v4039, %v4205
    %v4326 = vmax.f32 %v4044, %v4206
    %v4327 = vmax.f32 %v4049, %v4207
    %v4328 = vmax.f32 %v4054, %v4208
    %v4329 = vmax.f32 %v4059, %v4209
    %v4330 = vmax.f32 %v4064, %v4210
    %v4331 = vmax.f32 %v4069, %v4211
    %v4332 = vmax.f32 %v4074, %v4212
    %v4333 = vmax.f32 %v4079, %v4213
    %v4334 = vmax.f32 %v4084, %v4214
    %v4335 = vmax.f32 %v4089, %v4215
    %v4336 = vmax.f32 %v4094, %v4216
    %v4337 = vld [vmem:[%s6] sm:$0xff]
    %v4338 = vld [vmem:[%s6 + $0x8] sm:$0xff]
    %v4339 = vld [vmem:[%s6 + $0x10] sm:$0xff]
    %v4340 = vld [vmem:[%s6 + $0x18] sm:$0xff]
    %v4341 = vld [vmem:[%s6 + $0x20] sm:$0xff]
    %v4342 = vld [vmem:[%s6 + $0x28] sm:$0xff]
    %v4343 = vld [vmem:[%s6 + $0x30] sm:$0xff]
    %v4344 = vld [vmem:[%s6 + $0x38] sm:$0xff]
    %v4345 = vld [vmem:[%s6 + $0x40] sm:$0xff]
    %v4346 = vld [vmem:[%s6 + $0x48] sm:$0xff]
    %v4347 = vld [vmem:[%s6 + $0x50] sm:$0xff]
    %v4348 = vld [vmem:[%s6 + $0x58] sm:$0xff]
    %v4349 = vld [vmem:[%s6 + $0x60] sm:$0xff]
    %v4350 = vld [vmem:[%s6 + $0x68] sm:$0xff]
    %v4351 = vld [vmem:[%s6 + $0x70] sm:$0xff]
    %v4352 = vld [vmem:[%s6 + $0x78] sm:$0xff]
    %v4353 = vld [vmem:[%s6 + $0x80] sm:$0xff]
    %v4354 = vld [vmem:[%s6 + $0x88] sm:$0xff]
    %v4355 = vld [vmem:[%s6 + $0x90] sm:$0xff]
    %v4356 = vld [vmem:[%s6 + $0x98] sm:$0xff]
    %v4357 = vld [vmem:[%s6 + $0xa0] sm:$0xff]
    %v4358 = vld [vmem:[%s6 + $0xa8] sm:$0xff]
    %v4359 = vld [vmem:[%s6 + $0xb0] sm:$0xff]
    %v4360 = vld [vmem:[%s6 + $0xb8] sm:$0xff]
    %v4361 = vld [vmem:[%s6 + $0xc0] sm:$0xff]
    %v4362 = vld [vmem:[%s6 + $0xc8] sm:$0xff]
    %v4363 = vld [vmem:[%s6 + $0xd0] sm:$0xff]
    %v4364 = vld [vmem:[%s6 + $0xd8] sm:$0xff]
    %v4365 = vld [vmem:[%s6 + $0xe0] sm:$0xff]
    %v4366 = vld [vmem:[%s6 + $0xe8] sm:$0xff]
    %v4367 = vld [vmem:[%s6 + $0xf0] sm:$0xff]
    %v4368 = vld [vmem:[%s6 + $0xf8] sm:$0xff]
    %v4369 = vld [vmem:[%s6 + $0x100] sm:$0xff]
    %v4370 = vld [vmem:[%s6 + $0x108] sm:$0xff]
    %v4371 = vld [vmem:[%s6 + $0x110] sm:$0xff]
    %v4372 = vld [vmem:[%s6 + $0x118] sm:$0xff]
    %v4373 = vld [vmem:[%s6 + $0x120] sm:$0xff]
    %v4374 = vld [vmem:[%s6 + $0x128] sm:$0xff]
    %v4375 = vld [vmem:[%s6 + $0x130] sm:$0xff]
    %v4376 = vld [vmem:[%s6 + $0x138] sm:$0xff]
    %v4377 = vld [vmem:[%s6 + $0x140] sm:$0xff]
    %v4378 = vld [vmem:[%s6 + $0x148] sm:$0xff]
    %v4379 = vld [vmem:[%s6 + $0x150] sm:$0xff]
    %v4380 = vld [vmem:[%s6 + $0x158] sm:$0xff]
    %v4381 = vld [vmem:[%s6 + $0x160] sm:$0xff]
    %v4382 = vld [vmem:[%s6 + $0x168] sm:$0xff]
    %v4383 = vld [vmem:[%s6 + $0x170] sm:$0xff]
    %v4384 = vld [vmem:[%s6 + $0x178] sm:$0xff]
    %v4385 = vld [vmem:[%s6 + $0x180] sm:$0xff]
    %v4386 = vld [vmem:[%s6 + $0x188] sm:$0xff]
    %v4387 = vld [vmem:[%s6 + $0x190] sm:$0xff]
    %v4388 = vld [vmem:[%s6 + $0x198] sm:$0xff]
    %v4389 = vld [vmem:[%s6 + $0x1a0] sm:$0xff]
    %v4390 = vld [vmem:[%s6 + $0x1a8] sm:$0xff]
    %v4391 = vld [vmem:[%s6 + $0x1b0] sm:$0xff]
    %v4392 = vld [vmem:[%s6 + $0x1b8] sm:$0xff]
    %v4393 = vld [vmem:[%s6 + $0x1c0] sm:$0xff]
    %v4394 = vld [vmem:[%s6 + $0x1c8] sm:$0xff]
    %v4395 = vld [vmem:[%s6 + $0x1d0] sm:$0xff]
    %v4396 = vld [vmem:[%s6 + $0x1d8] sm:$0xff]
    %v4397 = vld [vmem:[%s6 + $0x1e0] sm:$0xff]
    %v4398 = vld [vmem:[%s6 + $0x1e8] sm:$0xff]
    %v4399 = vld [vmem:[%s6 + $0x1f0] sm:$0xff]
    %v4400 = vld [vmem:[%s6 + $0x1f8] sm:$0xff]
    %v4401 = vld [vmem:[%s6 + $0x200] sm:$0xff]
    %v4402 = vld [vmem:[%s6 + $0x208] sm:$0xff]
    %v4403 = vld [vmem:[%s6 + $0x210] sm:$0xff]
    %v4404 = vld [vmem:[%s6 + $0x218] sm:$0xff]
    %v4405 = vld [vmem:[%s6 + $0x220] sm:$0xff]
    %v4406 = vld [vmem:[%s6 + $0x228] sm:$0xff]
    %v4407 = vld [vmem:[%s6 + $0x230] sm:$0xff]
    %v4408 = vld [vmem:[%s6 + $0x238] sm:$0xff]
    %v4409 = vld [vmem:[%s6 + $0x240] sm:$0xff]
    %v4410 = vld [vmem:[%s6 + $0x248] sm:$0xff]
    %v4411 = vld [vmem:[%s6 + $0x250] sm:$0xff]
    %v4412 = vld [vmem:[%s6 + $0x258] sm:$0xff]
    %v4413 = vld [vmem:[%s6 + $0x260] sm:$0xff]
    %v4414 = vld [vmem:[%s6 + $0x268] sm:$0xff]
    %v4415 = vld [vmem:[%s6 + $0x270] sm:$0xff]
    %v4416 = vld [vmem:[%s6 + $0x278] sm:$0xff]
    %v4417 = vld [vmem:[%s6 + $0x280] sm:$0xff]
    %v4418 = vld [vmem:[%s6 + $0x288] sm:$0xff]
    %v4419 = vld [vmem:[%s6 + $0x290] sm:$0xff]
    %v4420 = vld [vmem:[%s6 + $0x298] sm:$0xff]
    %v4421 = vld [vmem:[%s6 + $0x2a0] sm:$0xff]
    %v4422 = vld [vmem:[%s6 + $0x2a8] sm:$0xff]
    %v4423 = vld [vmem:[%s6 + $0x2b0] sm:$0xff]
    %v4424 = vld [vmem:[%s6 + $0x2b8] sm:$0xff]
    %v4425 = vld [vmem:[%s6 + $0x2c0] sm:$0xff]
    %v4426 = vld [vmem:[%s6 + $0x2c8] sm:$0xff]
    %v4427 = vld [vmem:[%s6 + $0x2d0] sm:$0xff]
    %v4428 = vld [vmem:[%s6 + $0x2d8] sm:$0xff]
    %v4429 = vld [vmem:[%s6 + $0x2e0] sm:$0xff]
    %v4430 = vld [vmem:[%s6 + $0x2e8] sm:$0xff]
    %v4431 = vld [vmem:[%s6 + $0x2f0] sm:$0xff]
    %v4432 = vld [vmem:[%s6 + $0x2f8] sm:$0xff]
    %v4433 = vld [vmem:[%s6 + $0x300] sm:$0xff]
    %v4434 = vld [vmem:[%s6 + $0x308] sm:$0xff]
    %v4435 = vld [vmem:[%s6 + $0x310] sm:$0xff]
    %v4436 = vld [vmem:[%s6 + $0x318] sm:$0xff]
    %v4437 = vld [vmem:[%s6 + $0x320] sm:$0xff]
    %v4438 = vld [vmem:[%s6 + $0x328] sm:$0xff]
    %v4439 = vld [vmem:[%s6 + $0x330] sm:$0xff]
    %v4440 = vld [vmem:[%s6 + $0x338] sm:$0xff]
    %v4441 = vld [vmem:[%s6 + $0x340] sm:$0xff]
    %v4442 = vld [vmem:[%s6 + $0x348] sm:$0xff]
    %v4443 = vld [vmem:[%s6 + $0x350] sm:$0xff]
    %v4444 = vld [vmem:[%s6 + $0x358] sm:$0xff]
    %v4445 = vld [vmem:[%s6 + $0x360] sm:$0xff]
    %v4446 = vld [vmem:[%s6 + $0x368] sm:$0xff]
    %v4447 = vld [vmem:[%s6 + $0x370] sm:$0xff]
    %v4448 = vld [vmem:[%s6 + $0x378] sm:$0xff]
    %v4449 = vld [vmem:[%s6 + $0x380] sm:$0xff]
    %v4450 = vld [vmem:[%s6 + $0x388] sm:$0xff]
    %v4451 = vld [vmem:[%s6 + $0x390] sm:$0xff]
    %v4452 = vld [vmem:[%s6 + $0x398] sm:$0xff]
    %v4453 = vld [vmem:[%s6 + $0x3a0] sm:$0xff]
    %v4454 = vld [vmem:[%s6 + $0x3a8] sm:$0xff]
    %v4455 = vld [vmem:[%s6 + $0x3b0] sm:$0xff]
    %v4456 = vld [vmem:[%s6 + $0x3b8] sm:$0xff]
    %v4457 = vld [vmem:[%s6 + $0x3c0] sm:$0xff]
    %v4458 = vld [vmem:[%s6 + $0x3c8] sm:$0xff]
    %v4459 = vld [vmem:[%s6 + $0x3d0] sm:$0xff]
    %v4460 = vld [vmem:[%s6 + $0x3d8] sm:$0xff]
    %v4461 = vld [vmem:[%s6 + $0x3e0] sm:$0xff]
    %v4462 = vld [vmem:[%s6 + $0x3e8] sm:$0xff]
    %v4463 = vld [vmem:[%s6 + $0x3f0] sm:$0xff]
    %v4464 = vld [vmem:[%s6 + $0x3f8] sm:$0xff]
    %v4465 = vld [vmem:[%s6 + $0x400] sm:$0xff]
    %v4466 = vld [vmem:[%s6 + $0x408] sm:$0xff]
    %v4467 = vld [vmem:[%s6 + $0x410] sm:$0xff]
    %v4468 = vld [vmem:[%s6 + $0x418] sm:$0xff]
    %v4469 = vld [vmem:[%s6 + $0x420] sm:$0xff]
    %v4470 = vld [vmem:[%s6 + $0x428] sm:$0xff]
    %v4471 = vld [vmem:[%s6 + $0x430] sm:$0xff]
    %v4472 = vld [vmem:[%s6 + $0x438] sm:$0xff]
    %v4473 = vld [vmem:[%s6 + $0x440] sm:$0xff]
    %v4474 = vld [vmem:[%s6 + $0x448] sm:$0xff]
    %v4475 = vld [vmem:[%s6 + $0x450] sm:$0xff]
    %v4476 = vld [vmem:[%s6 + $0x458] sm:$0xff]
    %v4477 = vld [vmem:[%s6 + $0x460] sm:$0xff]
    %v4478 = vld [vmem:[%s6 + $0x468] sm:$0xff]
    %v4479 = vld [vmem:[%s6 + $0x470] sm:$0xff]
    %v4480 = vld [vmem:[%s6 + $0x478] sm:$0xff]
    %v4481 = vld [vmem:[%s6 + $0x480] sm:$0xff]
    %v4482 = vld [vmem:[%s6 + $0x488] sm:$0xff]
    %v4483 = vld [vmem:[%s6 + $0x490] sm:$0xff]
    %v4484 = vld [vmem:[%s6 + $0x498] sm:$0xff]
    %v4485 = vld [vmem:[%s6 + $0x4a0] sm:$0xff]
    %v4486 = vld [vmem:[%s6 + $0x4a8] sm:$0xff]
    %v4487 = vld [vmem:[%s6 + $0x4b0] sm:$0xff]
    %v4488 = vld [vmem:[%s6 + $0x4b8] sm:$0xff]
    %v4489 = vld [vmem:[%s6 + $0x4c0] sm:$0xff]
    %v4490 = vld [vmem:[%s6 + $0x4c8] sm:$0xff]
    %v4491 = vld [vmem:[%s6 + $0x4d0] sm:$0xff]
    %v4492 = vld [vmem:[%s6 + $0x4d8] sm:$0xff]
    %v4493 = vld [vmem:[%s6 + $0x4e0] sm:$0xff]
    %v4494 = vld [vmem:[%s6 + $0x4e8] sm:$0xff]
    %v4495 = vld [vmem:[%s6 + $0x4f0] sm:$0xff]
    %v4496 = vld [vmem:[%s6 + $0x4f8] sm:$0xff]
    %v4497 = vld [vmem:[%s6 + $0x500] sm:$0xff]
    %v4498 = vld [vmem:[%s6 + $0x508] sm:$0xff]
    %v4499 = vld [vmem:[%s6 + $0x510] sm:$0xff]
    %v4500 = vld [vmem:[%s6 + $0x518] sm:$0xff]
    %v4501 = vld [vmem:[%s6 + $0x520] sm:$0xff]
    %v4502 = vld [vmem:[%s6 + $0x528] sm:$0xff]
    %v4503 = vld [vmem:[%s6 + $0x530] sm:$0xff]
    %v4504 = vld [vmem:[%s6 + $0x538] sm:$0xff]
    %v4505 = vld [vmem:[%s6 + $0x540] sm:$0xff]
    %v4506 = vld [vmem:[%s6 + $0x548] sm:$0xff]
    %v4507 = vld [vmem:[%s6 + $0x550] sm:$0xff]
    %v4508 = vld [vmem:[%s6 + $0x558] sm:$0xff]
    %v4509 = vld [vmem:[%s6 + $0x560] sm:$0xff]
    %v4510 = vld [vmem:[%s6 + $0x568] sm:$0xff]
    %v4511 = vld [vmem:[%s6 + $0x570] sm:$0xff]
    %v4512 = vld [vmem:[%s6 + $0x578] sm:$0xff]
    %v4513 = vld [vmem:[%s6 + $0x580] sm:$0xff]
    %v4514 = vld [vmem:[%s6 + $0x588] sm:$0xff]
    %v4515 = vld [vmem:[%s6 + $0x590] sm:$0xff]
    %v4516 = vld [vmem:[%s6 + $0x598] sm:$0xff]
    %v4517 = vld [vmem:[%s6 + $0x5a0] sm:$0xff]
    %v4518 = vld [vmem:[%s6 + $0x5a8] sm:$0xff]
    %v4519 = vld [vmem:[%s6 + $0x5b0] sm:$0xff]
    %v4520 = vld [vmem:[%s6 + $0x5b8] sm:$0xff]
    %v4521 = vld [vmem:[%s6 + $0x5c0] sm:$0xff]
    %v4522 = vld [vmem:[%s6 + $0x5c8] sm:$0xff]
    %v4523 = vld [vmem:[%s6 + $0x5d0] sm:$0xff]
    %v4524 = vld [vmem:[%s6 + $0x5d8] sm:$0xff]
    %v4525 = vld [vmem:[%s6 + $0x5e0] sm:$0xff]
    %v4526 = vld [vmem:[%s6 + $0x5e8] sm:$0xff]
    %v4527 = vld [vmem:[%s6 + $0x5f0] sm:$0xff]
    %v4528 = vld [vmem:[%s6 + $0x5f8] sm:$0xff]
    %v4529 = vld [vmem:[%s6 + $0x600] sm:$0xff]
    %v4530 = vld [vmem:[%s6 + $0x608] sm:$0xff]
    %v4531 = vld [vmem:[%s6 + $0x610] sm:$0xff]
    %v4532 = vld [vmem:[%s6 + $0x618] sm:$0xff]
    %v4533 = vld [vmem:[%s6 + $0x620] sm:$0xff]
    %v4534 = vld [vmem:[%s6 + $0x628] sm:$0xff]
    %v4535 = vld [vmem:[%s6 + $0x630] sm:$0xff]
    %v4536 = vld [vmem:[%s6 + $0x638] sm:$0xff]
    %v4537 = vld [vmem:[%s6 + $0x640] sm:$0x7]
    %v4538 = vld [vmem:[%s6 + $0x648] sm:$0x7]
    %v4539 = vld [vmem:[%s6 + $0x650] sm:$0x7]
    %v4540 = vld [vmem:[%s6 + $0x658] sm:$0x7]
    %v4541 = vld [vmem:[%s6 + $0x660] sm:$0x7]
    %v4542 = vld [vmem:[%s6 + $0x668] sm:$0x7]
    %v4543 = vld [vmem:[%s6 + $0x670] sm:$0x7]
    %v4544 = vld [vmem:[%s6 + $0x678] sm:$0x7]
    %s4545 = sld [smem:[#allocation3]]
    %v4546 = vstv %s4545
    %v4548 = vsel %vm520, %v4344, 0
    %v4551 = vsel %vm520, %v4352, 0
    %v4554 = vsel %vm520, %v4360, 0
    %v4557 = vsel %vm520, %v4368, 0
    %v4560 = vsel %vm520, %v4376, 0
    %v4563 = vsel %vm520, %v4384, 0
    %v4566 = vsel %vm520, %v4392, 0
    %v4569 = vsel %vm520, %v4400, 0
    %v4572 = vsel %vm520, %v4408, 0
    %v4575 = vsel %vm520, %v4416, 0
    %v4578 = vsel %vm520, %v4424, 0
    %v4581 = vsel %vm520, %v4432, 0
    %v4584 = vsel %vm520, %v4440, 0
    %v4587 = vsel %vm520, %v4448, 0
    %v4590 = vsel %vm520, %v4456, 0
    %v4593 = vsel %vm520, %v4464, 0
    %v4596 = vsel %vm520, %v4472, 0
    %v4599 = vsel %vm520, %v4480, 0
    %v4602 = vsel %vm520, %v4488, 0
    %v4605 = vsel %vm520, %v4496, 0
    %v4608 = vsel %vm520, %v4504, 0
    %v4611 = vsel %vm520, %v4512, 0
    %v4614 = vsel %vm520, %v4520, 0
    %v4617 = vsel %vm520, %v4528, 0
    %v4620 = vsel %vm520, %v4536, 0
    %v4623 = vsel %vm520, %v4544, 0
    %4625 = vmatprep.subr.mxu0 0.0
    %4626 = vmatpush1.msra.mxu0 %v4232
    %4627 = vmatprep.subr.mxu0 0.0
    %4628 = vmatpush1.msra.mxu0 %v4231
    %4629 = vmatprep.subr.mxu0 0.0
    %4630 = vmatpush1.msra.mxu0 %v4230
    %4631 = vmatprep.subr.mxu0 0.0
    %4632 = vmatpush1.msra.mxu0 %v4229
    %4633 = vmatprep.subr.mxu0 0.0
    %4634 = vmatpush1.msra.mxu0 %v4228
    %4635 = vmatprep.subr.mxu0 0.0
    %4636 = vmatpush1.msra.mxu0 %v4227
    %4637 = vmatprep.subr.mxu0 0.0
    %4638 = vmatpush1.msra.mxu0 %v4226
    %4639 = vmatprep.subr.mxu0 0.0
    %4640 = vmatpush1.msra.mxu0 %v4225
    %4641 = vmatprep.subr.mxu0 0.0
    %4642 = vmatpush1.msra.mxu0 %v4224
    %4643 = vmatprep.subr.mxu0 0.0
    %4644 = vmatpush1.msra.mxu0 %v4223
    %4645 = vmatprep.subr.mxu0 0.0
    %4646 = vmatpush1.msra.mxu0 %v4222
    %4647 = vmatprep.subr.mxu0 0.0
    %4648 = vmatpush1.msra.mxu0 %v4221
    %4649 = vmatprep.subr.mxu0 0.0
    %4650 = vmatpush1.msra.mxu0 %v4220
    %4651 = vmatprep.subr.mxu0 0.0
    %4652 = vmatpush1.msra.mxu0 %v4219
    %4653 = vmatprep.subr.mxu0 0.0
    %4654 = vmatpush1.msra.mxu0 %v4218
    %4655 = vmatprep.subr.mxu0 0.0
    %4656 = vmatpush1.msra.mxu0 %v4217
    %4657 = vmatprep.subr.mxu0 0.0
    %4658 = vmatpush2.msra.mxu0 %v4248
    %4659 = vmatprep.subr.mxu0 0.0
    %4660 = vmatpush2.msra.mxu0 %v4247
    %4661 = vmatprep.subr.mxu0 0.0
    %4662 = vmatpush2.msra.mxu0 %v4246
    %4663 = vmatprep.subr.mxu0 0.0
    %4664 = vmatpush2.msra.mxu0 %v4245
    %4665 = vmatprep.subr.mxu0 0.0
    %4666 = vmatpush2.msra.mxu0 %v4244
    %4667 = vmatprep.subr.mxu0 0.0
    %4668 = vmatpush2.msra.mxu0 %v4243
    %4669 = vmatprep.subr.mxu0 0.0
    %4670 = vmatpush2.msra.mxu0 %v4242
    %4671 = vmatprep.subr.mxu0 0.0
    %4672 = vmatpush2.msra.mxu0 %v4241
    %4673 = vmatprep.subr.mxu0 0.0
    %4674 = vmatpush2.msra.mxu0 %v4240
    %4675 = vmatprep.subr.mxu0 0.0
    %4676 = vmatpush2.msra.mxu0 %v4239
    %4677 = vmatprep.subr.mxu0 0.0
    %4678 = vmatpush2.msra.mxu0 %v4238
    %4679 = vmatprep.subr.mxu0 0.0
    %4680 = vmatpush2.msra.mxu0 %v4237
    %4681 = vmatprep.subr.mxu0 0.0
    %4682 = vmatpush2.msra.mxu0 %v4236
    %4683 = vmatprep.subr.mxu0 0.0
    %4684 = vmatpush2.msra.mxu0 %v4235
    %4685 = vmatprep.subr.mxu0 0.0
    %4686 = vmatpush2.msra.mxu0 %v4234
    %4687 = vmatprep.subr.mxu0 0.0
    %4688 = vmatpush2.msra.mxu0 %v4233
    %4689 = vmatprep.mubr.f32.mxu0 %v4338
    %4690 = vmatmul.mubr.f32.gmra.mxu0 %v4337
    %v4691 = vpop.f32.mrf.mxu0
    %v4692 = vadd.f32 %v4546, %v4691
    %v4693 = vpop.f32.mrf.mxu0
    %4694 = vmatprep.mubr.f32.mxu0 %v4346
    %4695 = vmatmul.mubr.f32.gmra.mxu0 %v4345
    %v4696 = vpop.f32.mrf.mxu0
    %v4697 = vadd.f32 %v4546, %v4696
    %v4698 = vpop.f32.mrf.mxu0
    %4699 = vmatprep.mubr.f32.mxu0 %v4354
    %4700 = vmatmul.mubr.f32.gmra.mxu0 %v4353
    %v4701 = vpop.f32.mrf.mxu0
    %v4702 = vadd.f32 %v4546, %v4701
    %v4703 = vpop.f32.mrf.mxu0
    %4704 = vmatprep.mubr.f32.mxu0 %v4362
    %4705 = vmatmul.mubr.f32.gmra.mxu0 %v4361
    %v4706 = vpop.f32.mrf.mxu0
    %v4707 = vadd.f32 %v4546, %v4706
    %v4708 = vpop.f32.mrf.mxu0
    %4709 = vmatprep.mubr.f32.mxu0 %v4370
    %4710 = vmatmul.mubr.f32.gmra.mxu0 %v4369
    %v4711 = vpop.f32.mrf.mxu0
    %v4712 = vadd.f32 %v4546, %v4711
    %v4713 = vpop.f32.mrf.mxu0
    %4714 = vmatprep.mubr.f32.mxu0 %v4378
    %4715 = vmatmul.mubr.f32.gmra.mxu0 %v4377
    %v4716 = vpop.f32.mrf.mxu0
    %v4717 = vadd.f32 %v4546, %v4716
    %v4718 = vpop.f32.mrf.mxu0
    %4719 = vmatprep.mubr.f32.mxu0 %v4386
    %4720 = vmatmul.mubr.f32.gmra.mxu0 %v4385
    %v4721 = vpop.f32.mrf.mxu0
    %v4722 = vadd.f32 %v4546, %v4721
    %v4723 = vpop.f32.mrf.mxu0
    %4724 = vmatprep.mubr.f32.mxu0 %v4394
    %4725 = vmatmul.mubr.f32.gmra.mxu0 %v4393
    %v4726 = vpop.f32.mrf.mxu0
    %v4727 = vadd.f32 %v4546, %v4726
    %v4728 = vpop.f32.mrf.mxu0
    %4729 = vmatprep.mubr.f32.mxu0 %v4402
    %4730 = vmatmul.mubr.f32.gmra.mxu0 %v4401
    %v4731 = vpop.f32.mrf.mxu0
    %v4732 = vadd.f32 %v4546, %v4731
    %v4733 = vpop.f32.mrf.mxu0
    %4734 = vmatprep.mubr.f32.mxu0 %v4410
    %4735 = vmatmul.mubr.f32.gmra.mxu0 %v4409
    %v4736 = vpop.f32.mrf.mxu0
    %v4737 = vadd.f32 %v4546, %v4736
    %v4738 = vpop.f32.mrf.mxu0
    %4739 = vmatprep.mubr.f32.mxu0 %v4418
    %4740 = vmatmul.mubr.f32.gmra.mxu0 %v4417
    %v4741 = vpop.f32.mrf.mxu0
    %v4742 = vadd.f32 %v4546, %v4741
    %v4743 = vpop.f32.mrf.mxu0
    %4744 = vmatprep.mubr.f32.mxu0 %v4426
    %4745 = vmatmul.mubr.f32.gmra.mxu0 %v4425
    %v4746 = vpop.f32.mrf.mxu0
    %v4747 = vadd.f32 %v4546, %v4746
    %v4748 = vpop.f32.mrf.mxu0
    %4749 = vmatprep.mubr.f32.mxu0 %v4434
    %4750 = vmatmul.mubr.f32.gmra.mxu0 %v4433
    %v4751 = vpop.f32.mrf.mxu0
    %v4752 = vadd.f32 %v4546, %v4751
    %v4753 = vpop.f32.mrf.mxu0
    %4754 = vmatprep.mubr.f32.mxu0 %v4442
    %4755 = vmatmul.mubr.f32.gmra.mxu0 %v4441
    %v4756 = vpop.f32.mrf.mxu0
    %v4757 = vadd.f32 %v4546, %v4756
    %v4758 = vpop.f32.mrf.mxu0
    %4759 = vmatprep.mubr.f32.mxu0 %v4450
    %4760 = vmatmul.mubr.f32.gmra.mxu0 %v4449
    %v4761 = vpop.f32.mrf.mxu0
    %v4762 = vadd.f32 %v4546, %v4761
    %v4763 = vpop.f32.mrf.mxu0
    %4764 = vmatprep.mubr.f32.mxu0 %v4458
    %4765 = vmatmul.mubr.f32.gmra.mxu0 %v4457
    %v4766 = vpop.f32.mrf.mxu0
    %v4767 = vadd.f32 %v4546, %v4766
    %v4768 = vpop.f32.mrf.mxu0
    %4769 = vmatprep.mubr.f32.mxu0 %v4466
    %4770 = vmatmul.mubr.f32.gmra.mxu0 %v4465
    %v4771 = vpop.f32.mrf.mxu0
    %v4772 = vadd.f32 %v4546, %v4771
    %v4773 = vpop.f32.mrf.mxu0
    %4774 = vmatprep.mubr.f32.mxu0 %v4474
    %4775 = vmatmul.mubr.f32.gmra.mxu0 %v4473
    %v4776 = vpop.f32.mrf.mxu0
    %v4777 = vadd.f32 %v4546, %v4776
    %v4778 = vpop.f32.mrf.mxu0
    %4779 = vmatprep.mubr.f32.mxu0 %v4482
    %4780 = vmatmul.mubr.f32.gmra.mxu0 %v4481
    %v4781 = vpop.f32.mrf.mxu0
    %v4782 = vadd.f32 %v4546, %v4781
    %v4783 = vpop.f32.mrf.mxu0
    %4784 = vmatprep.mubr.f32.mxu0 %v4490
    %4785 = vmatmul.mubr.f32.gmra.mxu0 %v4489
    %v4786 = vpop.f32.mrf.mxu0
    %v4787 = vadd.f32 %v4546, %v4786
    %v4788 = vpop.f32.mrf.mxu0
    %4789 = vmatprep.mubr.f32.mxu0 %v4498
    %4790 = vmatmul.mubr.f32.gmra.mxu0 %v4497
    %v4791 = vpop.f32.mrf.mxu0
    %v4792 = vadd.f32 %v4546, %v4791
    %v4793 = vpop.f32.mrf.mxu0
    %4794 = vmatprep.mubr.f32.mxu0 %v4506
    %4795 = vmatmul.mubr.f32.gmra.mxu0 %v4505
    %v4796 = vpop.f32.mrf.mxu0
    %v4797 = vadd.f32 %v4546, %v4796
    %v4798 = vpop.f32.mrf.mxu0
    %4799 = vmatprep.mubr.f32.mxu0 %v4514
    %4800 = vmatmul.mubr.f32.gmra.mxu0 %v4513
    %v4801 = vpop.f32.mrf.mxu0
    %v4802 = vadd.f32 %v4546, %v4801
    %v4803 = vpop.f32.mrf.mxu0
    %4804 = vmatprep.mubr.f32.mxu0 %v4522
    %4805 = vmatmul.mubr.f32.gmra.mxu0 %v4521
    %v4806 = vpop.f32.mrf.mxu0
    %v4807 = vadd.f32 %v4546, %v4806
    %v4808 = vpop.f32.mrf.mxu0
    %4809 = vmatprep.mubr.f32.mxu0 %v4530
    %4810 = vmatmul.mubr.f32.gmra.mxu0 %v4529
    %v4811 = vpop.f32.mrf.mxu0
    %v4812 = vadd.f32 %v4546, %v4811
    %v4813 = vpop.f32.mrf.mxu0
    %4814 = vmatprep.mubr.f32.mxu0 %v4538
    %4815 = vmatmul.mubr.f32.gmra.mxu0 %v4537
    %v4816 = vpop.f32.mrf.mxu0
    %v4817 = vadd.f32 %v4546, %v4816
    %v4818 = vpop.f32.mrf.mxu0
    %4819 = vdwg.mxu0
    %4820 = vmatprep.subr.mxu0 0.0
    %4821 = vmatpush1.msra.mxu0 %v4264
    %4822 = vmatprep.subr.mxu0 0.0
    %4823 = vmatpush1.msra.mxu0 %v4263
    %4824 = vmatprep.subr.mxu0 0.0
    %4825 = vmatpush1.msra.mxu0 %v4262
    %4826 = vmatprep.subr.mxu0 0.0
    %4827 = vmatpush1.msra.mxu0 %v4261
    %4828 = vmatprep.subr.mxu0 0.0
    %4829 = vmatpush1.msra.mxu0 %v4260
    %4830 = vmatprep.subr.mxu0 0.0
    %4831 = vmatpush1.msra.mxu0 %v4259
    %4832 = vmatprep.subr.mxu0 0.0
    %4833 = vmatpush1.msra.mxu0 %v4258
    %4834 = vmatprep.subr.mxu0 0.0
    %4835 = vmatpush1.msra.mxu0 %v4257
    %4836 = vmatprep.subr.mxu0 0.0
    %4837 = vmatpush1.msra.mxu0 %v4256
    %4838 = vmatprep.subr.mxu0 0.0
    %4839 = vmatpush1.msra.mxu0 %v4255
    %4840 = vmatprep.subr.mxu0 0.0
    %4841 = vmatpush1.msra.mxu0 %v4254
    %4842 = vmatprep.subr.mxu0 0.0
    %4843 = vmatpush1.msra.mxu0 %v4253
    %4844 = vmatprep.subr.mxu0 0.0
    %4845 = vmatpush1.msra.mxu0 %v4252
    %4846 = vmatprep.subr.mxu0 0.0
    %4847 = vmatpush1.msra.mxu0 %v4251
    %4848 = vmatprep.subr.mxu0 0.0
    %4849 = vmatpush1.msra.mxu0 %v4250
    %4850 = vmatprep.subr.mxu0 0.0
    %4851 = vmatpush1.msra.mxu0 %v4249
    %4852 = vmatprep.subr.mxu0 0.0
    %4853 = vmatpush2.msra.mxu0 %v4280
    %4854 = vmatprep.subr.mxu0 0.0
    %4855 = vmatpush2.msra.mxu0 %v4279
    %4856 = vmatprep.subr.mxu0 0.0
    %4857 = vmatpush2.msra.mxu0 %v4278
    %4858 = vmatprep.subr.mxu0 0.0
    %4859 = vmatpush2.msra.mxu0 %v4277
    %4860 = vmatprep.subr.mxu0 0.0
    %4861 = vmatpush2.msra.mxu0 %v4276
    %4862 = vmatprep.subr.mxu0 0.0
    %4863 = vmatpush2.msra.mxu0 %v4275
    %4864 = vmatprep.subr.mxu0 0.0
    %4865 = vmatpush2.msra.mxu0 %v4274
    %4866 = vmatprep.subr.mxu0 0.0
    %4867 = vmatpush2.msra.mxu0 %v4273
    %4868 = vmatprep.subr.mxu0 0.0
    %4869 = vmatpush2.msra.mxu0 %v4272
    %4870 = vmatprep.subr.mxu0 0.0
    %4871 = vmatpush2.msra.mxu0 %v4271
    %4872 = vmatprep.subr.mxu0 0.0
    %4873 = vmatpush2.msra.mxu0 %v4270
    %4874 = vmatprep.subr.mxu0 0.0
    %4875 = vmatpush2.msra.mxu0 %v4269
    %4876 = vmatprep.subr.mxu0 0.0
    %4877 = vmatpush2.msra.mxu0 %v4268
    %4878 = vmatprep.subr.mxu0 0.0
    %4879 = vmatpush2.msra.mxu0 %v4267
    %4880 = vmatprep.subr.mxu0 0.0
    %4881 = vmatpush2.msra.mxu0 %v4266
    %4882 = vmatprep.subr.mxu0 0.0
    %4883 = vmatpush2.msra.mxu0 %v4265
    %4884 = vmatprep.mubr.f32.mxu0 %v4340
    %4885 = vmatmul.mubr.f32.gmra.mxu0 %v4339
    %v4886 = vpop.f32.mrf.mxu0
    %v4887 = vadd.f32 %v4692, %v4886
    %v4888 = vpop.f32.mrf.mxu0
    %4889 = vmatprep.mubr.f32.mxu0 %v4348
    %4890 = vmatmul.mubr.f32.gmra.mxu0 %v4347
    %v4891 = vpop.f32.mrf.mxu0
    %v4892 = vadd.f32 %v4697, %v4891
    %v4893 = vpop.f32.mrf.mxu0
    %4894 = vmatprep.mubr.f32.mxu0 %v4356
    %4895 = vmatmul.mubr.f32.gmra.mxu0 %v4355
    %v4896 = vpop.f32.mrf.mxu0
    %v4897 = vadd.f32 %v4702, %v4896
    %v4898 = vpop.f32.mrf.mxu0
    %4899 = vmatprep.mubr.f32.mxu0 %v4364
    %4900 = vmatmul.mubr.f32.gmra.mxu0 %v4363
    %v4901 = vpop.f32.mrf.mxu0
    %v4902 = vadd.f32 %v4707, %v4901
    %v4903 = vpop.f32.mrf.mxu0
    %4904 = vmatprep.mubr.f32.mxu0 %v4372
    %4905 = vmatmul.mubr.f32.gmra.mxu0 %v4371
    %v4906 = vpop.f32.mrf.mxu0
    %v4907 = vadd.f32 %v4712, %v4906
    %v4908 = vpop.f32.mrf.mxu0
    %4909 = vmatprep.mubr.f32.mxu0 %v4380
    %4910 = vmatmul.mubr.f32.gmra.mxu0 %v4379
    %v4911 = vpop.f32.mrf.mxu0
    %v4912 = vadd.f32 %v4717, %v4911
    %v4913 = vpop.f32.mrf.mxu0
    %4914 = vmatprep.mubr.f32.mxu0 %v4388
    %4915 = vmatmul.mubr.f32.gmra.mxu0 %v4387
    %v4916 = vpop.f32.mrf.mxu0
    %v4917 = vadd.f32 %v4722, %v4916
    %v4918 = vpop.f32.mrf.mxu0
    %4919 = vmatprep.mubr.f32.mxu0 %v4396
    %4920 = vmatmul.mubr.f32.gmra.mxu0 %v4395
    %v4921 = vpop.f32.mrf.mxu0
    %v4922 = vadd.f32 %v4727, %v4921
    %v4923 = vpop.f32.mrf.mxu0
    %4924 = vmatprep.mubr.f32.mxu0 %v4404
    %4925 = vmatmul.mubr.f32.gmra.mxu0 %v4403
    %v4926 = vpop.f32.mrf.mxu0
    %v4927 = vadd.f32 %v4732, %v4926
    %v4928 = vpop.f32.mrf.mxu0
    %4929 = vmatprep.mubr.f32.mxu0 %v4412
    %4930 = vmatmul.mubr.f32.gmra.mxu0 %v4411
    %v4931 = vpop.f32.mrf.mxu0
    %v4932 = vadd.f32 %v4737, %v4931
    %v4933 = vpop.f32.mrf.mxu0
    %4934 = vmatprep.mubr.f32.mxu0 %v4420
    %4935 = vmatmul.mubr.f32.gmra.mxu0 %v4419
    %v4936 = vpop.f32.mrf.mxu0
    %v4937 = vadd.f32 %v4742, %v4936
    %v4938 = vpop.f32.mrf.mxu0
    %4939 = vmatprep.mubr.f32.mxu0 %v4428
    %4940 = vmatmul.mubr.f32.gmra.mxu0 %v4427
    %v4941 = vpop.f32.mrf.mxu0
    %v4942 = vadd.f32 %v4747, %v4941
    %v4943 = vpop.f32.mrf.mxu0
    %4944 = vmatprep.mubr.f32.mxu0 %v4436
    %4945 = vmatmul.mubr.f32.gmra.mxu0 %v4435
    %v4946 = vpop.f32.mrf.mxu0
    %v4947 = vadd.f32 %v4752, %v4946
    %v4948 = vpop.f32.mrf.mxu0
    %4949 = vmatprep.mubr.f32.mxu0 %v4444
    %4950 = vmatmul.mubr.f32.gmra.mxu0 %v4443
    %v4951 = vpop.f32.mrf.mxu0
    %v4952 = vadd.f32 %v4757, %v4951
    %v4953 = vpop.f32.mrf.mxu0
    %4954 = vmatprep.mubr.f32.mxu0 %v4452
    %4955 = vmatmul.mubr.f32.gmra.mxu0 %v4451
    %v4956 = vpop.f32.mrf.mxu0
    %v4957 = vadd.f32 %v4762, %v4956
    %v4958 = vpop.f32.mrf.mxu0
    %4959 = vmatprep.mubr.f32.mxu0 %v4460
    %4960 = vmatmul.mubr.f32.gmra.mxu0 %v4459
    %v4961 = vpop.f32.mrf.mxu0
    %v4962 = vadd.f32 %v4767, %v4961
    %v4963 = vpop.f32.mrf.mxu0
    %4964 = vmatprep.mubr.f32.mxu0 %v4468
    %4965 = vmatmul.mubr.f32.gmra.mxu0 %v4467
    %v4966 = vpop.f32.mrf.mxu0
    %v4967 = vadd.f32 %v4772, %v4966
    %v4968 = vpop.f32.mrf.mxu0
    %4969 = vmatprep.mubr.f32.mxu0 %v4476
    %4970 = vmatmul.mubr.f32.gmra.mxu0 %v4475
    %v4971 = vpop.f32.mrf.mxu0
    %v4972 = vadd.f32 %v4777, %v4971
    %v4973 = vpop.f32.mrf.mxu0
    %4974 = vmatprep.mubr.f32.mxu0 %v4484
    %4975 = vmatmul.mubr.f32.gmra.mxu0 %v4483
    %v4976 = vpop.f32.mrf.mxu0
    %v4977 = vadd.f32 %v4782, %v4976
    %v4978 = vpop.f32.mrf.mxu0
    %4979 = vmatprep.mubr.f32.mxu0 %v4492
    %4980 = vmatmul.mubr.f32.gmra.mxu0 %v4491
    %v4981 = vpop.f32.mrf.mxu0
    %v4982 = vadd.f32 %v4787, %v4981
    %v4983 = vpop.f32.mrf.mxu0
    %4984 = vmatprep.mubr.f32.mxu0 %v4500
    %4985 = vmatmul.mubr.f32.gmra.mxu0 %v4499
    %v4986 = vpop.f32.mrf.mxu0
    %v4987 = vadd.f32 %v4792, %v4986
    %v4988 = vpop.f32.mrf.mxu0
    %4989 = vmatprep.mubr.f32.mxu0 %v4508
    %4990 = vmatmul.mubr.f32.gmra.mxu0 %v4507
    %v4991 = vpop.f32.mrf.mxu0
    %v4992 = vadd.f32 %v4797, %v4991
    %v4993 = vpop.f32.mrf.mxu0
    %4994 = vmatprep.mubr.f32.mxu0 %v4516
    %4995 = vmatmul.mubr.f32.gmra.mxu0 %v4515
    %v4996 = vpop.f32.mrf.mxu0
    %v4997 = vadd.f32 %v4802, %v4996
    %v4998 = vpop.f32.mrf.mxu0
    %4999 = vmatprep.mubr.f32.mxu0 %v4524
    %5000 = vmatmul.mubr.f32.gmra.mxu0 %v4523
    %v5001 = vpop.f32.mrf.mxu0
    %v5002 = vadd.f32 %v4807, %v5001
    %v5003 = vpop.f32.mrf.mxu0
    %5004 = vmatprep.mubr.f32.mxu0 %v4532
    %5005 = vmatmul.mubr.f32.gmra.mxu0 %v4531
    %v5006 = vpop.f32.mrf.mxu0
    %v5007 = vadd.f32 %v4812, %v5006
    %v5008 = vpop.f32.mrf.mxu0
    %5009 = vmatprep.mubr.f32.mxu0 %v4540
    %5010 = vmatmul.mubr.f32.gmra.mxu0 %v4539
    %v5011 = vpop.f32.mrf.mxu0
    %v5012 = vadd.f32 %v4817, %v5011
    %v5013 = vpop.f32.mrf.mxu0
    %5014 = vdwg.mxu0
    %5015 = vmatprep.subr.mxu0 0.0
    %5016 = vmatpush1.msra.mxu0 %v4296
    %5017 = vmatprep.subr.mxu0 0.0
    %5018 = vmatpush1.msra.mxu0 %v4295
    %5019 = vmatprep.subr.mxu0 0.0
    %5020 = vmatpush1.msra.mxu0 %v4294
    %5021 = vmatprep.subr.mxu0 0.0
    %5022 = vmatpush1.msra.mxu0 %v4293
    %5023 = vmatprep.subr.mxu0 0.0
    %5024 = vmatpush1.msra.mxu0 %v4292
    %5025 = vmatprep.subr.mxu0 0.0
    %5026 = vmatpush1.msra.mxu0 %v4291
    %5027 = vmatprep.subr.mxu0 0.0
    %5028 = vmatpush1.msra.mxu0 %v4290
    %5029 = vmatprep.subr.mxu0 0.0
    %5030 = vmatpush1.msra.mxu0 %v4289
    %5031 = vmatprep.subr.mxu0 0.0
    %5032 = vmatpush1.msra.mxu0 %v4288
    %5033 = vmatprep.subr.mxu0 0.0
    %5034 = vmatpush1.msra.mxu0 %v4287
    %5035 = vmatprep.subr.mxu0 0.0
    %5036 = vmatpush1.msra.mxu0 %v4286
    %5037 = vmatprep.subr.mxu0 0.0
    %5038 = vmatpush1.msra.mxu0 %v4285
    %5039 = vmatprep.subr.mxu0 0.0
    %5040 = vmatpush1.msra.mxu0 %v4284
    %5041 = vmatprep.subr.mxu0 0.0
    %5042 = vmatpush1.msra.mxu0 %v4283
    %5043 = vmatprep.subr.mxu0 0.0
    %5044 = vmatpush1.msra.mxu0 %v4282
    %5045 = vmatprep.subr.mxu0 0.0
    %5046 = vmatpush1.msra.mxu0 %v4281
    %5047 = vmatprep.subr.mxu0 0.0
    %5048 = vmatpush2.msra.mxu0 %v4312
    %5049 = vmatprep.subr.mxu0 0.0
    %5050 = vmatpush2.msra.mxu0 %v4311
    %5051 = vmatprep.subr.mxu0 0.0
    %5052 = vmatpush2.msra.mxu0 %v4310
    %5053 = vmatprep.subr.mxu0 0.0
    %5054 = vmatpush2.msra.mxu0 %v4309
    %5055 = vmatprep.subr.mxu0 0.0
    %5056 = vmatpush2.msra.mxu0 %v4308
    %5057 = vmatprep.subr.mxu0 0.0
    %5058 = vmatpush2.msra.mxu0 %v4307
    %5059 = vmatprep.subr.mxu0 0.0
    %5060 = vmatpush2.msra.mxu0 %v4306
    %5061 = vmatprep.subr.mxu0 0.0
    %5062 = vmatpush2.msra.mxu0 %v4305
    %5063 = vmatprep.subr.mxu0 0.0
    %5064 = vmatpush2.msra.mxu0 %v4304
    %5065 = vmatprep.subr.mxu0 0.0
    %5066 = vmatpush2.msra.mxu0 %v4303
    %5067 = vmatprep.subr.mxu0 0.0
    %5068 = vmatpush2.msra.mxu0 %v4302
    %5069 = vmatprep.subr.mxu0 0.0
    %5070 = vmatpush2.msra.mxu0 %v4301
    %5071 = vmatprep.subr.mxu0 0.0
    %5072 = vmatpush2.msra.mxu0 %v4300
    %5073 = vmatprep.subr.mxu0 0.0
    %5074 = vmatpush2.msra.mxu0 %v4299
    %5075 = vmatprep.subr.mxu0 0.0
    %5076 = vmatpush2.msra.mxu0 %v4298
    %5077 = vmatprep.subr.mxu0 0.0
    %5078 = vmatpush2.msra.mxu0 %v4297
    %5079 = vmatprep.mubr.f32.mxu0 %v4342
    %5080 = vmatmul.mubr.f32.gmra.mxu0 %v4341
    %v5081 = vpop.f32.mrf.mxu0
    %v5082 = vadd.f32 %v4887, %v5081
    %v5083 = vpop.f32.mrf.mxu0
    %5084 = vmatprep.mubr.f32.mxu0 %v4350
    %5085 = vmatmul.mubr.f32.gmra.mxu0 %v4349
    %v5086 = vpop.f32.mrf.mxu0
    %v5087 = vadd.f32 %v4892, %v5086
    %v5088 = vpop.f32.mrf.mxu0
    %5089 = vmatprep.mubr.f32.mxu0 %v4358
    %5090 = vmatmul.mubr.f32.gmra.mxu0 %v4357
    %v5091 = vpop.f32.mrf.mxu0
    %v5092 = vadd.f32 %v4897, %v5091
    %v5093 = vpop.f32.mrf.mxu0
    %5094 = vmatprep.mubr.f32.mxu0 %v4366
    %5095 = vmatmul.mubr.f32.gmra.mxu0 %v4365
    %v5096 = vpop.f32.mrf.mxu0
    %v5097 = vadd.f32 %v4902, %v5096
    %v5098 = vpop.f32.mrf.mxu0
    %5099 = vmatprep.mubr.f32.mxu0 %v4374
    %5100 = vmatmul.mubr.f32.gmra.mxu0 %v4373
    %v5101 = vpop.f32.mrf.mxu0
    %v5102 = vadd.f32 %v4907, %v5101
    %v5103 = vpop.f32.mrf.mxu0
    %5104 = vmatprep.mubr.f32.mxu0 %v4382
    %5105 = vmatmul.mubr.f32.gmra.mxu0 %v4381
    %v5106 = vpop.f32.mrf.mxu0
    %v5107 = vadd.f32 %v4912, %v5106
    %v5108 = vpop.f32.mrf.mxu0
    %5109 = vmatprep.mubr.f32.mxu0 %v4390
    %5110 = vmatmul.mubr.f32.gmra.mxu0 %v4389
    %v5111 = vpop.f32.mrf.mxu0
    %v5112 = vadd.f32 %v4917, %v5111
    %v5113 = vpop.f32.mrf.mxu0
    %5114 = vmatprep.mubr.f32.mxu0 %v4398
    %5115 = vmatmul.mubr.f32.gmra.mxu0 %v4397
    %v5116 = vpop.f32.mrf.mxu0
    %v5117 = vadd.f32 %v4922, %v5116
    %v5118 = vpop.f32.mrf.mxu0
    %5119 = vmatprep.mubr.f32.mxu0 %v4406
    %5120 = vmatmul.mubr.f32.gmra.mxu0 %v4405
    %v5121 = vpop.f32.mrf.mxu0
    %v5122 = vadd.f32 %v4927, %v5121
    %v5123 = vpop.f32.mrf.mxu0
    %5124 = vmatprep.mubr.f32.mxu0 %v4414
    %5125 = vmatmul.mubr.f32.gmra.mxu0 %v4413
    %v5126 = vpop.f32.mrf.mxu0
    %v5127 = vadd.f32 %v4932, %v5126
    %v5128 = vpop.f32.mrf.mxu0
    %5129 = vmatprep.mubr.f32.mxu0 %v4422
    %5130 = vmatmul.mubr.f32.gmra.mxu0 %v4421
    %v5131 = vpop.f32.mrf.mxu0
    %v5132 = vadd.f32 %v4937, %v5131
    %v5133 = vpop.f32.mrf.mxu0
    %5134 = vmatprep.mubr.f32.mxu0 %v4430
    %5135 = vmatmul.mubr.f32.gmra.mxu0 %v4429
    %v5136 = vpop.f32.mrf.mxu0
    %v5137 = vadd.f32 %v4942, %v5136
    %v5138 = vpop.f32.mrf.mxu0
    %5139 = vmatprep.mubr.f32.mxu0 %v4438
    %5140 = vmatmul.mubr.f32.gmra.mxu0 %v4437
    %v5141 = vpop.f32.mrf.mxu0
    %v5142 = vadd.f32 %v4947, %v5141
    %v5143 = vpop.f32.mrf.mxu0
    %5144 = vmatprep.mubr.f32.mxu0 %v4446
    %5145 = vmatmul.mubr.f32.gmra.mxu0 %v4445
    %v5146 = vpop.f32.mrf.mxu0
    %v5147 = vadd.f32 %v4952, %v5146
    %v5148 = vpop.f32.mrf.mxu0
    %5149 = vmatprep.mubr.f32.mxu0 %v4454
    %5150 = vmatmul.mubr.f32.gmra.mxu0 %v4453
    %v5151 = vpop.f32.mrf.mxu0
    %v5152 = vadd.f32 %v4957, %v5151
    %v5153 = vpop.f32.mrf.mxu0
    %5154 = vmatprep.mubr.f32.mxu0 %v4462
    %5155 = vmatmul.mubr.f32.gmra.mxu0 %v4461
    %v5156 = vpop.f32.mrf.mxu0
    %v5157 = vadd.f32 %v4962, %v5156
    %v5158 = vpop.f32.mrf.mxu0
    %5159 = vmatprep.mubr.f32.mxu0 %v4470
    %5160 = vmatmul.mubr.f32.gmra.mxu0 %v4469
    %v5161 = vpop.f32.mrf.mxu0
    %v5162 = vadd.f32 %v4967, %v5161
    %v5163 = vpop.f32.mrf.mxu0
    %5164 = vmatprep.mubr.f32.mxu0 %v4478
    %5165 = vmatmul.mubr.f32.gmra.mxu0 %v4477
    %v5166 = vpop.f32.mrf.mxu0
    %v5167 = vadd.f32 %v4972, %v5166
    %v5168 = vpop.f32.mrf.mxu0
    %5169 = vmatprep.mubr.f32.mxu0 %v4486
    %5170 = vmatmul.mubr.f32.gmra.mxu0 %v4485
    %v5171 = vpop.f32.mrf.mxu0
    %v5172 = vadd.f32 %v4977, %v5171
    %v5173 = vpop.f32.mrf.mxu0
    %5174 = vmatprep.mubr.f32.mxu0 %v4494
    %5175 = vmatmul.mubr.f32.gmra.mxu0 %v4493
    %v5176 = vpop.f32.mrf.mxu0
    %v5177 = vadd.f32 %v4982, %v5176
    %v5178 = vpop.f32.mrf.mxu0
    %5179 = vmatprep.mubr.f32.mxu0 %v4502
    %5180 = vmatmul.mubr.f32.gmra.mxu0 %v4501
    %v5181 = vpop.f32.mrf.mxu0
    %v5182 = vadd.f32 %v4987, %v5181
    %v5183 = vpop.f32.mrf.mxu0
    %5184 = vmatprep.mubr.f32.mxu0 %v4510
    %5185 = vmatmul.mubr.f32.gmra.mxu0 %v4509
    %v5186 = vpop.f32.mrf.mxu0
    %v5187 = vadd.f32 %v4992, %v5186
    %v5188 = vpop.f32.mrf.mxu0
    %5189 = vmatprep.mubr.f32.mxu0 %v4518
    %5190 = vmatmul.mubr.f32.gmra.mxu0 %v4517
    %v5191 = vpop.f32.mrf.mxu0
    %v5192 = vadd.f32 %v4997, %v5191
    %v5193 = vpop.f32.mrf.mxu0
    %5194 = vmatprep.mubr.f32.mxu0 %v4526
    %5195 = vmatmul.mubr.f32.gmra.mxu0 %v4525
    %v5196 = vpop.f32.mrf.mxu0
    %v5197 = vadd.f32 %v5002, %v5196
    %v5198 = vpop.f32.mrf.mxu0
    %5199 = vmatprep.mubr.f32.mxu0 %v4534
    %5200 = vmatmul.mubr.f32.gmra.mxu0 %v4533
    %v5201 = vpop.f32.mrf.mxu0
    %v5202 = vadd.f32 %v5007, %v5201
    %v5203 = vpop.f32.mrf.mxu0
    %5204 = vmatprep.mubr.f32.mxu0 %v4542
    %5205 = vmatmul.mubr.f32.gmra.mxu0 %v4541
    %v5206 = vpop.f32.mrf.mxu0
    %v5207 = vadd.f32 %v5012, %v5206
    %v5208 = vpop.f32.mrf.mxu0
    %5209 = vdwg.mxu0
    %5210 = vmatprep.subr.mxu0 0.0
    %5211 = vmatpush1.msra.mxu0 %v4328
    %5212 = vmatprep.subr.mxu0 0.0
    %5213 = vmatpush1.msra.mxu0 %v4327
    %5214 = vmatprep.subr.mxu0 0.0
    %5215 = vmatpush1.msra.mxu0 %v4326
    %5216 = vmatprep.subr.mxu0 0.0
    %5217 = vmatpush1.msra.mxu0 %v4325
    %5218 = vmatprep.subr.mxu0 0.0
    %5219 = vmatpush1.msra.mxu0 %v4324
    %5220 = vmatprep.subr.mxu0 0.0
    %5221 = vmatpush1.msra.mxu0 %v4323
    %5222 = vmatprep.subr.mxu0 0.0
    %5223 = vmatpush1.msra.mxu0 %v4322
    %5224 = vmatprep.subr.mxu0 0.0
    %5225 = vmatpush1.msra.mxu0 %v4321
    %5226 = vmatprep.subr.mxu0 0.0
    %5227 = vmatpush1.msra.mxu0 %v4320
    %5228 = vmatprep.subr.mxu0 0.0
    %5229 = vmatpush1.msra.mxu0 %v4319
    %5230 = vmatprep.subr.mxu0 0.0
    %5231 = vmatpush1.msra.mxu0 %v4318
    %5232 = vmatprep.subr.mxu0 0.0
    %5233 = vmatpush1.msra.mxu0 %v4317
    %5234 = vmatprep.subr.mxu0 0.0
    %5235 = vmatpush1.msra.mxu0 %v4316
    %5236 = vmatprep.subr.mxu0 0.0
    %5237 = vmatpush1.msra.mxu0 %v4315
    %5238 = vmatprep.subr.mxu0 0.0
    %5239 = vmatpush1.msra.mxu0 %v4314
    %5240 = vmatprep.subr.mxu0 0.0
    %5241 = vmatpush1.msra.mxu0 %v4313
    %5242 = vmatprep.subr.mxu0 0.0
    %5243 = vmatpush2.msra.mxu0 0.0
    %5244 = vmatprep.subr.mxu0 0.0
    %5245 = vmatpush2.msra.mxu0 0.0
    %5246 = vmatprep.subr.mxu0 0.0
    %5247 = vmatpush2.msra.mxu0 0.0
    %5248 = vmatprep.subr.mxu0 0.0
    %5249 = vmatpush2.msra.mxu0 0.0
    %5250 = vmatprep.subr.mxu0 0.0
    %5251 = vmatpush2.msra.mxu0 0.0
    %5252 = vmatprep.subr.mxu0 0.0
    %5253 = vmatpush2.msra.mxu0 0.0
    %5254 = vmatprep.subr.mxu0 0.0
    %5255 = vmatpush2.msra.mxu0 0.0
    %5256 = vmatprep.subr.mxu0 0.0
    %5257 = vmatpush2.msra.mxu0 0.0
    %5258 = vmatprep.subr.mxu0 0.0
    %5259 = vmatpush2.msra.mxu0 %v4336
    %5260 = vmatprep.subr.mxu0 0.0
    %5261 = vmatpush2.msra.mxu0 %v4335
    %5262 = vmatprep.subr.mxu0 0.0
    %5263 = vmatpush2.msra.mxu0 %v4334
    %5264 = vmatprep.subr.mxu0 0.0
    %5265 = vmatpush2.msra.mxu0 %v4333
    %5266 = vmatprep.subr.mxu0 0.0
    %5267 = vmatpush2.msra.mxu0 %v4332
    %5268 = vmatprep.subr.mxu0 0.0
    %5269 = vmatpush2.msra.mxu0 %v4331
    %5270 = vmatprep.subr.mxu0 0.0
    %5271 = vmatpush2.msra.mxu0 %v4330
    %5272 = vmatprep.subr.mxu0 0.0
    %5273 = vmatpush2.msra.mxu0 %v4329
    %5274 = vmatprep.mubr.f32.mxu0 %v4548
    %5275 = vmatmul.mubr.f32.gmra.mxu0 %v4343
    %v5276 = vpop.f32.mrf.mxu0
    %v5277 = vadd.f32 %v5082, %v5276
    %v5278 = vpop.f32.mrf.mxu0
    %5279 = vmatprep.mubr.f32.mxu0 %v4551
    %5280 = vmatmul.mubr.f32.gmra.mxu0 %v4351
    %v5281 = vpop.f32.mrf.mxu0
    %v5282 = vadd.f32 %v5087, %v5281
    %v5283 = vpop.f32.mrf.mxu0
    %5284 = vmatprep.mubr.f32.mxu0 %v4554
    %5285 = vmatmul.mubr.f32.gmra.mxu0 %v4359
    %v5286 = vpop.f32.mrf.mxu0
    %v5287 = vadd.f32 %v5092, %v5286
    %v5288 = vpop.f32.mrf.mxu0
    %5289 = vmatprep.mubr.f32.mxu0 %v4557
    %5290 = vmatmul.mubr.f32.gmra.mxu0 %v4367
    %v5291 = vpop.f32.mrf.mxu0
    %v5292 = vadd.f32 %v5097, %v5291
    %v5293 = vpop.f32.mrf.mxu0
    %5294 = vmatprep.mubr.f32.mxu0 %v4560
    %5295 = vmatmul.mubr.f32.gmra.mxu0 %v4375
    %v5296 = vpop.f32.mrf.mxu0
    %v5297 = vadd.f32 %v5102, %v5296
    %v5298 = vpop.f32.mrf.mxu0
    %5299 = vmatprep.mubr.f32.mxu0 %v4563
    %5300 = vmatmul.mubr.f32.gmra.mxu0 %v4383
    %v5301 = vpop.f32.mrf.mxu0
    %v5302 = vadd.f32 %v5107, %v5301
    %v5303 = vpop.f32.mrf.mxu0
    %5304 = vmatprep.mubr.f32.mxu0 %v4566
    %5305 = vmatmul.mubr.f32.gmra.mxu0 %v4391
    %v5306 = vpop.f32.mrf.mxu0
    %v5307 = vadd.f32 %v5112, %v5306
    %v5308 = vpop.f32.mrf.mxu0
    %5309 = vmatprep.mubr.f32.mxu0 %v4569
    %5310 = vmatmul.mubr.f32.gmra.mxu0 %v4399
    %v5311 = vpop.f32.mrf.mxu0
    %v5312 = vadd.f32 %v5117, %v5311
    %v5313 = vpop.f32.mrf.mxu0
    %5314 = vmatprep.mubr.f32.mxu0 %v4572
    %5315 = vmatmul.mubr.f32.gmra.mxu0 %v4407
    %v5316 = vpop.f32.mrf.mxu0
    %v5317 = vadd.f32 %v5122, %v5316
    %v5318 = vpop.f32.mrf.mxu0
    %5319 = vmatprep.mubr.f32.mxu0 %v4575
    %5320 = vmatmul.mubr.f32.gmra.mxu0 %v4415
    %v5321 = vpop.f32.mrf.mxu0
    %v5322 = vadd.f32 %v5127, %v5321
    %v5323 = vpop.f32.mrf.mxu0
    %5324 = vmatprep.mubr.f32.mxu0 %v4578
    %5325 = vmatmul.mubr.f32.gmra.mxu0 %v4423
    %v5326 = vpop.f32.mrf.mxu0
    %v5327 = vadd.f32 %v5132, %v5326
    %v5328 = vpop.f32.mrf.mxu0
    %5329 = vmatprep.mubr.f32.mxu0 %v4581
    %5330 = vmatmul.mubr.f32.gmra.mxu0 %v4431
    %v5331 = vpop.f32.mrf.mxu0
    %v5332 = vadd.f32 %v5137, %v5331
    %v5333 = vpop.f32.mrf.mxu0
    %5334 = vmatprep.mubr.f32.mxu0 %v4584
    %5335 = vmatmul.mubr.f32.gmra.mxu0 %v4439
    %v5336 = vpop.f32.mrf.mxu0
    %v5337 = vadd.f32 %v5142, %v5336
    %v5338 = vpop.f32.mrf.mxu0
    %5339 = vmatprep.mubr.f32.mxu0 %v4587
    %5340 = vmatmul.mubr.f32.gmra.mxu0 %v4447
    %v5341 = vpop.f32.mrf.mxu0
    %v5342 = vadd.f32 %v5147, %v5341
    %v5343 = vpop.f32.mrf.mxu0
    %5344 = vmatprep.mubr.f32.mxu0 %v4590
    %5345 = vmatmul.mubr.f32.gmra.mxu0 %v4455
    %v5346 = vpop.f32.mrf.mxu0
    %v5347 = vadd.f32 %v5152, %v5346
    %v5348 = vpop.f32.mrf.mxu0
    %5349 = vmatprep.mubr.f32.mxu0 %v4593
    %5350 = vmatmul.mubr.f32.gmra.mxu0 %v4463
    %v5351 = vpop.f32.mrf.mxu0
    %v5352 = vadd.f32 %v5157, %v5351
    %v5353 = vpop.f32.mrf.mxu0
    %5354 = vmatprep.mubr.f32.mxu0 %v4596
    %5355 = vmatmul.mubr.f32.gmra.mxu0 %v4471
    %v5356 = vpop.f32.mrf.mxu0
    %v5357 = vadd.f32 %v5162, %v5356
    %v5358 = vpop.f32.mrf.mxu0
    %5359 = vmatprep.mubr.f32.mxu0 %v4599
    %5360 = vmatmul.mubr.f32.gmra.mxu0 %v4479
    %v5361 = vpop.f32.mrf.mxu0
    %v5362 = vadd.f32 %v5167, %v5361
    %v5363 = vpop.f32.mrf.mxu0
    %5364 = vmatprep.mubr.f32.mxu0 %v4602
    %5365 = vmatmul.mubr.f32.gmra.mxu0 %v4487
    %v5366 = vpop.f32.mrf.mxu0
    %v5367 = vadd.f32 %v5172, %v5366
    %v5368 = vpop.f32.mrf.mxu0
    %5369 = vmatprep.mubr.f32.mxu0 %v4605
    %5370 = vmatmul.mubr.f32.gmra.mxu0 %v4495
    %v5371 = vpop.f32.mrf.mxu0
    %v5372 = vadd.f32 %v5177, %v5371
    %v5373 = vpop.f32.mrf.mxu0
    %5374 = vmatprep.mubr.f32.mxu0 %v4608
    %5375 = vmatmul.mubr.f32.gmra.mxu0 %v4503
    %v5376 = vpop.f32.mrf.mxu0
    %v5377 = vadd.f32 %v5182, %v5376
    %v5378 = vpop.f32.mrf.mxu0
    %5379 = vmatprep.mubr.f32.mxu0 %v4611
    %5380 = vmatmul.mubr.f32.gmra.mxu0 %v4511
    %v5381 = vpop.f32.mrf.mxu0
    %v5382 = vadd.f32 %v5187, %v5381
    %v5383 = vpop.f32.mrf.mxu0
    %5384 = vmatprep.mubr.f32.mxu0 %v4614
    %5385 = vmatmul.mubr.f32.gmra.mxu0 %v4519
    %v5386 = vpop.f32.mrf.mxu0
    %v5387 = vadd.f32 %v5192, %v5386
    %v5388 = vpop.f32.mrf.mxu0
    %5389 = vmatprep.mubr.f32.mxu0 %v4617
    %5390 = vmatmul.mubr.f32.gmra.mxu0 %v4527
    %v5391 = vpop.f32.mrf.mxu0
    %v5392 = vadd.f32 %v5197, %v5391
    %v5393 = vpop.f32.mrf.mxu0
    %5394 = vmatprep.mubr.f32.mxu0 %v4620
    %5395 = vmatmul.mubr.f32.gmra.mxu0 %v4535
    %v5396 = vpop.f32.mrf.mxu0
    %v5397 = vadd.f32 %v5202, %v5396
    %v5398 = vpop.f32.mrf.mxu0
    %5399 = vmatprep.mubr.f32.mxu0 %v4623
    %5400 = vmatmul.mubr.f32.gmra.mxu0 %v4543
    %v5401 = vpop.f32.mrf.mxu0
    %v5402 = vadd.f32 %v5207, %v5401
    %v5403 = vpop.f32.mrf.mxu0
    %5404 = vdwg.mxu0
    %v5405 = vmul.f32 %v5277, 0.2
    %v5406 = vmul.f32 %v5282, 0.2
    %v5407 = vmul.f32 %v5287, 0.2
    %v5408 = vmul.f32 %v5292, 0.2
    %v5409 = vmul.f32 %v5297, 0.2
    %v5410 = vmul.f32 %v5302, 0.2
    %v5411 = vmul.f32 %v5307, 0.2
    %v5412 = vmul.f32 %v5312, 0.2
    %v5413 = vmul.f32 %v5317, 0.2
    %v5414 = vmul.f32 %v5322, 0.2
    %v5415 = vmul.f32 %v5327, 0.2
    %v5416 = vmul.f32 %v5332, 0.2
    %v5417 = vmul.f32 %v5337, 0.2
    %v5418 = vmul.f32 %v5342, 0.2
    %v5419 = vmul.f32 %v5347, 0.2
    %v5420 = vmul.f32 %v5352, 0.2
    %v5421 = vmul.f32 %v5357, 0.2
    %v5422 = vmul.f32 %v5362, 0.2
    %v5423 = vmul.f32 %v5367, 0.2
    %v5424 = vmul.f32 %v5372, 0.2
    %v5425 = vmul.f32 %v5377, 0.2
    %v5426 = vmul.f32 %v5382, 0.2
    %v5427 = vmul.f32 %v5387, 0.2
    %v5428 = vmul.f32 %v5392, 0.2
    %v5429 = vmul.f32 %v5397, 0.2
    %v5430 = vmul.f32 %v5402, 0.2
    %v5431 = vmax.f32 %v5277, %v5405
    %v5432 = vmax.f32 %v5282, %v5406
    %v5433 = vmax.f32 %v5287, %v5407
    %v5434 = vmax.f32 %v5292, %v5408
    %v5435 = vmax.f32 %v5297, %v5409
    %v5436 = vmax.f32 %v5302, %v5410
    %v5437 = vmax.f32 %v5307, %v5411
    %v5438 = vmax.f32 %v5312, %v5412
    %v5439 = vmax.f32 %v5317, %v5413
    %v5440 = vmax.f32 %v5322, %v5414
    %v5441 = vmax.f32 %v5327, %v5415
    %v5442 = vmax.f32 %v5332, %v5416
    %v5443 = vmax.f32 %v5337, %v5417
    %v5444 = vmax.f32 %v5342, %v5418
    %v5445 = vmax.f32 %v5347, %v5419
    %v5446 = vmax.f32 %v5352, %v5420
    %v5447 = vmax.f32 %v5357, %v5421
    %v5448 = vmax.f32 %v5362, %v5422
    %v5449 = vmax.f32 %v5367, %v5423
    %v5450 = vmax.f32 %v5372, %v5424
    %v5451 = vmax.f32 %v5377, %v5425
    %v5452 = vmax.f32 %v5382, %v5426
    %v5453 = vmax.f32 %v5387, %v5427
    %v5454 = vmax.f32 %v5392, %v5428
    %v5455 = vmax.f32 %v5397, %v5429
    %v5456 = vmax.f32 %v5402, %v5430
    %v5457 = vld [vmem:[%s7] sm:$0xff]
    %v5458 = vld [vmem:[%s7 + $0x8] sm:$0xff]
    %v5459 = vld [vmem:[%s7 + $0x10] sm:$0xff]
    %v5460 = vld [vmem:[%s7 + $0x18] sm:$0xff]
    %v5461 = vld [vmem:[%s7 + $0x20] sm:$0xff]
    %v5462 = vld [vmem:[%s7 + $0x28] sm:$0xff]
    %v5463 = vld [vmem:[%s7 + $0x30] sm:$0xff]
    %v5464 = vld [vmem:[%s7 + $0x38] sm:$0xff]
    %v5465 = vld [vmem:[%s7 + $0x40] sm:$0xff]
    %v5466 = vld [vmem:[%s7 + $0x48] sm:$0xff]
    %v5467 = vld [vmem:[%s7 + $0x50] sm:$0x3]
    %v5468 = vld [vmem:[%s7 + $0x58] sm:$0x3]
    %vm5469 = vcmask 613376
    %v5471 = vsel %vm5469, %v5458, 0
    %v5474 = vsel %vm5469, %v5460, 0
    %v5477 = vsel %vm5469, %v5462, 0
    %v5480 = vsel %vm5469, %v5464, 0
    %v5483 = vsel %vm5469, %v5466, 0
    %v5486 = vsel %vm5469, %v5468, 0
    %vm5488 = vcmask 1042432
    %v5490 = vsel %vm5488, %v5456, 0
    %5492 = vmatprep.subr.mxu0 0.0
    %5493 = vmatpush1.msra.mxu0 %v5446
    %5494 = vmatprep.subr.mxu0 0.0
    %5495 = vmatpush1.msra.mxu0 %v5445
    %5496 = vmatprep.subr.mxu0 0.0
    %5497 = vmatpush1.msra.mxu0 %v5444
    %5498 = vmatprep.subr.mxu0 0.0
    %5499 = vmatpush1.msra.mxu0 %v5443
    %5500 = vmatprep.subr.mxu0 0.0
    %5501 = vmatpush1.msra.mxu0 %v5442
    %5502 = vmatprep.subr.mxu0 0.0
    %5503 = vmatpush1.msra.mxu0 %v5441
    %5504 = vmatprep.subr.mxu0 0.0
    %5505 = vmatpush1.msra.mxu0 %v5440
    %5506 = vmatprep.subr.mxu0 0.0
    %5507 = vmatpush1.msra.mxu0 %v5439
    %5508 = vmatprep.subr.mxu0 0.0
    %5509 = vmatpush1.msra.mxu0 %v5438
    %5510 = vmatprep.subr.mxu0 0.0
    %5511 = vmatpush1.msra.mxu0 %v5437
    %5512 = vmatprep.subr.mxu0 0.0
    %5513 = vmatpush1.msra.mxu0 %v5436
    %5514 = vmatprep.subr.mxu0 0.0
    %5515 = vmatpush1.msra.mxu0 %v5435
    %5516 = vmatprep.subr.mxu0 0.0
    %5517 = vmatpush1.msra.mxu0 %v5434
    %5518 = vmatprep.subr.mxu0 0.0
    %5519 = vmatpush1.msra.mxu0 %v5433
    %5520 = vmatprep.subr.mxu0 0.0
    %5521 = vmatpush1.msra.mxu0 %v5432
    %5522 = vmatprep.subr.mxu0 0.0
    %5523 = vmatpush1.msra.mxu0 %v5431
    %5524 = vmatprep.subr.mxu0 0.0
    %5525 = vmatpush2.msra.mxu0 0.0
    %5526 = vmatprep.subr.mxu0 0.0
    %5527 = vmatpush2.msra.mxu0 0.0
    %5528 = vmatprep.subr.mxu0 0.0
    %5529 = vmatpush2.msra.mxu0 0.0
    %5530 = vmatprep.subr.mxu0 0.0
    %5531 = vmatpush2.msra.mxu0 0.0
    %5532 = vmatprep.subr.mxu0 0.0
    %5533 = vmatpush2.msra.mxu0 0.0
    %5534 = vmatprep.subr.mxu0 0.0
    %5535 = vmatpush2.msra.mxu0 0.0
    %5536 = vmatprep.subr.mxu0 0.0
    %5537 = vmatpush2.msra.mxu0 %v5490
    %5538 = vmatprep.subr.mxu0 0.0
    %5539 = vmatpush2.msra.mxu0 %v5455
    %5540 = vmatprep.subr.mxu0 0.0
    %5541 = vmatpush2.msra.mxu0 %v5454
    %5542 = vmatprep.subr.mxu0 0.0
    %5543 = vmatpush2.msra.mxu0 %v5453
    %5544 = vmatprep.subr.mxu0 0.0
    %5545 = vmatpush2.msra.mxu0 %v5452
    %5546 = vmatprep.subr.mxu0 0.0
    %5547 = vmatpush2.msra.mxu0 %v5451
    %5548 = vmatprep.subr.mxu0 0.0
    %5549 = vmatpush2.msra.mxu0 %v5450
    %5550 = vmatprep.subr.mxu0 0.0
    %5551 = vmatpush2.msra.mxu0 %v5449
    %5552 = vmatprep.subr.mxu0 0.0
    %5553 = vmatpush2.msra.mxu0 %v5448
    %5554 = vmatprep.subr.mxu0 0.0
    %5555 = vmatpush2.msra.mxu0 %v5447
    %5556 = vmatprep.mubr.f32.mxu0 %v5471
    %5557 = vmatmul.mubr.f32.gmra.mxu0 %v5457
    %v5558 = vpop.f32.mrf.mxu0
    %v5559 = vadd.f32 0.0, %v5558
    %v5560 = vpop.f32.mrf.mxu0
    %5561 = vmatprep.mubr.f32.mxu0 %v5474
    %5562 = vmatmul.mubr.f32.gmra.mxu0 %v5459
    %v5563 = vpop.f32.mrf.mxu0
    %v5564 = vadd.f32 0.0, %v5563
    %v5565 = vpop.f32.mrf.mxu0
    %5566 = vmatprep.mubr.f32.mxu0 %v5477
    %5567 = vmatmul.mubr.f32.gmra.mxu0 %v5461
    %v5568 = vpop.f32.mrf.mxu0
    %v5569 = vadd.f32 0.0, %v5568
    %v5570 = vpop.f32.mrf.mxu0
    %5571 = vmatprep.mubr.f32.mxu0 %v5480
    %5572 = vmatmul.mubr.f32.gmra.mxu0 %v5463
    %v5573 = vpop.f32.mrf.mxu0
    %v5574 = vadd.f32 0.0, %v5573
    %v5575 = vpop.f32.mrf.mxu0
    %5576 = vmatprep.mubr.f32.mxu0 %v5483
    %5577 = vmatmul.mubr.f32.gmra.mxu0 %v5465
    %v5578 = vpop.f32.mrf.mxu0
    %v5579 = vadd.f32 0.0, %v5578
    %v5580 = vpop.f32.mrf.mxu0
    %5581 = vmatprep.mubr.f32.mxu0 %v5486
    %5582 = vmatmul.mubr.f32.gmra.mxu0 %v5467
    %v5583 = vpop.f32.mrf.mxu0
    %v5584 = vadd.f32 0.0, %v5583
    %v5585 = vpop.f32.mrf.mxu0
    %5586 = vdwg.mxu0
    %s5587 = scalar_lea.vmem %s7, 96
    %v5588 = vld [vmem:[%s5587] sm:$0xff]
    %v5589 = vld [vmem:[%s5587 + $0x8] sm:$0xff]
    %v5590 = vld [vmem:[%s5587 + $0x10] sm:$0xff]
    %v5591 = vld [vmem:[%s5587 + $0x18] sm:$0xff]
    %v5592 = vld [vmem:[%s5587 + $0x20] sm:$0xff]
    %v5593 = vld [vmem:[%s5587 + $0x28] sm:$0xff]
    %v5594 = vld [vmem:[%s5587 + $0x30] sm:$0xff]
    %v5595 = vld [vmem:[%s5587 + $0x38] sm:$0xff]
    %v5596 = vld [vmem:[%s5587 + $0x40] sm:$0xff]
    %v5597 = vld [vmem:[%s5587 + $0x48] sm:$0xff]
    %v5598 = vld [vmem:[%s5587 + $0x50] sm:$0x3]
    %v5599 = vld [vmem:[%s5587 + $0x58] sm:$0x3]
    %v5601 = vsel %vm5469, %v5589, 0
    %v5604 = vsel %vm5469, %v5591, 0
    %v5607 = vsel %vm5469, %v5593, 0
    %v5610 = vsel %vm5469, %v5595, 0
    %v5613 = vsel %vm5469, %v5597, 0
    %v5616 = vsel %vm5469, %v5599, 0
    %5618 = vmatprep.subr.mxu0 0.0
    %5619 = vmatpush1.msra.mxu0 %v5446
    %5620 = vmatprep.subr.mxu0 0.0
    %5621 = vmatpush1.msra.mxu0 %v5445
    %5622 = vmatprep.subr.mxu0 0.0
    %5623 = vmatpush1.msra.mxu0 %v5444
    %5624 = vmatprep.subr.mxu0 0.0
    %5625 = vmatpush1.msra.mxu0 %v5443
    %5626 = vmatprep.subr.mxu0 0.0
    %5627 = vmatpush1.msra.mxu0 %v5442
    %5628 = vmatprep.subr.mxu0 0.0
    %5629 = vmatpush1.msra.mxu0 %v5441
    %5630 = vmatprep.subr.mxu0 0.0
    %5631 = vmatpush1.msra.mxu0 %v5440
    %5632 = vmatprep.subr.mxu0 0.0
    %5633 = vmatpush1.msra.mxu0 %v5439
    %5634 = vmatprep.subr.mxu0 0.0
    %5635 = vmatpush1.msra.mxu0 %v5438
    %5636 = vmatprep.subr.mxu0 0.0
    %5637 = vmatpush1.msra.mxu0 %v5437
    %5638 = vmatprep.subr.mxu0 0.0
    %5639 = vmatpush1.msra.mxu0 %v5436
    %5640 = vmatprep.subr.mxu0 0.0
    %5641 = vmatpush1.msra.mxu0 %v5435
    %5642 = vmatprep.subr.mxu0 0.0
    %5643 = vmatpush1.msra.mxu0 %v5434
    %5644 = vmatprep.subr.mxu0 0.0
    %5645 = vmatpush1.msra.mxu0 %v5433
    %5646 = vmatprep.subr.mxu0 0.0
    %5647 = vmatpush1.msra.mxu0 %v5432
    %5648 = vmatprep.subr.mxu0 0.0
    %5649 = vmatpush1.msra.mxu0 %v5431
    %5650 = vmatprep.subr.mxu0 0.0
    %5651 = vmatpush2.msra.mxu0 0.0
    %5652 = vmatprep.subr.mxu0 0.0
    %5653 = vmatpush2.msra.mxu0 0.0
    %5654 = vmatprep.subr.mxu0 0.0
    %5655 = vmatpush2.msra.mxu0 0.0
    %5656 = vmatprep.subr.mxu0 0.0
    %5657 = vmatpush2.msra.mxu0 0.0
    %5658 = vmatprep.subr.mxu0 0.0
    %5659 = vmatpush2.msra.mxu0 0.0
    %5660 = vmatprep.subr.mxu0 0.0
    %5661 = vmatpush2.msra.mxu0 0.0
    %5662 = vmatprep.subr.mxu0 0.0
    %5663 = vmatpush2.msra.mxu0 %v5490
    %5664 = vmatprep.subr.mxu0 0.0
    %5665 = vmatpush2.msra.mxu0 %v5455
    %5666 = vmatprep.subr.mxu0 0.0
    %5667 = vmatpush2.msra.mxu0 %v5454
    %5668 = vmatprep.subr.mxu0 0.0
    %5669 = vmatpush2.msra.mxu0 %v5453
    %5670 = vmatprep.subr.mxu0 0.0
    %5671 = vmatpush2.msra.mxu0 %v5452
    %5672 = vmatprep.subr.mxu0 0.0
    %5673 = vmatpush2.msra.mxu0 %v5451
    %5674 = vmatprep.subr.mxu0 0.0
    %5675 = vmatpush2.msra.mxu0 %v5450
    %5676 = vmatprep.subr.mxu0 0.0
    %5677 = vmatpush2.msra.mxu0 %v5449
    %5678 = vmatprep.subr.mxu0 0.0
    %5679 = vmatpush2.msra.mxu0 %v5448
    %5680 = vmatprep.subr.mxu0 0.0
    %5681 = vmatpush2.msra.mxu0 %v5447
    %5682 = vmatprep.mubr.f32.mxu0 %v5601
    %5683 = vmatmul.mubr.f32.gmra.mxu0 %v5588
    %v5684 = vpop.f32.mrf.mxu0
    %v5685 = vadd.f32 0.0, %v5684
    %v5686 = vpop.f32.mrf.mxu0
    %5687 = vmatprep.mubr.f32.mxu0 %v5604
    %5688 = vmatmul.mubr.f32.gmra.mxu0 %v5590
    %v5689 = vpop.f32.mrf.mxu0
    %v5690 = vadd.f32 0.0, %v5689
    %v5691 = vpop.f32.mrf.mxu0
    %5692 = vmatprep.mubr.f32.mxu0 %v5607
    %5693 = vmatmul.mubr.f32.gmra.mxu0 %v5592
    %v5694 = vpop.f32.mrf.mxu0
    %v5695 = vadd.f32 0.0, %v5694
    %v5696 = vpop.f32.mrf.mxu0
    %5697 = vmatprep.mubr.f32.mxu0 %v5610
    %5698 = vmatmul.mubr.f32.gmra.mxu0 %v5594
    %v5699 = vpop.f32.mrf.mxu0
    %v5700 = vadd.f32 0.0, %v5699
    %v5701 = vpop.f32.mrf.mxu0
    %5702 = vmatprep.mubr.f32.mxu0 %v5613
    %5703 = vmatmul.mubr.f32.gmra.mxu0 %v5596
    %v5704 = vpop.f32.mrf.mxu0
    %v5705 = vadd.f32 0.0, %v5704
    %v5706 = vpop.f32.mrf.mxu0
    %5707 = vmatprep.mubr.f32.mxu0 %v5616
    %5708 = vmatmul.mubr.f32.gmra.mxu0 %v5598
    %v5709 = vpop.f32.mrf.mxu0
    %v5710 = vadd.f32 0.0, %v5709
    %v5711 = vpop.f32.mrf.mxu0
    %5712 = vdwg.mxu0
    %v5713 = vmax.f32 %v5559, %v5685
    %v5714 = vmax.f32 %v5564, %v5690
    %v5715 = vmax.f32 %v5569, %v5695
    %v5716 = vmax.f32 %v5574, %v5700
    %v5717 = vmax.f32 %v5579, %v5705
    %v5718 = vmax.f32 %v5584, %v5710
    %s5719 = scalar_lea.vmem %s7, 192
    %v5720 = vld [vmem:[%s5719] sm:$0xff]
    %v5721 = vld [vmem:[%s5719 + $0x8] sm:$0xff]
    %v5722 = vld [vmem:[%s5719 + $0x10] sm:$0xff]
    %v5723 = vld [vmem:[%s5719 + $0x18] sm:$0xff]
    %v5724 = vld [vmem:[%s5719 + $0x20] sm:$0xff]
    %v5725 = vld [vmem:[%s5719 + $0x28] sm:$0xff]
    %v5726 = vld [vmem:[%s5719 + $0x30] sm:$0xff]
    %v5727 = vld [vmem:[%s5719 + $0x38] sm:$0xff]
    %v5728 = vld [vmem:[%s5719 + $0x40] sm:$0xff]
    %v5729 = vld [vmem:[%s5719 + $0x48] sm:$0xff]
    %v5730 = vld [vmem:[%s5719 + $0x50] sm:$0x3]
    %v5731 = vld [vmem:[%s5719 + $0x58] sm:$0x3]
    %v5733 = vsel %vm5469, %v5721, 0
    %v5736 = vsel %vm5469, %v5723, 0
    %v5739 = vsel %vm5469, %v5725, 0
    %v5742 = vsel %vm5469, %v5727, 0
    %v5745 = vsel %vm5469, %v5729, 0
    %v5748 = vsel %vm5469, %v5731, 0
    %5750 = vmatprep.subr.mxu0 0.0
    %5751 = vmatpush1.msra.mxu0 %v5446
    %5752 = vmatprep.subr.mxu0 0.0
    %5753 = vmatpush1.msra.mxu0 %v5445
    %5754 = vmatprep.subr.mxu0 0.0
    %5755 = vmatpush1.msra.mxu0 %v5444
    %5756 = vmatprep.subr.mxu0 0.0
    %5757 = vmatpush1.msra.mxu0 %v5443
    %5758 = vmatprep.subr.mxu0 0.0
    %5759 = vmatpush1.msra.mxu0 %v5442
    %5760 = vmatprep.subr.mxu0 0.0
    %5761 = vmatpush1.msra.mxu0 %v5441
    %5762 = vmatprep.subr.mxu0 0.0
    %5763 = vmatpush1.msra.mxu0 %v5440
    %5764 = vmatprep.subr.mxu0 0.0
    %5765 = vmatpush1.msra.mxu0 %v5439
    %5766 = vmatprep.subr.mxu0 0.0
    %5767 = vmatpush1.msra.mxu0 %v5438
    %5768 = vmatprep.subr.mxu0 0.0
    %5769 = vmatpush1.msra.mxu0 %v5437
    %5770 = vmatprep.subr.mxu0 0.0
    %5771 = vmatpush1.msra.mxu0 %v5436
    %5772 = vmatprep.subr.mxu0 0.0
    %5773 = vmatpush1.msra.mxu0 %v5435
    %5774 = vmatprep.subr.mxu0 0.0
    %5775 = vmatpush1.msra.mxu0 %v5434
    %5776 = vmatprep.subr.mxu0 0.0
    %5777 = vmatpush1.msra.mxu0 %v5433
    %5778 = vmatprep.subr.mxu0 0.0
    %5779 = vmatpush1.msra.mxu0 %v5432
    %5780 = vmatprep.subr.mxu0 0.0
    %5781 = vmatpush1.msra.mxu0 %v5431
    %5782 = vmatprep.subr.mxu0 0.0
    %5783 = vmatpush2.msra.mxu0 0.0
    %5784 = vmatprep.subr.mxu0 0.0
    %5785 = vmatpush2.msra.mxu0 0.0
    %5786 = vmatprep.subr.mxu0 0.0
    %5787 = vmatpush2.msra.mxu0 0.0
    %5788 = vmatprep.subr.mxu0 0.0
    %5789 = vmatpush2.msra.mxu0 0.0
    %5790 = vmatprep.subr.mxu0 0.0
    %5791 = vmatpush2.msra.mxu0 0.0
    %5792 = vmatprep.subr.mxu0 0.0
    %5793 = vmatpush2.msra.mxu0 0.0
    %5794 = vmatprep.subr.mxu0 0.0
    %5795 = vmatpush2.msra.mxu0 %v5490
    %5796 = vmatprep.subr.mxu0 0.0
    %5797 = vmatpush2.msra.mxu0 %v5455
    %5798 = vmatprep.subr.mxu0 0.0
    %5799 = vmatpush2.msra.mxu0 %v5454
    %5800 = vmatprep.subr.mxu0 0.0
    %5801 = vmatpush2.msra.mxu0 %v5453
    %5802 = vmatprep.subr.mxu0 0.0
    %5803 = vmatpush2.msra.mxu0 %v5452
    %5804 = vmatprep.subr.mxu0 0.0
    %5805 = vmatpush2.msra.mxu0 %v5451
    %5806 = vmatprep.subr.mxu0 0.0
    %5807 = vmatpush2.msra.mxu0 %v5450
    %5808 = vmatprep.subr.mxu0 0.0
    %5809 = vmatpush2.msra.mxu0 %v5449
    %5810 = vmatprep.subr.mxu0 0.0
    %5811 = vmatpush2.msra.mxu0 %v5448
    %5812 = vmatprep.subr.mxu0 0.0
    %5813 = vmatpush2.msra.mxu0 %v5447
    %5814 = vmatprep.mubr.f32.mxu0 %v5733
    %5815 = vmatmul.mubr.f32.gmra.mxu0 %v5720
    %v5816 = vpop.f32.mrf.mxu0
    %v5817 = vadd.f32 0.0, %v5816
    %v5818 = vpop.f32.mrf.mxu0
    %5819 = vmatprep.mubr.f32.mxu0 %v5736
    %5820 = vmatmul.mubr.f32.gmra.mxu0 %v5722
    %v5821 = vpop.f32.mrf.mxu0
    %v5822 = vadd.f32 0.0, %v5821
    %v5823 = vpop.f32.mrf.mxu0
    %5824 = vmatprep.mubr.f32.mxu0 %v5739
    %5825 = vmatmul.mubr.f32.gmra.mxu0 %v5724
    %v5826 = vpop.f32.mrf.mxu0
    %v5827 = vadd.f32 0.0, %v5826
    %v5828 = vpop.f32.mrf.mxu0
    %5829 = vmatprep.mubr.f32.mxu0 %v5742
    %5830 = vmatmul.mubr.f32.gmra.mxu0 %v5726
    %v5831 = vpop.f32.mrf.mxu0
    %v5832 = vadd.f32 0.0, %v5831
    %v5833 = vpop.f32.mrf.mxu0
    %5834 = vmatprep.mubr.f32.mxu0 %v5745
    %5835 = vmatmul.mubr.f32.gmra.mxu0 %v5728
    %v5836 = vpop.f32.mrf.mxu0
    %v5837 = vadd.f32 0.0, %v5836
    %v5838 = vpop.f32.mrf.mxu0
    %5839 = vmatprep.mubr.f32.mxu0 %v5748
    %5840 = vmatmul.mubr.f32.gmra.mxu0 %v5730
    %v5841 = vpop.f32.mrf.mxu0
    %v5842 = vadd.f32 0.0, %v5841
    %v5843 = vpop.f32.mrf.mxu0
    %5844 = vdwg.mxu0
    %v5845 = vmax.f32 %v5713, %v5817
    %v5846 = vmax.f32 %v5714, %v5822
    %v5847 = vmax.f32 %v5715, %v5827
    %v5848 = vmax.f32 %v5716, %v5832
    %v5849 = vmax.f32 %v5717, %v5837
    %v5850 = vmax.f32 %v5718, %v5842
    %s5851 = scalar_lea.vmem %s7, 288
    %v5852 = vld [vmem:[%s5851] sm:$0xff]
    %v5853 = vld [vmem:[%s5851 + $0x8] sm:$0xff]
    %v5854 = vld [vmem:[%s5851 + $0x10] sm:$0xff]
    %v5855 = vld [vmem:[%s5851 + $0x18] sm:$0xff]
    %v5856 = vld [vmem:[%s5851 + $0x20] sm:$0xff]
    %v5857 = vld [vmem:[%s5851 + $0x28] sm:$0xff]
    %v5858 = vld [vmem:[%s5851 + $0x30] sm:$0xff]
    %v5859 = vld [vmem:[%s5851 + $0x38] sm:$0xff]
    %v5860 = vld [vmem:[%s5851 + $0x40] sm:$0xff]
    %v5861 = vld [vmem:[%s5851 + $0x48] sm:$0xff]
    %v5862 = vld [vmem:[%s5851 + $0x50] sm:$0x3]
    %v5863 = vld [vmem:[%s5851 + $0x58] sm:$0x3]
    %v5865 = vsel %vm5469, %v5853, 0
    %v5868 = vsel %vm5469, %v5855, 0
    %v5871 = vsel %vm5469, %v5857, 0
    %v5874 = vsel %vm5469, %v5859, 0
    %v5877 = vsel %vm5469, %v5861, 0
    %v5880 = vsel %vm5469, %v5863, 0
    %5882 = vmatprep.subr.mxu0 0.0
    %5883 = vmatpush1.msra.mxu0 %v5446
    %5884 = vmatprep.subr.mxu0 0.0
    %5885 = vmatpush1.msra.mxu0 %v5445
    %5886 = vmatprep.subr.mxu0 0.0
    %5887 = vmatpush1.msra.mxu0 %v5444
    %5888 = vmatprep.subr.mxu0 0.0
    %5889 = vmatpush1.msra.mxu0 %v5443
    %5890 = vmatprep.subr.mxu0 0.0
    %5891 = vmatpush1.msra.mxu0 %v5442
    %5892 = vmatprep.subr.mxu0 0.0
    %5893 = vmatpush1.msra.mxu0 %v5441
    %5894 = vmatprep.subr.mxu0 0.0
    %5895 = vmatpush1.msra.mxu0 %v5440
    %5896 = vmatprep.subr.mxu0 0.0
    %5897 = vmatpush1.msra.mxu0 %v5439
    %5898 = vmatprep.subr.mxu0 0.0
    %5899 = vmatpush1.msra.mxu0 %v5438
    %5900 = vmatprep.subr.mxu0 0.0
    %5901 = vmatpush1.msra.mxu0 %v5437
    %5902 = vmatprep.subr.mxu0 0.0
    %5903 = vmatpush1.msra.mxu0 %v5436
    %5904 = vmatprep.subr.mxu0 0.0
    %5905 = vmatpush1.msra.mxu0 %v5435
    %5906 = vmatprep.subr.mxu0 0.0
    %5907 = vmatpush1.msra.mxu0 %v5434
    %5908 = vmatprep.subr.mxu0 0.0
    %5909 = vmatpush1.msra.mxu0 %v5433
    %5910 = vmatprep.subr.mxu0 0.0
    %5911 = vmatpush1.msra.mxu0 %v5432
    %5912 = vmatprep.subr.mxu0 0.0
    %5913 = vmatpush1.msra.mxu0 %v5431
    %5914 = vmatprep.subr.mxu0 0.0
    %5915 = vmatpush2.msra.mxu0 0.0
    %5916 = vmatprep.subr.mxu0 0.0
    %5917 = vmatpush2.msra.mxu0 0.0
    %5918 = vmatprep.subr.mxu0 0.0
    %5919 = vmatpush2.msra.mxu0 0.0
    %5920 = vmatprep.subr.mxu0 0.0
    %5921 = vmatpush2.msra.mxu0 0.0
    %5922 = vmatprep.subr.mxu0 0.0
    %5923 = vmatpush2.msra.mxu0 0.0
    %5924 = vmatprep.subr.mxu0 0.0
    %5925 = vmatpush2.msra.mxu0 0.0
    %5926 = vmatprep.subr.mxu0 0.0
    %5927 = vmatpush2.msra.mxu0 %v5490
    %5928 = vmatprep.subr.mxu0 0.0
    %5929 = vmatpush2.msra.mxu0 %v5455
    %5930 = vmatprep.subr.mxu0 0.0
    %5931 = vmatpush2.msra.mxu0 %v5454
    %5932 = vmatprep.subr.mxu0 0.0
    %5933 = vmatpush2.msra.mxu0 %v5453
    %5934 = vmatprep.subr.mxu0 0.0
    %5935 = vmatpush2.msra.mxu0 %v5452
    %5936 = vmatprep.subr.mxu0 0.0
    %5937 = vmatpush2.msra.mxu0 %v5451
    %5938 = vmatprep.subr.mxu0 0.0
    %5939 = vmatpush2.msra.mxu0 %v5450
    %5940 = vmatprep.subr.mxu0 0.0
    %5941 = vmatpush2.msra.mxu0 %v5449
    %5942 = vmatprep.subr.mxu0 0.0
    %5943 = vmatpush2.msra.mxu0 %v5448
    %5944 = vmatprep.subr.mxu0 0.0
    %5945 = vmatpush2.msra.mxu0 %v5447
    %5946 = vmatprep.mubr.f32.mxu0 %v5865
    %5947 = vmatmul.mubr.f32.gmra.mxu0 %v5852
    %v5948 = vpop.f32.mrf.mxu0
    %v5949 = vadd.f32 0.0, %v5948
    %v5950 = vpop.f32.mrf.mxu0
    %5951 = vmatprep.mubr.f32.mxu0 %v5868
    %5952 = vmatmul.mubr.f32.gmra.mxu0 %v5854
    %v5953 = vpop.f32.mrf.mxu0
    %v5954 = vadd.f32 0.0, %v5953
    %v5955 = vpop.f32.mrf.mxu0
    %5956 = vmatprep.mubr.f32.mxu0 %v5871
    %5957 = vmatmul.mubr.f32.gmra.mxu0 %v5856
    %v5958 = vpop.f32.mrf.mxu0
    %v5959 = vadd.f32 0.0, %v5958
    %v5960 = vpop.f32.mrf.mxu0
    %5961 = vmatprep.mubr.f32.mxu0 %v5874
    %5962 = vmatmul.mubr.f32.gmra.mxu0 %v5858
    %v5963 = vpop.f32.mrf.mxu0
    %v5964 = vadd.f32 0.0, %v5963
    %v5965 = vpop.f32.mrf.mxu0
    %5966 = vmatprep.mubr.f32.mxu0 %v5877
    %5967 = vmatmul.mubr.f32.gmra.mxu0 %v5860
    %v5968 = vpop.f32.mrf.mxu0
    %v5969 = vadd.f32 0.0, %v5968
    %v5970 = vpop.f32.mrf.mxu0
    %5971 = vmatprep.mubr.f32.mxu0 %v5880
    %5972 = vmatmul.mubr.f32.gmra.mxu0 %v5862
    %v5973 = vpop.f32.mrf.mxu0
    %v5974 = vadd.f32 0.0, %v5973
    %v5975 = vpop.f32.mrf.mxu0
    %5976 = vdwg.mxu0
    %v5977 = vmax.f32 %v5845, %v5949
    %v5978 = vmax.f32 %v5846, %v5954
    %v5979 = vmax.f32 %v5847, %v5959
    %v5980 = vmax.f32 %v5848, %v5964
    %v5981 = vmax.f32 %v5849, %v5969
    %v5982 = vmax.f32 %v5850, %v5974
    %v5983 = vld [vmem:[#allocation6] sm:$0xff]
    %v5984 = vld [vmem:[#allocation6 + $0x8] sm:$0x3f]
    %s5985 = sld [smem:[#allocation3 + $0x1]]
    %v5986 = vstv %s5985
    %vm5987 = vcmask 343040
    %v5989 = vsel %vm5987, %v5983, 0
    %v5992 = vsel %vm5987, %v5984, 0
    %vm5994 = vcmask 1041408
    %v5996 = vsel %vm5994, %v5982, 0
    %5998 = vmatprep.subr.mxu0 0.0
    %5999 = vmatpush1.msra.mxu0 0.0
    %6000 = vmatprep.subr.mxu0 0.0
    %6001 = vmatpush1.msra.mxu0 0.0
    %6002 = vmatprep.subr.mxu0 0.0
    %6003 = vmatpush1.msra.mxu0 0.0
    %6004 = vmatprep.subr.mxu0 0.0
    %6005 = vmatpush1.msra.mxu0 0.0
    %6006 = vmatprep.subr.mxu0 0.0
    %6007 = vmatpush1.msra.mxu0 0.0
    %6008 = vmatprep.subr.mxu0 0.0
    %6009 = vmatpush1.msra.mxu0 0.0
    %6010 = vmatprep.subr.mxu0 0.0
    %6011 = vmatpush1.msra.mxu0 0.0
    %6012 = vmatprep.subr.mxu0 0.0
    %6013 = vmatpush1.msra.mxu0 0.0
    %6014 = vmatprep.subr.mxu0 0.0
    %6015 = vmatpush1.msra.mxu0 0.0
    %6016 = vmatprep.subr.mxu0 0.0
    %6017 = vmatpush1.msra.mxu0 0.0
    %6018 = vmatprep.subr.mxu0 0.0
    %6019 = vmatpush1.msra.mxu0 %v5996
    %6020 = vmatprep.subr.mxu0 0.0
    %6021 = vmatpush1.msra.mxu0 %v5981
    %6022 = vmatprep.subr.mxu0 0.0
    %6023 = vmatpush1.msra.mxu0 %v5980
    %6024 = vmatprep.subr.mxu0 0.0
    %6025 = vmatpush1.msra.mxu0 %v5979
    %6026 = vmatprep.subr.mxu0 0.0
    %6027 = vmatpush1.msra.mxu0 %v5978
    %6028 = vmatprep.subr.mxu0 0.0
    %6029 = vmatpush1.msra.mxu0 %v5977
    %6030 = vmatprep.subr.mxu0 0.0
    %6031 = vmatpush2.msra.mxu0 0.0
    %6032 = vmatprep.subr.mxu0 0.0
    %6033 = vmatpush2.msra.mxu0 0.0
    %6034 = vmatprep.subr.mxu0 0.0
    %6035 = vmatpush2.msra.mxu0 0.0
    %6036 = vmatprep.subr.mxu0 0.0
    %6037 = vmatpush2.msra.mxu0 0.0
    %6038 = vmatprep.subr.mxu0 0.0
    %6039 = vmatpush2.msra.mxu0 0.0
    %6040 = vmatprep.subr.mxu0 0.0
    %6041 = vmatpush2.msra.mxu0 0.0
    %6042 = vmatprep.subr.mxu0 0.0
    %6043 = vmatpush2.msra.mxu0 0.0
    %6044 = vmatprep.subr.mxu0 0.0
    %6045 = vmatpush2.msra.mxu0 0.0
    %6046 = vmatprep.subr.mxu0 0.0
    %6047 = vmatpush2.msra.mxu0 0.0
    %6048 = vmatprep.subr.mxu0 0.0
    %6049 = vmatpush2.msra.mxu0 0.0
    %6050 = vmatprep.subr.mxu0 0.0
    %6051 = vmatpush2.msra.mxu0 0.0
    %6052 = vmatprep.subr.mxu0 0.0
    %6053 = vmatpush2.msra.mxu0 0.0
    %6054 = vmatprep.subr.mxu0 0.0
    %6055 = vmatpush2.msra.mxu0 0.0
    %6056 = vmatprep.subr.mxu0 0.0
    %6057 = vmatpush2.msra.mxu0 0.0
    %6058 = vmatprep.subr.mxu0 0.0
    %6059 = vmatpush2.msra.mxu0 0.0
    %6060 = vmatprep.subr.mxu0 0.0
    %6061 = vmatpush2.msra.mxu0 0.0
    %6062 = vmatprep.mubr.f32.mxu0 0.0
    %6063 = vmatmul.mubr.f32.gmra.mxu0 %v5989
    %v6064 = vpop.f32.mrf.mxu0
    %v6065 = vadd.f32 %v5986, %v6064
    %v6066 = vpop.f32.mrf.mxu0
    %6067 = vmatprep.mubr.f32.mxu0 0.0
    %6068 = vmatmul.mubr.f32.gmra.mxu0 %v5992
    %v6069 = vpop.f32.mrf.mxu0
    %v6070 = vadd.f32 %v5986, %v6069
    %v6071 = vpop.f32.mrf.mxu0
    %6072 = vdwg.mxu0
    %v6073 = vmul.f32 %v6065, 0.2
    %v6074 = vmul.f32 %v6070, 0.2
    %v6075 = vmax.f32 %v6065, %v6073
    %v6076 = vmax.f32 %v6070, %v6074
    %v6077 = vld [vmem:[#allocation8] sm:$0xff]
    %v6078 = vld [vmem:[#allocation8 + $0x8] sm:$0x3f]
    %s6079 = sld [smem:[#allocation3 + $0x2]]
    %v6080 = vstv %s6079
    %vm6081 = vcmask 113664
    %v6083 = vsel %vm6081, %v6077, 0
    %v6086 = vsel %vm6081, %v6078, 0
    %vm6088 = vcmask 1045504
    %v6090 = vsel %vm6088, %v6076, 0
    %6092 = vmatprep.subr.mxu0 0.0
    %6093 = vmatpush1.msra.mxu0 0.0
    %6094 = vmatprep.subr.mxu0 0.0
    %6095 = vmatpush1.msra.mxu0 0.0
    %6096 = vmatprep.subr.mxu0 0.0
    %6097 = vmatpush1.msra.mxu0 0.0
    %6098 = vmatprep.subr.mxu0 0.0
    %6099 = vmatpush1.msra.mxu0 0.0
    %6100 = vmatprep.subr.mxu0 0.0
    %6101 = vmatpush1.msra.mxu0 0.0
    %6102 = vmatprep.subr.mxu0 0.0
    %6103 = vmatpush1.msra.mxu0 0.0
    %6104 = vmatprep.subr.mxu0 0.0
    %6105 = vmatpush1.msra.mxu0 0.0
    %6106 = vmatprep.subr.mxu0 0.0
    %6107 = vmatpush1.msra.mxu0 0.0
    %6108 = vmatprep.subr.mxu0 0.0
    %6109 = vmatpush1.msra.mxu0 0.0
    %6110 = vmatprep.subr.mxu0 0.0
    %6111 = vmatpush1.msra.mxu0 0.0
    %6112 = vmatprep.subr.mxu0 0.0
    %6113 = vmatpush1.msra.mxu0 0.0
    %6114 = vmatprep.subr.mxu0 0.0
    %6115 = vmatpush1.msra.mxu0 0.0
    %6116 = vmatprep.subr.mxu0 0.0
    %6117 = vmatpush1.msra.mxu0 0.0
    %6118 = vmatprep.subr.mxu0 0.0
    %6119 = vmatpush1.msra.mxu0 0.0
    %6120 = vmatprep.subr.mxu0 0.0
    %6121 = vmatpush1.msra.mxu0 %v6090
    %6122 = vmatprep.subr.mxu0 0.0
    %6123 = vmatpush1.msra.mxu0 %v6075
    %6124 = vmatprep.subr.mxu0 0.0
    %6125 = vmatpush2.msra.mxu0 0.0
    %6126 = vmatprep.subr.mxu0 0.0
    %6127 = vmatpush2.msra.mxu0 0.0
    %6128 = vmatprep.subr.mxu0 0.0
    %6129 = vmatpush2.msra.mxu0 0.0
    %6130 = vmatprep.subr.mxu0 0.0
    %6131 = vmatpush2.msra.mxu0 0.0
    %6132 = vmatprep.subr.mxu0 0.0
    %6133 = vmatpush2.msra.mxu0 0.0
    %6134 = vmatprep.subr.mxu0 0.0
    %6135 = vmatpush2.msra.mxu0 0.0
    %6136 = vmatprep.subr.mxu0 0.0
    %6137 = vmatpush2.msra.mxu0 0.0
    %6138 = vmatprep.subr.mxu0 0.0
    %6139 = vmatpush2.msra.mxu0 0.0
    %6140 = vmatprep.subr.mxu0 0.0
    %6141 = vmatpush2.msra.mxu0 0.0
    %6142 = vmatprep.subr.mxu0 0.0
    %6143 = vmatpush2.msra.mxu0 0.0
    %6144 = vmatprep.subr.mxu0 0.0
    %6145 = vmatpush2.msra.mxu0 0.0
    %6146 = vmatprep.subr.mxu0 0.0
    %6147 = vmatpush2.msra.mxu0 0.0
    %6148 = vmatprep.subr.mxu0 0.0
    %6149 = vmatpush2.msra.mxu0 0.0
    %6150 = vmatprep.subr.mxu0 0.0
    %6151 = vmatpush2.msra.mxu0 0.0
    %6152 = vmatprep.subr.mxu0 0.0
    %6153 = vmatpush2.msra.mxu0 0.0
    %6154 = vmatprep.subr.mxu0 0.0
    %6155 = vmatpush2.msra.mxu0 0.0
    %6156 = vmatprep.mubr.f32.mxu0 0.0
    %6157 = vmatmul.mubr.f32.gmra.mxu0 %v6083
    %v6158 = vpop.f32.mrf.mxu0
    %v6159 = vadd.f32 %v6080, %v6158
    %v6160 = vpop.f32.mrf.mxu0
    %6161 = vmatprep.mubr.f32.mxu0 0.0
    %6162 = vmatmul.mubr.f32.gmra.mxu0 %v6086
    %v6163 = vpop.f32.mrf.mxu0
    %v6164 = vadd.f32 %v6080, %v6163
    %v6165 = vpop.f32.mrf.mxu0
    %6166 = vdwg.mxu0
    %v6167 = vmul.f32 %v6159, 0.2
    %v6168 = vmul.f32 %v6164, 0.2
    %v6169 = vmax.f32 %v6159, %v6167
    %v6170 = vmax.f32 %v6164, %v6168
    %6171 = vst [vmem:[%s10] sm:$0xff] %v6169
    %6172 = vst [vmem:[%s10 + $0x8] sm:$0x3f] %v6170
    // Predicated region
    $region50: #{inter_axial_block.1} parent=1 // pred_check
      _
    $region51: #{inter_axial_block.1} parent=1 // pred_check_branch
      %6174 = sbr.rel (0) target = $region53
    $region52: #{inter_axial_block.1} parent=1 // pred_region
      _
    $region53: #{inter_axial_block.1} parent=1 // pred_fallthru
      _
    // Predicated region
    $region54: #{inter_axial_block.1} parent=1 // pred_check
      _
    $region55: #{inter_axial_block.1} parent=1 // pred_check_branch
      %6176 = sbr.rel (0) target = $region57
    $region56: #{inter_axial_block.1} parent=1 // pred_region
      _
    $region57: #{inter_axial_block.1} parent=1 // pred_fallthru
      _
    %6177 = vsyncpa [#allocation5], 1
    %6178 = vsyncpa [#allocation7], 1

</llo_original>
